<compile_context>
chip_gen: v7x
topology: tpu7x:2x2x1
jax: 0.10.0
libtpu: 0.0.40
codegen_flags: <defaults>
</compile_context>

<pallas_src>
import functools

import jax
import jax.numpy as jnp
from jax import lax
from jax.experimental import pallas as pl
from jax.experimental.pallas import tpu as pltpu

EPS = 1e-5
NEG_SLOPE = 0.2


def _round_up(x, m):
    return (x + m - 1) // m * m


def _pick_spatial_tile(S, max_tile=2048):
    """Largest tile TS | S with TS % 128 == 0 (lane-dense out stores); TS=S if small."""
    if S <= max_tile:
        return S
    for cand in range((max_tile // 128) * 128, 0, -128):
        if S % cand == 0:
            return cand
    return S  # fallback: whole plane-set per step (always BlockSpec-legal)


# --------------- Pass 1: conv as 27 accumulated MXU matmuls + partial stats ---------------
def _conv_stats_kernel(x0_ref, x1_ref, x2_ref, w_ref, y_ref, st_ref,
                       *, Ho, Wo, Cin, Cpad, stride):
    """One (n, do) grid step: 3x3x3 conv over a full HxW output plane.

    x{kd}_ref : (H+2, W+2, Cin) bf16  -- padded-input depth slice stride*do + kd
    w_ref     : (27, Cin, Cpad) bf16  -- taps (kd,kh,kw) major, zero-padded out-channels
    y_ref     : (Ho*Wo, Cpad)   bf16  -- conv output rows for this plane
    st_ref    : (2, Cpad)       f32   -- per-tile partial [sum ; sum of squares]
    """
    HoWo = Ho * Wo
    x_refs = (x0_ref, x1_ref, x2_ref)
    acc = jnp.zeros((HoWo, Cpad), jnp.float32)
    k = 0
    for kd in range(3):
        xk = x_refs[kd]
        for kh in range(3):
            for kw in range(3):
                if stride == 1:
                    win = xk[kh:kh + Ho, kw:kw + Wo, :]
                else:
                    # TODO(synk): strided window read; only the stride==1 path is
                    # exercised by the demo.
                    win = xk[pl.ds(kh, Ho, stride=stride),
                             pl.ds(kw, Wo, stride=stride), :]
                a = win.reshape(HoWo, Cin)                       # free when Wo % 8 == 0
                acc = acc + jnp.dot(a, w_ref[k],
                                    preferred_element_type=jnp.float32)
                k += 1
    y_ref[...] = acc.astype(y_ref.dtype)
    st_ref[0:1, :] = jnp.sum(acc, axis=0, keepdims=True)
    st_ref[1:2, :] = jnp.sum(acc * acc, axis=0, keepdims=True)


# --------------- Pass 2: folded BN affine + LeakyReLU + channels-first store ---------------
def _bn_lrelu_kernel(y_ref, scale_ref, shift_ref, o_ref, *, cout):
    """y_ref: (TS, Cpad) bf16; scale/shift: (1, Cpad) f32; o_ref: (Cout, TS) f32."""
    z = y_ref[...].astype(jnp.float32) * scale_ref[...] + shift_ref[...]
    z = jnp.where(z >= 0, z, NEG_SLOPE * z)
    zt = jnp.transpose(z)             # (Cpad, TS): in-VMEM transpose, lane-dense store
    o_ref[...] = zt[:cout, :]


def conv_down_pallas(x, weight, gamma, beta, stride=1):
    """x: (N, Cin, D, H, W) f32; weight: (Cout, Cin, 3, 3, 3) f32;
    gamma/beta: (Cout,) f32 (PyTorch BatchNorm3d affine params).
    Returns (N, Cout, Do, Ho, Wo) f32."""
    N, Cin, D, H, W = x.shape
    Cout = weight.shape[0]
    s = stride
    Do = (D + 2 - 3) // s + 1
    Ho = (H + 2 - 3) // s + 1
    Wo = (W + 2 - 3) // s + 1
    HoWo = Ho * Wo
    S = Do * HoWo
    Cpad = _round_up(Cout, 128)
    Hp, Wp = H + 2, W + 2

    assert Do == 1 or HoWo % 8 == 0, \
        "pass-1 row tile (Ho*Wo) must be a multiple of 8 (sublane constraint)"

    # ---- glue: pad halo + channels-last + bf16 (single pass over the small input) ----
    x_cl = jnp.transpose(x, (0, 2, 3, 4, 1))                                  # (N,D,H,W,Cin)
    x_pad = jnp.pad(x_cl, ((0, 0), (1, 1), (1, 1), (1, 1), (0, 0))).astype(jnp.bfloat16)

    # weights: (Cout,Cin,3,3,3) -> (27, Cin, Cpad) bf16, zero-padded out-channels
    w_taps = jnp.transpose(weight, (2, 3, 4, 1, 0)).reshape(27, Cin, Cout)
    w_taps = jnp.pad(w_taps, ((0, 0), (0, 0), (0, Cpad - Cout))).astype(jnp.bfloat16)

    # ---- pass 1: conv + per-tile partial stats (fully parallel grid) ----
    def x_spec(kd):
        return pl.BlockSpec(
            (None, None, Hp, Wp, Cin),
            lambda n, do, kd=kd: (n, s * do + kd, 0, 0, 0))

    conv_out, partial_stats = pl.pallas_call(
        functools.partial(_conv_stats_kernel,
                          Ho=Ho, Wo=Wo, Cin=Cin, Cpad=Cpad, stride=s),
        out_shape=(
            jax.ShapeDtypeStruct((N, S, Cpad), jnp.bfloat16),    # bf16 intermediate
            jax.ShapeDtypeStruct((N, Do, 2, Cpad), jnp.float32),  # per-tile partial stats
        ),
        grid=(N, Do),
        in_specs=[
            x_spec(0), x_spec(1), x_spec(2),
            pl.BlockSpec((27, Cin, Cpad), lambda n, do: (0, 0, 0)),
        ],
        out_specs=(
            pl.BlockSpec((None, HoWo, Cpad), lambda n, do: (n, do, 0)),
            pl.BlockSpec((None, None, 2, Cpad), lambda n, do: (n, do, 0, 0)),
        ),
        compiler_params=pltpu.CompilerParams(
            dimension_semantics=("parallel", "parallel")),
    )(x_pad, x_pad, x_pad, w_taps)

    # ---- glue: reduce tiny partials, fold BN into one per-channel scale/shift ----
    # TODO(synk): E[y^2]-E[y]^2 can cancel for very large / ill-conditioned activations;
    # switch to two-pass or Welford accumulation if shapes grow far beyond the demo.
    tot = jnp.sum(partial_stats, axis=(0, 1))                    # (2, Cpad)
    count = float(N * S)
    mean = tot[0] / count
    var = jnp.maximum(tot[1] / count - mean * mean, 0.0)         # biased var (PyTorch BN norm)
    inv_std = lax.rsqrt(var + EPS)
    gamma_p = jnp.pad(gamma.reshape(Cout).astype(jnp.float32), (0, Cpad - Cout))
    beta_p = jnp.pad(beta.reshape(Cout).astype(jnp.float32), (0, Cpad - Cout))
    scale = (gamma_p * inv_std).reshape(1, Cpad)
    shift = (beta_p - mean * gamma_p * inv_std).reshape(1, Cpad)

    # ---- pass 2: FMA + LeakyReLU, write channels-first lane-dense tiles ----
    TS = _pick_spatial_tile(S)
    out = pl.pallas_call(
        functools.partial(_bn_lrelu_kernel, cout=Cout),
        out_shape=jax.ShapeDtypeStruct((N, Cout, S), jnp.float32),
        grid=(N, S // TS),
        in_specs=[
            pl.BlockSpec((None, TS, Cpad), lambda n, j: (n, j, 0)),
            pl.BlockSpec((1, Cpad), lambda n, j: (0, 0)),
            pl.BlockSpec((1, Cpad), lambda n, j: (0, 0)),
        ],
        out_specs=pl.BlockSpec((None, Cout, TS), lambda n, j: (n, 0, j)),
        compiler_params=pltpu.CompilerParams(
            dimension_semantics=("parallel", "parallel")),
    )(conv_out, scale, shift)

    # pure reshape (no data movement): (N, Cout, Do*Ho*Wo) -> NCDHW
    return out.reshape(N, Cout, Do, Ho, Wo)


# ------------------------------- reference & demo -------------------------------
def _reference(x, weight, gamma, beta, stride=1):
    y = lax.conv_general_dilated(
        x, weight, window_strides=(stride,) * 3,
        padding=((1, 1), (1, 1), (1, 1)),
        dimension_numbers=("NCDHW", "OIDHW", "NCDHW"))
    mean = y.mean(axis=(0, 2, 3, 4), keepdims=True)
    var = y.var(axis=(0, 2, 3, 4), keepdims=True)   # biased, as PyTorch BN training-mode norm
    Cout = weight.shape[0]
    g = gamma.reshape(1, Cout, 1, 1, 1)
    b = beta.reshape(1, Cout, 1, 1, 1)
    z = (y - mean) / jnp.sqrt(var + EPS) * g + b
    return jnp.where(z >= 0, z, NEG_SLOPE * z)


if __name__ == "__main__":
    N, Cin, Cout = 2, 4, 8
    D = H = W = 8
    stride = 1

    key = jax.random.PRNGKey(0)
    kx, kw = jax.random.split(key)
    x = jax.random.normal(kx, (N, Cin, D, H, W), dtype=jnp.float32)
    weight = jax.random.normal(kw, (Cout, Cin, 3, 3, 3), dtype=jnp.float32) * 0.1
    gamma = jnp.ones((Cout,), dtype=jnp.float32)   # BatchNorm3d default affine weight
    beta = jnp.zeros((Cout,), dtype=jnp.float32)   # BatchNorm3d default affine bias

    out = conv_down_pallas(x, weight, gamma, beta, stride=stride)
    out = jax.block_until_ready(out)

    ref = _reference(x, weight, gamma, beta, stride=stride)
    assert out.shape == ref.shape == (N, Cout, D, H, W)
    # bf16 MXU operands + bf16 intermediate -> relaxed tolerance vs the f32 reference.
    assert jnp.allclose(out, ref, atol=3e-2, rtol=3e-2), "mismatch vs reference"

    print("KERNEL_OK")
</pallas_src>

<mosaic_0001>
module attributes {stable_mosaic.version = 11 : i64} {
  func.func @_conv_stats_kernel(%arg0: i32, %arg1: i32, %arg2: memref<1x1x10x10x4xbf16, #tpu.memory_space<vmem>>, %arg3: memref<1x1x10x10x4xbf16, #tpu.memory_space<vmem>>, %arg4: memref<1x1x10x10x4xbf16, #tpu.memory_space<vmem>>, %arg5: memref<27x4x128xbf16, #tpu.memory_space<vmem>>, %arg6: memref<1x64x128xbf16, #tpu.memory_space<vmem>>, %arg7: memref<1x1x2x128xf32, #tpu.memory_space<vmem>>) attributes {dimension_semantics = [#tpu.dimension_semantics<parallel>, #tpu.dimension_semantics<parallel>], iteration_bounds = array<i64: 2, 8>, scalar_prefetch = 0 : i64, scratch_operands = 0 : i64, tpu.core_type = #tpu.core_type<tc>, window_params = [{transform_indices = @transform_0, window_bounds = array<i64: 1, 1, 10, 10, 4>}, {transform_indices = @transform_1, window_bounds = array<i64: 1, 1, 10, 10, 4>}, {transform_indices = @transform_2, window_bounds = array<i64: 1, 1, 10, 10, 4>}, {pipeline_mode = #tpu.pipeline_mode<synchronous>, transform_indices = @transform_3, window_bounds = array<i64: 27, 4, 128>}, {transform_indices = @transform_4, window_bounds = array<i64: 1, 64, 128>}, {transform_indices = @transform_5, window_bounds = array<i64: 1, 1, 2, 128>}]} {
    %cst = arith.constant 0.000000e+00 : f32
    %0 = vector.broadcast %cst : f32 to vector<64x128xf32>
    %c0 = arith.constant 0 : index
    %c0_0 = arith.constant 0 : index
    %c0_1 = arith.constant 0 : index
    %c0_2 = arith.constant 0 : index
    %c0_3 = arith.constant 0 : index
    %1 = vector.load %arg2[%c0, %c0_0, %c0_1, %c0_2, %c0_3] : memref<1x1x10x10x4xbf16, #tpu.memory_space<vmem>>, vector<1x1x8x8x4xbf16>
    %2 = vector.shape_cast %1 : vector<1x1x8x8x4xbf16> to vector<8x8x4xbf16>
    %3 = vector.shape_cast %2 : vector<8x8x4xbf16> to vector<64x4xbf16>
    %c0_4 = arith.constant 0 : index
    %c0_5 = arith.constant 0 : index
    %c0_6 = arith.constant 0 : index
    %4 = vector.load %arg5[%c0_4, %c0_5, %c0_6] : memref<27x4x128xbf16, #tpu.memory_space<vmem>>, vector<1x4x128xbf16>
    %5 = vector.shape_cast %4 : vector<1x4x128xbf16> to vector<4x128xbf16>
    %cst_7 = arith.constant dense<0.000000e+00> : vector<64x128xf32>
    %6 = tpu.matmul %3, %5, %cst_7 {dimension_numbers = #tpu.dot_dimension_numbers<[1], [0], [0], [1], [0, 0, 1, 1], [], []>} : vector<64x4xbf16>, vector<4x128xbf16>, vector<64x128xf32> -> vector<64x128xf32>
    %7 = arith.addf %0, %6 : vector<64x128xf32>
    %c0_8 = arith.constant 0 : index
    %c0_9 = arith.constant 0 : index
    %c0_10 = arith.constant 0 : index
    %c1 = arith.constant 1 : index
    %c0_11 = arith.constant 0 : index
    %8 = vector.load %arg2[%c0_8, %c0_9, %c0_10, %c1, %c0_11] : memref<1x1x10x10x4xbf16, #tpu.memory_space<vmem>>, vector<1x1x8x8x4xbf16>
    %9 = vector.shape_cast %8 : vector<1x1x8x8x4xbf16> to vector<8x8x4xbf16>
    %10 = vector.shape_cast %9 : vector<8x8x4xbf16> to vector<64x4xbf16>
    %c1_12 = arith.constant 1 : index
    %c0_13 = arith.constant 0 : index
    %c0_14 = arith.constant 0 : index
    %11 = vector.load %arg5[%c1_12, %c0_13, %c0_14] : memref<27x4x128xbf16, #tpu.memory_space<vmem>>, vector<1x4x128xbf16>
    %12 = vector.shape_cast %11 : vector<1x4x128xbf16> to vector<4x128xbf16>
    %cst_15 = arith.constant dense<0.000000e+00> : vector<64x128xf32>
    %13 = tpu.matmul %10, %12, %cst_15 {dimension_numbers = #tpu.dot_dimension_numbers<[1], [0], [0], [1], [0, 0, 1, 1], [], []>} : vector<64x4xbf16>, vector<4x128xbf16>, vector<64x128xf32> -> vector<64x128xf32>
    %14 = arith.addf %7, %13 : vector<64x128xf32>
    %c0_16 = arith.constant 0 : index
    %c0_17 = arith.constant 0 : index
    %c0_18 = arith.constant 0 : index
    %c2 = arith.constant 2 : index
    %c0_19 = arith.constant 0 : index
    %15 = vector.load %arg2[%c0_16, %c0_17, %c0_18, %c2, %c0_19] : memref<1x1x10x10x4xbf16, #tpu.memory_space<vmem>>, vector<1x1x8x8x4xbf16>
    %16 = vector.shape_cast %15 : vector<1x1x8x8x4xbf16> to vector<8x8x4xbf16>
    %17 = vector.shape_cast %16 : vector<8x8x4xbf16> to vector<64x4xbf16>
    %c2_20 = arith.constant 2 : index
    %c0_21 = arith.constant 0 : index
    %c0_22 = arith.constant 0 : index
    %18 = vector.load %arg5[%c2_20, %c0_21, %c0_22] : memref<27x4x128xbf16, #tpu.memory_space<vmem>>, vector<1x4x128xbf16>
    %19 = vector.shape_cast %18 : vector<1x4x128xbf16> to vector<4x128xbf16>
    %cst_23 = arith.constant dense<0.000000e+00> : vector<64x128xf32>
    %20 = tpu.matmul %17, %19, %cst_23 {dimension_numbers = #tpu.dot_dimension_numbers<[1], [0], [0], [1], [0, 0, 1, 1], [], []>} : vector<64x4xbf16>, vector<4x128xbf16>, vector<64x128xf32> -> vector<64x128xf32>
    %21 = arith.addf %14, %20 : vector<64x128xf32>
    %c0_24 = arith.constant 0 : index
    %c0_25 = arith.constant 0 : index
    %c1_26 = arith.constant 1 : index
    %c0_27 = arith.constant 0 : index
    %c0_28 = arith.constant 0 : index
    %22 = vector.load %arg2[%c0_24, %c0_25, %c1_26, %c0_27, %c0_28] : memref<1x1x10x10x4xbf16, #tpu.memory_space<vmem>>, vector<1x1x8x8x4xbf16>
    %23 = vector.shape_cast %22 : vector<1x1x8x8x4xbf16> to vector<8x8x4xbf16>
    %24 = vector.shape_cast %23 : vector<8x8x4xbf16> to vector<64x4xbf16>
    %c3 = arith.constant 3 : index
    %c0_29 = arith.constant 0 : index
    %c0_30 = arith.constant 0 : index
    %25 = vector.load %arg5[%c3, %c0_29, %c0_30] : memref<27x4x128xbf16, #tpu.memory_space<vmem>>, vector<1x4x128xbf16>
    %26 = vector.shape_cast %25 : vector<1x4x128xbf16> to vector<4x128xbf16>
    %cst_31 = arith.constant dense<0.000000e+00> : vector<64x128xf32>
    %27 = tpu.matmul %24, %26, %cst_31 {dimension_numbers = #tpu.dot_dimension_numbers<[1], [0], [0], [1], [0, 0, 1, 1], [], []>} : vector<64x4xbf16>, vector<4x128xbf16>, vector<64x128xf32> -> vector<64x128xf32>
    %28 = arith.addf %21, %27 : vector<64x128xf32>
    %c0_32 = arith.constant 0 : index
    %c0_33 = arith.constant 0 : index
    %c1_34 = arith.constant 1 : index
    %c1_35 = arith.constant 1 : index
    %c0_36 = arith.constant 0 : index
    %29 = vector.load %arg2[%c0_32, %c0_33, %c1_34, %c1_35, %c0_36] : memref<1x1x10x10x4xbf16, #tpu.memory_space<vmem>>, vector<1x1x8x8x4xbf16>
    %30 = vector.shape_cast %29 : vector<1x1x8x8x4xbf16> to vector<8x8x4xbf16>
    %31 = vector.shape_cast %30 : vector<8x8x4xbf16> to vector<64x4xbf16>
    %c4 = arith.constant 4 : index
    %c0_37 = arith.constant 0 : index
    %c0_38 = arith.constant 0 : index
    %32 = vector.load %arg5[%c4, %c0_37, %c0_38] : memref<27x4x128xbf16, #tpu.memory_space<vmem>>, vector<1x4x128xbf16>
    %33 = vector.shape_cast %32 : vector<1x4x128xbf16> to vector<4x128xbf16>
    %cst_39 = arith.constant dense<0.000000e+00> : vector<64x128xf32>
    %34 = tpu.matmul %31, %33, %cst_39 {dimension_numbers = #tpu.dot_dimension_numbers<[1], [0], [0], [1], [0, 0, 1, 1], [], []>} : vector<64x4xbf16>, vector<4x128xbf16>, vector<64x128xf32> -> vector<64x128xf32>
    %35 = arith.addf %28, %34 : vector<64x128xf32>
    %c0_40 = arith.constant 0 : index
    %c0_41 = arith.constant 0 : index
    %c1_42 = arith.constant 1 : index
    %c2_43 = arith.constant 2 : index
    %c0_44 = arith.constant 0 : index
    %36 = vector.load %arg2[%c0_40, %c0_41, %c1_42, %c2_43, %c0_44] : memref<1x1x10x10x4xbf16, #tpu.memory_space<vmem>>, vector<1x1x8x8x4xbf16>
    %37 = vector.shape_cast %36 : vector<1x1x8x8x4xbf16> to vector<8x8x4xbf16>
    %38 = vector.shape_cast %37 : vector<8x8x4xbf16> to vector<64x4xbf16>
    %c5 = arith.constant 5 : index
    %c0_45 = arith.constant 0 : index
    %c0_46 = arith.constant 0 : index
    %39 = vector.load %arg5[%c5, %c0_45, %c0_46] : memref<27x4x128xbf16, #tpu.memory_space<vmem>>, vector<1x4x128xbf16>
    %40 = vector.shape_cast %39 : vector<1x4x128xbf16> to vector<4x128xbf16>
    %cst_47 = arith.constant dense<0.000000e+00> : vector<64x128xf32>
    %41 = tpu.matmul %38, %40, %cst_47 {dimension_numbers = #tpu.dot_dimension_numbers<[1], [0], [0], [1], [0, 0, 1, 1], [], []>} : vector<64x4xbf16>, vector<4x128xbf16>, vector<64x128xf32> -> vector<64x128xf32>
    %42 = arith.addf %35, %41 : vector<64x128xf32>
    %c0_48 = arith.constant 0 : index
    %c0_49 = arith.constant 0 : index
    %c2_50 = arith.constant 2 : index
    %c0_51 = arith.constant 0 : index
    %c0_52 = arith.constant 0 : index
    %43 = vector.load %arg2[%c0_48, %c0_49, %c2_50, %c0_51, %c0_52] : memref<1x1x10x10x4xbf16, #tpu.memory_space<vmem>>, vector<1x1x8x8x4xbf16>
    %44 = vector.shape_cast %43 : vector<1x1x8x8x4xbf16> to vector<8x8x4xbf16>
    %45 = vector.shape_cast %44 : vector<8x8x4xbf16> to vector<64x4xbf16>
    %c6 = arith.constant 6 : index
    %c0_53 = arith.constant 0 : index
    %c0_54 = arith.constant 0 : index
    %46 = vector.load %arg5[%c6, %c0_53, %c0_54] : memref<27x4x128xbf16, #tpu.memory_space<vmem>>, vector<1x4x128xbf16>
    %47 = vector.shape_cast %46 : vector<1x4x128xbf16> to vector<4x128xbf16>
    %cst_55 = arith.constant dense<0.000000e+00> : vector<64x128xf32>
    %48 = tpu.matmul %45, %47, %cst_55 {dimension_numbers = #tpu.dot_dimension_numbers<[1], [0], [0], [1], [0, 0, 1, 1], [], []>} : vector<64x4xbf16>, vector<4x128xbf16>, vector<64x128xf32> -> vector<64x128xf32>
    %49 = arith.addf %42, %48 : vector<64x128xf32>
    %c0_56 = arith.constant 0 : index
    %c0_57 = arith.constant 0 : index
    %c2_58 = arith.constant 2 : index
    %c1_59 = arith.constant 1 : index
    %c0_60 = arith.constant 0 : index
    %50 = vector.load %arg2[%c0_56, %c0_57, %c2_58, %c1_59, %c0_60] : memref<1x1x10x10x4xbf16, #tpu.memory_space<vmem>>, vector<1x1x8x8x4xbf16>
    %51 = vector.shape_cast %50 : vector<1x1x8x8x4xbf16> to vector<8x8x4xbf16>
    %52 = vector.shape_cast %51 : vector<8x8x4xbf16> to vector<64x4xbf16>
    %c7 = arith.constant 7 : index
    %c0_61 = arith.constant 0 : index
    %c0_62 = arith.constant 0 : index
    %53 = vector.load %arg5[%c7, %c0_61, %c0_62] : memref<27x4x128xbf16, #tpu.memory_space<vmem>>, vector<1x4x128xbf16>
    %54 = vector.shape_cast %53 : vector<1x4x128xbf16> to vector<4x128xbf16>
    %cst_63 = arith.constant dense<0.000000e+00> : vector<64x128xf32>
    %55 = tpu.matmul %52, %54, %cst_63 {dimension_numbers = #tpu.dot_dimension_numbers<[1], [0], [0], [1], [0, 0, 1, 1], [], []>} : vector<64x4xbf16>, vector<4x128xbf16>, vector<64x128xf32> -> vector<64x128xf32>
    %56 = arith.addf %49, %55 : vector<64x128xf32>
    %c0_64 = arith.constant 0 : index
    %c0_65 = arith.constant 0 : index
    %c2_66 = arith.constant 2 : index
    %c2_67 = arith.constant 2 : index
    %c0_68 = arith.constant 0 : index
    %57 = vector.load %arg2[%c0_64, %c0_65, %c2_66, %c2_67, %c0_68] : memref<1x1x10x10x4xbf16, #tpu.memory_space<vmem>>, vector<1x1x8x8x4xbf16>
    %58 = vector.shape_cast %57 : vector<1x1x8x8x4xbf16> to vector<8x8x4xbf16>
    %59 = vector.shape_cast %58 : vector<8x8x4xbf16> to vector<64x4xbf16>
    %c8 = arith.constant 8 : index
    %c0_69 = arith.constant 0 : index
    %c0_70 = arith.constant 0 : index
    %60 = vector.load %arg5[%c8, %c0_69, %c0_70] : memref<27x4x128xbf16, #tpu.memory_space<vmem>>, vector<1x4x128xbf16>
    %61 = vector.shape_cast %60 : vector<1x4x128xbf16> to vector<4x128xbf16>
    %cst_71 = arith.constant dense<0.000000e+00> : vector<64x128xf32>
    %62 = tpu.matmul %59, %61, %cst_71 {dimension_numbers = #tpu.dot_dimension_numbers<[1], [0], [0], [1], [0, 0, 1, 1], [], []>} : vector<64x4xbf16>, vector<4x128xbf16>, vector<64x128xf32> -> vector<64x128xf32>
    %63 = arith.addf %56, %62 : vector<64x128xf32>
    %c0_72 = arith.constant 0 : index
    %c0_73 = arith.constant 0 : index
    %c0_74 = arith.constant 0 : index
    %c0_75 = arith.constant 0 : index
    %c0_76 = arith.constant 0 : index
    %64 = vector.load %arg3[%c0_72, %c0_73, %c0_74, %c0_75, %c0_76] : memref<1x1x10x10x4xbf16, #tpu.memory_space<vmem>>, vector<1x1x8x8x4xbf16>
    %65 = vector.shape_cast %64 : vector<1x1x8x8x4xbf16> to vector<8x8x4xbf16>
    %66 = vector.shape_cast %65 : vector<8x8x4xbf16> to vector<64x4xbf16>
    %c9 = arith.constant 9 : index
    %c0_77 = arith.constant 0 : index
    %c0_78 = arith.constant 0 : index
    %67 = vector.load %arg5[%c9, %c0_77, %c0_78] : memref<27x4x128xbf16, #tpu.memory_space<vmem>>, vector<1x4x128xbf16>
    %68 = vector.shape_cast %67 : vector<1x4x128xbf16> to vector<4x128xbf16>
    %cst_79 = arith.constant dense<0.000000e+00> : vector<64x128xf32>
    %69 = tpu.matmul %66, %68, %cst_79 {dimension_numbers = #tpu.dot_dimension_numbers<[1], [0], [0], [1], [0, 0, 1, 1], [], []>} : vector<64x4xbf16>, vector<4x128xbf16>, vector<64x128xf32> -> vector<64x128xf32>
    %70 = arith.addf %63, %69 : vector<64x128xf32>
    %c0_80 = arith.constant 0 : index
    %c0_81 = arith.constant 0 : index
    %c0_82 = arith.constant 0 : index
    %c1_83 = arith.constant 1 : index
    %c0_84 = arith.constant 0 : index
    %71 = vector.load %arg3[%c0_80, %c0_81, %c0_82, %c1_83, %c0_84] : memref<1x1x10x10x4xbf16, #tpu.memory_space<vmem>>, vector<1x1x8x8x4xbf16>
    %72 = vector.shape_cast %71 : vector<1x1x8x8x4xbf16> to vector<8x8x4xbf16>
    %73 = vector.shape_cast %72 : vector<8x8x4xbf16> to vector<64x4xbf16>
    %c10 = arith.constant 10 : index
    %c0_85 = arith.constant 0 : index
    %c0_86 = arith.constant 0 : index
    %74 = vector.load %arg5[%c10, %c0_85, %c0_86] : memref<27x4x128xbf16, #tpu.memory_space<vmem>>, vector<1x4x128xbf16>
    %75 = vector.shape_cast %74 : vector<1x4x128xbf16> to vector<4x128xbf16>
    %cst_87 = arith.constant dense<0.000000e+00> : vector<64x128xf32>
    %76 = tpu.matmul %73, %75, %cst_87 {dimension_numbers = #tpu.dot_dimension_numbers<[1], [0], [0], [1], [0, 0, 1, 1], [], []>} : vector<64x4xbf16>, vector<4x128xbf16>, vector<64x128xf32> -> vector<64x128xf32>
    %77 = arith.addf %70, %76 : vector<64x128xf32>
    %c0_88 = arith.constant 0 : index
    %c0_89 = arith.constant 0 : index
    %c0_90 = arith.constant 0 : index
    %c2_91 = arith.constant 2 : index
    %c0_92 = arith.constant 0 : index
    %78 = vector.load %arg3[%c0_88, %c0_89, %c0_90, %c2_91, %c0_92] : memref<1x1x10x10x4xbf16, #tpu.memory_space<vmem>>, vector<1x1x8x8x4xbf16>
    %79 = vector.shape_cast %78 : vector<1x1x8x8x4xbf16> to vector<8x8x4xbf16>
    %80 = vector.shape_cast %79 : vector<8x8x4xbf16> to vector<64x4xbf16>
    %c11 = arith.constant 11 : index
    %c0_93 = arith.constant 0 : index
    %c0_94 = arith.constant 0 : index
    %81 = vector.load %arg5[%c11, %c0_93, %c0_94] : memref<27x4x128xbf16, #tpu.memory_space<vmem>>, vector<1x4x128xbf16>
    %82 = vector.shape_cast %81 : vector<1x4x128xbf16> to vector<4x128xbf16>
    %cst_95 = arith.constant dense<0.000000e+00> : vector<64x128xf32>
    %83 = tpu.matmul %80, %82, %cst_95 {dimension_numbers = #tpu.dot_dimension_numbers<[1], [0], [0], [1], [0, 0, 1, 1], [], []>} : vector<64x4xbf16>, vector<4x128xbf16>, vector<64x128xf32> -> vector<64x128xf32>
    %84 = arith.addf %77, %83 : vector<64x128xf32>
    %c0_96 = arith.constant 0 : index
    %c0_97 = arith.constant 0 : index
    %c1_98 = arith.constant 1 : index
    %c0_99 = arith.constant 0 : index
    %c0_100 = arith.constant 0 : index
    %85 = vector.load %arg3[%c0_96, %c0_97, %c1_98, %c0_99, %c0_100] : memref<1x1x10x10x4xbf16, #tpu.memory_space<vmem>>, vector<1x1x8x8x4xbf16>
    %86 = vector.shape_cast %85 : vector<1x1x8x8x4xbf16> to vector<8x8x4xbf16>
    %87 = vector.shape_cast %86 : vector<8x8x4xbf16> to vector<64x4xbf16>
    %c12 = arith.constant 12 : index
    %c0_101 = arith.constant 0 : index
    %c0_102 = arith.constant 0 : index
    %88 = vector.load %arg5[%c12, %c0_101, %c0_102] : memref<27x4x128xbf16, #tpu.memory_space<vmem>>, vector<1x4x128xbf16>
    %89 = vector.shape_cast %88 : vector<1x4x128xbf16> to vector<4x128xbf16>
    %cst_103 = arith.constant dense<0.000000e+00> : vector<64x128xf32>
    %90 = tpu.matmul %87, %89, %cst_103 {dimension_numbers = #tpu.dot_dimension_numbers<[1], [0], [0], [1], [0, 0, 1, 1], [], []>} : vector<64x4xbf16>, vector<4x128xbf16>, vector<64x128xf32> -> vector<64x128xf32>
    %91 = arith.addf %84, %90 : vector<64x128xf32>
    %c0_104 = arith.constant 0 : index
    %c0_105 = arith.constant 0 : index
    %c1_106 = arith.constant 1 : index
    %c1_107 = arith.constant 1 : index
    %c0_108 = arith.constant 0 : index
    %92 = vector.load %arg3[%c0_104, %c0_105, %c1_106, %c1_107, %c0_108] : memref<1x1x10x10x4xbf16, #tpu.memory_space<vmem>>, vector<1x1x8x8x4xbf16>
    %93 = vector.shape_cast %92 : vector<1x1x8x8x4xbf16> to vector<8x8x4xbf16>
    %94 = vector.shape_cast %93 : vector<8x8x4xbf16> to vector<64x4xbf16>
    %c13 = arith.constant 13 : index
    %c0_109 = arith.constant 0 : index
    %c0_110 = arith.constant 0 : index
    %95 = vector.load %arg5[%c13, %c0_109, %c0_110] : memref<27x4x128xbf16, #tpu.memory_space<vmem>>, vector<1x4x128xbf16>
    %96 = vector.shape_cast %95 : vector<1x4x128xbf16> to vector<4x128xbf16>
    %cst_111 = arith.constant dense<0.000000e+00> : vector<64x128xf32>
    %97 = tpu.matmul %94, %96, %cst_111 {dimension_numbers = #tpu.dot_dimension_numbers<[1], [0], [0], [1], [0, 0, 1, 1], [], []>} : vector<64x4xbf16>, vector<4x128xbf16>, vector<64x128xf32> -> vector<64x128xf32>
    %98 = arith.addf %91, %97 : vector<64x128xf32>
    %c0_112 = arith.constant 0 : index
    %c0_113 = arith.constant 0 : index
    %c1_114 = arith.constant 1 : index
    %c2_115 = arith.constant 2 : index
    %c0_116 = arith.constant 0 : index
    %99 = vector.load %arg3[%c0_112, %c0_113, %c1_114, %c2_115, %c0_116] : memref<1x1x10x10x4xbf16, #tpu.memory_space<vmem>>, vector<1x1x8x8x4xbf16>
    %100 = vector.shape_cast %99 : vector<1x1x8x8x4xbf16> to vector<8x8x4xbf16>
    %101 = vector.shape_cast %100 : vector<8x8x4xbf16> to vector<64x4xbf16>
    %c14 = arith.constant 14 : index
    %c0_117 = arith.constant 0 : index
    %c0_118 = arith.constant 0 : index
    %102 = vector.load %arg5[%c14, %c0_117, %c0_118] : memref<27x4x128xbf16, #tpu.memory_space<vmem>>, vector<1x4x128xbf16>
    %103 = vector.shape_cast %102 : vector<1x4x128xbf16> to vector<4x128xbf16>
    %cst_119 = arith.constant dense<0.000000e+00> : vector<64x128xf32>
    %104 = tpu.matmul %101, %103, %cst_119 {dimension_numbers = #tpu.dot_dimension_numbers<[1], [0], [0], [1], [0, 0, 1, 1], [], []>} : vector<64x4xbf16>, vector<4x128xbf16>, vector<64x128xf32> -> vector<64x128xf32>
    %105 = arith.addf %98, %104 : vector<64x128xf32>
    %c0_120 = arith.constant 0 : index
    %c0_121 = arith.constant 0 : index
    %c2_122 = arith.constant 2 : index
    %c0_123 = arith.constant 0 : index
    %c0_124 = arith.constant 0 : index
    %106 = vector.load %arg3[%c0_120, %c0_121, %c2_122, %c0_123, %c0_124] : memref<1x1x10x10x4xbf16, #tpu.memory_space<vmem>>, vector<1x1x8x8x4xbf16>
    %107 = vector.shape_cast %106 : vector<1x1x8x8x4xbf16> to vector<8x8x4xbf16>
    %108 = vector.shape_cast %107 : vector<8x8x4xbf16> to vector<64x4xbf16>
    %c15 = arith.constant 15 : index
    %c0_125 = arith.constant 0 : index
    %c0_126 = arith.constant 0 : index
    %109 = vector.load %arg5[%c15, %c0_125, %c0_126] : memref<27x4x128xbf16, #tpu.memory_space<vmem>>, vector<1x4x128xbf16>
    %110 = vector.shape_cast %109 : vector<1x4x128xbf16> to vector<4x128xbf16>
    %cst_127 = arith.constant dense<0.000000e+00> : vector<64x128xf32>
    %111 = tpu.matmul %108, %110, %cst_127 {dimension_numbers = #tpu.dot_dimension_numbers<[1], [0], [0], [1], [0, 0, 1, 1], [], []>} : vector<64x4xbf16>, vector<4x128xbf16>, vector<64x128xf32> -> vector<64x128xf32>
    %112 = arith.addf %105, %111 : vector<64x128xf32>
    %c0_128 = arith.constant 0 : index
    %c0_129 = arith.constant 0 : index
    %c2_130 = arith.constant 2 : index
    %c1_131 = arith.constant 1 : index
    %c0_132 = arith.constant 0 : index
    %113 = vector.load %arg3[%c0_128, %c0_129, %c2_130, %c1_131, %c0_132] : memref<1x1x10x10x4xbf16, #tpu.memory_space<vmem>>, vector<1x1x8x8x4xbf16>
    %114 = vector.shape_cast %113 : vector<1x1x8x8x4xbf16> to vector<8x8x4xbf16>
    %115 = vector.shape_cast %114 : vector<8x8x4xbf16> to vector<64x4xbf16>
    %c16 = arith.constant 16 : index
    %c0_133 = arith.constant 0 : index
    %c0_134 = arith.constant 0 : index
    %116 = vector.load %arg5[%c16, %c0_133, %c0_134] : memref<27x4x128xbf16, #tpu.memory_space<vmem>>, vector<1x4x128xbf16>
    %117 = vector.shape_cast %116 : vector<1x4x128xbf16> to vector<4x128xbf16>
    %cst_135 = arith.constant dense<0.000000e+00> : vector<64x128xf32>
    %118 = tpu.matmul %115, %117, %cst_135 {dimension_numbers = #tpu.dot_dimension_numbers<[1], [0], [0], [1], [0, 0, 1, 1], [], []>} : vector<64x4xbf16>, vector<4x128xbf16>, vector<64x128xf32> -> vector<64x128xf32>
    %119 = arith.addf %112, %118 : vector<64x128xf32>
    %c0_136 = arith.constant 0 : index
    %c0_137 = arith.constant 0 : index
    %c2_138 = arith.constant 2 : index
    %c2_139 = arith.constant 2 : index
    %c0_140 = arith.constant 0 : index
    %120 = vector.load %arg3[%c0_136, %c0_137, %c2_138, %c2_139, %c0_140] : memref<1x1x10x10x4xbf16, #tpu.memory_space<vmem>>, vector<1x1x8x8x4xbf16>
    %121 = vector.shape_cast %120 : vector<1x1x8x8x4xbf16> to vector<8x8x4xbf16>
    %122 = vector.shape_cast %121 : vector<8x8x4xbf16> to vector<64x4xbf16>
    %c17 = arith.constant 17 : index
    %c0_141 = arith.constant 0 : index
    %c0_142 = arith.constant 0 : index
    %123 = vector.load %arg5[%c17, %c0_141, %c0_142] : memref<27x4x128xbf16, #tpu.memory_space<vmem>>, vector<1x4x128xbf16>
    %124 = vector.shape_cast %123 : vector<1x4x128xbf16> to vector<4x128xbf16>
    %cst_143 = arith.constant dense<0.000000e+00> : vector<64x128xf32>
    %125 = tpu.matmul %122, %124, %cst_143 {dimension_numbers = #tpu.dot_dimension_numbers<[1], [0], [0], [1], [0, 0, 1, 1], [], []>} : vector<64x4xbf16>, vector<4x128xbf16>, vector<64x128xf32> -> vector<64x128xf32>
    %126 = arith.addf %119, %125 : vector<64x128xf32>
    %c0_144 = arith.constant 0 : index
    %c0_145 = arith.constant 0 : index
    %c0_146 = arith.constant 0 : index
    %c0_147 = arith.constant 0 : index
    %c0_148 = arith.constant 0 : index
    %127 = vector.load %arg4[%c0_144, %c0_145, %c0_146, %c0_147, %c0_148] : memref<1x1x10x10x4xbf16, #tpu.memory_space<vmem>>, vector<1x1x8x8x4xbf16>
    %128 = vector.shape_cast %127 : vector<1x1x8x8x4xbf16> to vector<8x8x4xbf16>
    %129 = vector.shape_cast %128 : vector<8x8x4xbf16> to vector<64x4xbf16>
    %c18 = arith.constant 18 : index
    %c0_149 = arith.constant 0 : index
    %c0_150 = arith.constant 0 : index
    %130 = vector.load %arg5[%c18, %c0_149, %c0_150] : memref<27x4x128xbf16, #tpu.memory_space<vmem>>, vector<1x4x128xbf16>
    %131 = vector.shape_cast %130 : vector<1x4x128xbf16> to vector<4x128xbf16>
    %cst_151 = arith.constant dense<0.000000e+00> : vector<64x128xf32>
    %132 = tpu.matmul %129, %131, %cst_151 {dimension_numbers = #tpu.dot_dimension_numbers<[1], [0], [0], [1], [0, 0, 1, 1], [], []>} : vector<64x4xbf16>, vector<4x128xbf16>, vector<64x128xf32> -> vector<64x128xf32>
    %133 = arith.addf %126, %132 : vector<64x128xf32>
    %c0_152 = arith.constant 0 : index
    %c0_153 = arith.constant 0 : index
    %c0_154 = arith.constant 0 : index
    %c1_155 = arith.constant 1 : index
    %c0_156 = arith.constant 0 : index
    %134 = vector.load %arg4[%c0_152, %c0_153, %c0_154, %c1_155, %c0_156] : memref<1x1x10x10x4xbf16, #tpu.memory_space<vmem>>, vector<1x1x8x8x4xbf16>
    %135 = vector.shape_cast %134 : vector<1x1x8x8x4xbf16> to vector<8x8x4xbf16>
    %136 = vector.shape_cast %135 : vector<8x8x4xbf16> to vector<64x4xbf16>
    %c19 = arith.constant 19 : index
    %c0_157 = arith.constant 0 : index
    %c0_158 = arith.constant 0 : index
    %137 = vector.load %arg5[%c19, %c0_157, %c0_158] : memref<27x4x128xbf16, #tpu.memory_space<vmem>>, vector<1x4x128xbf16>
    %138 = vector.shape_cast %137 : vector<1x4x128xbf16> to vector<4x128xbf16>
    %cst_159 = arith.constant dense<0.000000e+00> : vector<64x128xf32>
    %139 = tpu.matmul %136, %138, %cst_159 {dimension_numbers = #tpu.dot_dimension_numbers<[1], [0], [0], [1], [0, 0, 1, 1], [], []>} : vector<64x4xbf16>, vector<4x128xbf16>, vector<64x128xf32> -> vector<64x128xf32>
    %140 = arith.addf %133, %139 : vector<64x128xf32>
    %c0_160 = arith.constant 0 : index
    %c0_161 = arith.constant 0 : index
    %c0_162 = arith.constant 0 : index
    %c2_163 = arith.constant 2 : index
    %c0_164 = arith.constant 0 : index
    %141 = vector.load %arg4[%c0_160, %c0_161, %c0_162, %c2_163, %c0_164] : memref<1x1x10x10x4xbf16, #tpu.memory_space<vmem>>, vector<1x1x8x8x4xbf16>
    %142 = vector.shape_cast %141 : vector<1x1x8x8x4xbf16> to vector<8x8x4xbf16>
    %143 = vector.shape_cast %142 : vector<8x8x4xbf16> to vector<64x4xbf16>
    %c20 = arith.constant 20 : index
    %c0_165 = arith.constant 0 : index
    %c0_166 = arith.constant 0 : index
    %144 = vector.load %arg5[%c20, %c0_165, %c0_166] : memref<27x4x128xbf16, #tpu.memory_space<vmem>>, vector<1x4x128xbf16>
    %145 = vector.shape_cast %144 : vector<1x4x128xbf16> to vector<4x128xbf16>
    %cst_167 = arith.constant dense<0.000000e+00> : vector<64x128xf32>
    %146 = tpu.matmul %143, %145, %cst_167 {dimension_numbers = #tpu.dot_dimension_numbers<[1], [0], [0], [1], [0, 0, 1, 1], [], []>} : vector<64x4xbf16>, vector<4x128xbf16>, vector<64x128xf32> -> vector<64x128xf32>
    %147 = arith.addf %140, %146 : vector<64x128xf32>
    %c0_168 = arith.constant 0 : index
    %c0_169 = arith.constant 0 : index
    %c1_170 = arith.constant 1 : index
    %c0_171 = arith.constant 0 : index
    %c0_172 = arith.constant 0 : index
    %148 = vector.load %arg4[%c0_168, %c0_169, %c1_170, %c0_171, %c0_172] : memref<1x1x10x10x4xbf16, #tpu.memory_space<vmem>>, vector<1x1x8x8x4xbf16>
    %149 = vector.shape_cast %148 : vector<1x1x8x8x4xbf16> to vector<8x8x4xbf16>
    %150 = vector.shape_cast %149 : vector<8x8x4xbf16> to vector<64x4xbf16>
    %c21 = arith.constant 21 : index
    %c0_173 = arith.constant 0 : index
    %c0_174 = arith.constant 0 : index
    %151 = vector.load %arg5[%c21, %c0_173, %c0_174] : memref<27x4x128xbf16, #tpu.memory_space<vmem>>, vector<1x4x128xbf16>
    %152 = vector.shape_cast %151 : vector<1x4x128xbf16> to vector<4x128xbf16>
    %cst_175 = arith.constant dense<0.000000e+00> : vector<64x128xf32>
    %153 = tpu.matmul %150, %152, %cst_175 {dimension_numbers = #tpu.dot_dimension_numbers<[1], [0], [0], [1], [0, 0, 1, 1], [], []>} : vector<64x4xbf16>, vector<4x128xbf16>, vector<64x128xf32> -> vector<64x128xf32>
    %154 = arith.addf %147, %153 : vector<64x128xf32>
    %c0_176 = arith.constant 0 : index
    %c0_177 = arith.constant 0 : index
    %c1_178 = arith.constant 1 : index
    %c1_179 = arith.constant 1 : index
    %c0_180 = arith.constant 0 : index
    %155 = vector.load %arg4[%c0_176, %c0_177, %c1_178, %c1_179, %c0_180] : memref<1x1x10x10x4xbf16, #tpu.memory_space<vmem>>, vector<1x1x8x8x4xbf16>
    %156 = vector.shape_cast %155 : vector<1x1x8x8x4xbf16> to vector<8x8x4xbf16>
    %157 = vector.shape_cast %156 : vector<8x8x4xbf16> to vector<64x4xbf16>
    %c22 = arith.constant 22 : index
    %c0_181 = arith.constant 0 : index
    %c0_182 = arith.constant 0 : index
    %158 = vector.load %arg5[%c22, %c0_181, %c0_182] : memref<27x4x128xbf16, #tpu.memory_space<vmem>>, vector<1x4x128xbf16>
    %159 = vector.shape_cast %158 : vector<1x4x128xbf16> to vector<4x128xbf16>
    %cst_183 = arith.constant dense<0.000000e+00> : vector<64x128xf32>
    %160 = tpu.matmul %157, %159, %cst_183 {dimension_numbers = #tpu.dot_dimension_numbers<[1], [0], [0], [1], [0, 0, 1, 1], [], []>} : vector<64x4xbf16>, vector<4x128xbf16>, vector<64x128xf32> -> vector<64x128xf32>
    %161 = arith.addf %154, %160 : vector<64x128xf32>
    %c0_184 = arith.constant 0 : index
    %c0_185 = arith.constant 0 : index
    %c1_186 = arith.constant 1 : index
    %c2_187 = arith.constant 2 : index
    %c0_188 = arith.constant 0 : index
    %162 = vector.load %arg4[%c0_184, %c0_185, %c1_186, %c2_187, %c0_188] : memref<1x1x10x10x4xbf16, #tpu.memory_space<vmem>>, vector<1x1x8x8x4xbf16>
    %163 = vector.shape_cast %162 : vector<1x1x8x8x4xbf16> to vector<8x8x4xbf16>
    %164 = vector.shape_cast %163 : vector<8x8x4xbf16> to vector<64x4xbf16>
    %c23 = arith.constant 23 : index
    %c0_189 = arith.constant 0 : index
    %c0_190 = arith.constant 0 : index
    %165 = vector.load %arg5[%c23, %c0_189, %c0_190] : memref<27x4x128xbf16, #tpu.memory_space<vmem>>, vector<1x4x128xbf16>
    %166 = vector.shape_cast %165 : vector<1x4x128xbf16> to vector<4x128xbf16>
    %cst_191 = arith.constant dense<0.000000e+00> : vector<64x128xf32>
    %167 = tpu.matmul %164, %166, %cst_191 {dimension_numbers = #tpu.dot_dimension_numbers<[1], [0], [0], [1], [0, 0, 1, 1], [], []>} : vector<64x4xbf16>, vector<4x128xbf16>, vector<64x128xf32> -> vector<64x128xf32>
    %168 = arith.addf %161, %167 : vector<64x128xf32>
    %c0_192 = arith.constant 0 : index
    %c0_193 = arith.constant 0 : index
    %c2_194 = arith.constant 2 : index
    %c0_195 = arith.constant 0 : index
    %c0_196 = arith.constant 0 : index
    %169 = vector.load %arg4[%c0_192, %c0_193, %c2_194, %c0_195, %c0_196] : memref<1x1x10x10x4xbf16, #tpu.memory_space<vmem>>, vector<1x1x8x8x4xbf16>
    %170 = vector.shape_cast %169 : vector<1x1x8x8x4xbf16> to vector<8x8x4xbf16>
    %171 = vector.shape_cast %170 : vector<8x8x4xbf16> to vector<64x4xbf16>
    %c24 = arith.constant 24 : index
    %c0_197 = arith.constant 0 : index
    %c0_198 = arith.constant 0 : index
    %172 = vector.load %arg5[%c24, %c0_197, %c0_198] : memref<27x4x128xbf16, #tpu.memory_space<vmem>>, vector<1x4x128xbf16>
    %173 = vector.shape_cast %172 : vector<1x4x128xbf16> to vector<4x128xbf16>
    %cst_199 = arith.constant dense<0.000000e+00> : vector<64x128xf32>
    %174 = tpu.matmul %171, %173, %cst_199 {dimension_numbers = #tpu.dot_dimension_numbers<[1], [0], [0], [1], [0, 0, 1, 1], [], []>} : vector<64x4xbf16>, vector<4x128xbf16>, vector<64x128xf32> -> vector<64x128xf32>
    %175 = arith.addf %168, %174 : vector<64x128xf32>
    %c0_200 = arith.constant 0 : index
    %c0_201 = arith.constant 0 : index
    %c2_202 = arith.constant 2 : index
    %c1_203 = arith.constant 1 : index
    %c0_204 = arith.constant 0 : index
    %176 = vector.load %arg4[%c0_200, %c0_201, %c2_202, %c1_203, %c0_204] : memref<1x1x10x10x4xbf16, #tpu.memory_space<vmem>>, vector<1x1x8x8x4xbf16>
    %177 = vector.shape_cast %176 : vector<1x1x8x8x4xbf16> to vector<8x8x4xbf16>
    %178 = vector.shape_cast %177 : vector<8x8x4xbf16> to vector<64x4xbf16>
    %c25 = arith.constant 25 : index
    %c0_205 = arith.constant 0 : index
    %c0_206 = arith.constant 0 : index
    %179 = vector.load %arg5[%c25, %c0_205, %c0_206] : memref<27x4x128xbf16, #tpu.memory_space<vmem>>, vector<1x4x128xbf16>
    %180 = vector.shape_cast %179 : vector<1x4x128xbf16> to vector<4x128xbf16>
    %cst_207 = arith.constant dense<0.000000e+00> : vector<64x128xf32>
    %181 = tpu.matmul %178, %180, %cst_207 {dimension_numbers = #tpu.dot_dimension_numbers<[1], [0], [0], [1], [0, 0, 1, 1], [], []>} : vector<64x4xbf16>, vector<4x128xbf16>, vector<64x128xf32> -> vector<64x128xf32>
    %182 = arith.addf %175, %181 : vector<64x128xf32>
    %c0_208 = arith.constant 0 : index
    %c0_209 = arith.constant 0 : index
    %c2_210 = arith.constant 2 : index
    %c2_211 = arith.constant 2 : index
    %c0_212 = arith.constant 0 : index
    %183 = vector.load %arg4[%c0_208, %c0_209, %c2_210, %c2_211, %c0_212] : memref<1x1x10x10x4xbf16, #tpu.memory_space<vmem>>, vector<1x1x8x8x4xbf16>
    %184 = vector.shape_cast %183 : vector<1x1x8x8x4xbf16> to vector<8x8x4xbf16>
    %185 = vector.shape_cast %184 : vector<8x8x4xbf16> to vector<64x4xbf16>
    %c26 = arith.constant 26 : index
    %c0_213 = arith.constant 0 : index
    %c0_214 = arith.constant 0 : index
    %186 = vector.load %arg5[%c26, %c0_213, %c0_214] : memref<27x4x128xbf16, #tpu.memory_space<vmem>>, vector<1x4x128xbf16>
    %187 = vector.shape_cast %186 : vector<1x4x128xbf16> to vector<4x128xbf16>
    %cst_215 = arith.constant dense<0.000000e+00> : vector<64x128xf32>
    %188 = tpu.matmul %185, %187, %cst_215 {dimension_numbers = #tpu.dot_dimension_numbers<[1], [0], [0], [1], [0, 0, 1, 1], [], []>} : vector<64x4xbf16>, vector<4x128xbf16>, vector<64x128xf32> -> vector<64x128xf32>
    %189 = arith.addf %182, %188 : vector<64x128xf32>
    %190 = arith.truncf %189 : vector<64x128xf32> to vector<64x128xbf16>
    %c0_216 = arith.constant 0 : index
    %c0_217 = arith.constant 0 : index
    %c0_218 = arith.constant 0 : index
    %191 = vector.load %arg6[%c0_216, %c0_217, %c0_218] : memref<1x64x128xbf16, #tpu.memory_space<vmem>>, vector<1x64x128xbf16>
    %192 = vector.shape_cast %191 : vector<1x64x128xbf16> to vector<64x128xbf16>
    %193 = vector.shape_cast %190 : vector<64x128xbf16> to vector<1x64x128xbf16>
    tpu.vector_store %arg6[%c0_216, %c0_217, %c0_218], %193 {strides = array<i32>} : memref<1x64x128xbf16, #tpu.memory_space<vmem>>, vector<1x64x128xbf16>,
    %cst_219 = arith.constant dense<0.000000e+00> : vector<128xf32>
    %194 = vector.multi_reduction <add>, %189, %cst_219 [0] : vector<64x128xf32> to vector<128xf32>
    %195 = vector.shape_cast %194 : vector<128xf32> to vector<1x128xf32>
    %c0_220 = arith.constant 0 : index
    %c0_221 = arith.constant 0 : index
    %c0_222 = arith.constant 0 : index
    %c0_223 = arith.constant 0 : index
    %196 = vector.load %arg7[%c0_220, %c0_221, %c0_222, %c0_223] : memref<1x1x2x128xf32, #tpu.memory_space<vmem>>, vector<1x1x1x128xf32>
    %197 = vector.shape_cast %196 : vector<1x1x1x128xf32> to vector<1x128xf32>
    %198 = vector.shape_cast %195 : vector<1x128xf32> to vector<1x1x1x128xf32>
    tpu.vector_store %arg7[%c0_220, %c0_221, %c0_222, %c0_223], %198 {strides = array<i32>} : memref<1x1x2x128xf32, #tpu.memory_space<vmem>>, vector<1x1x1x128xf32>,
    %199 = arith.mulf %189, %189 : vector<64x128xf32>
    %cst_224 = arith.constant dense<0.000000e+00> : vector<128xf32>
    %200 = vector.multi_reduction <add>, %199, %cst_224 [0] : vector<64x128xf32> to vector<128xf32>
    %201 = vector.shape_cast %200 : vector<128xf32> to vector<1x128xf32>
    %c0_225 = arith.constant 0 : index
    %c0_226 = arith.constant 0 : index
    %c1_227 = arith.constant 1 : index
    %c0_228 = arith.constant 0 : index
    %202 = vector.load %arg7[%c0_225, %c0_226, %c1_227, %c0_228] : memref<1x1x2x128xf32, #tpu.memory_space<vmem>>, vector<1x1x1x128xf32>
    %203 = vector.shape_cast %202 : vector<1x1x1x128xf32> to vector<1x128xf32>
    %204 = vector.shape_cast %201 : vector<1x128xf32> to vector<1x1x1x128xf32>
    tpu.vector_store %arg7[%c0_225, %c0_226, %c1_227, %c0_228], %204 {strides = array<i32>} : memref<1x1x2x128xf32, #tpu.memory_space<vmem>>, vector<1x1x1x128xf32>,
    return
  }
  func.func @transform_0(%arg0: i32, %arg1: i32) -> (i32, i32, i32, i32, i32) {
    %c1_i32 = arith.constant 1 : i32
    %0 = arith.muli %c1_i32, %arg1 : i32
    %c0_i32 = arith.constant 0 : i32
    %1 = arith.addi %0, %c0_i32 : i32
    %c0_i32_0 = arith.constant 0 : i32
    %c0_i32_1 = arith.constant 0 : i32
    %c0_i32_2 = arith.constant 0 : i32
    %c0_i32_3 = arith.constant 0 : i32
    return %arg0, %1, %c0_i32_0, %c0_i32_1, %c0_i32_2 : i32, i32, i32, i32, i32
  }
  func.func @transform_1(%arg0: i32, %arg1: i32) -> (i32, i32, i32, i32, i32) {
    %c1_i32 = arith.constant 1 : i32
    %0 = arith.muli %c1_i32, %arg1 : i32
    %c1_i32_0 = arith.constant 1 : i32
    %1 = arith.addi %0, %c1_i32_0 : i32
    %c0_i32 = arith.constant 0 : i32
    %c0_i32_1 = arith.constant 0 : i32
    %c0_i32_2 = arith.constant 0 : i32
    %c0_i32_3 = arith.constant 0 : i32
    return %arg0, %1, %c0_i32, %c0_i32_1, %c0_i32_2 : i32, i32, i32, i32, i32
  }
  func.func @transform_2(%arg0: i32, %arg1: i32) -> (i32, i32, i32, i32, i32) {
    %c1_i32 = arith.constant 1 : i32
    %0 = arith.muli %c1_i32, %arg1 : i32
    %c2_i32 = arith.constant 2 : i32
    %1 = arith.addi %0, %c2_i32 : i32
    %c0_i32 = arith.constant 0 : i32
    %c0_i32_0 = arith.constant 0 : i32
    %c0_i32_1 = arith.constant 0 : i32
    %c0_i32_2 = arith.constant 0 : i32
    return %arg0, %1, %c0_i32, %c0_i32_0, %c0_i32_1 : i32, i32, i32, i32, i32
  }
  func.func @transform_3(%arg0: i32, %arg1: i32) -> (i32, i32, i32) {
    %c0_i32 = arith.constant 0 : i32
    %c0_i32_0 = arith.constant 0 : i32
    %c0_i32_1 = arith.constant 0 : i32
    %c0_i32_2 = arith.constant 0 : i32
    return %c0_i32, %c0_i32_0, %c0_i32_1 : i32, i32, i32
  }
  func.func @transform_4(%arg0: i32, %arg1: i32) -> (i32, i32, i32) {
    %c0_i32 = arith.constant 0 : i32
    %c0_i32_0 = arith.constant 0 : i32
    return %arg0, %arg1, %c0_i32 : i32, i32, i32
  }
  func.func @transform_5(%arg0: i32, %arg1: i32) -> (i32, i32, i32, i32) {
    %c0_i32 = arith.constant 0 : i32
    %c0_i32_0 = arith.constant 0 : i32
    %c0_i32_1 = arith.constant 0 : i32
    return %arg0, %arg1, %c0_i32, %c0_i32_0 : i32, i32, i32, i32
  }
}

</mosaic_0001>

<llo_original>
// kernel: tpu_custom_call.1
$region0: #{tpu_custom_call.1}
  #allocation0 [shape = 'u32[]', space=smem, size = 0x4, offset = 0x4, fixed_abs, tag = 'smem constant byte address 0x4 - core index']
  #allocation1 [shape = 'u32[144,128]{1,0:T(1,128)}', space=vmem, size = 0x12000, scoped, tag = 'internal scratch']
  %s0 = inlined_call_operand.vmem [shape: bf16[2,10,10,10,4], index: 0, kind: input, shape index: {}]
  %s1 = inlined_call_operand.vmem [shape: bf16[2,10,10,10,4], index: 1, kind: input, shape index: {}]
  %s2 = inlined_call_operand.vmem [shape: bf16[2,10,10,10,4], index: 2, kind: input, shape index: {}]
  %s3 = inlined_call_operand.vmem [shape: bf16[27,4,128], index: 3, kind: input, shape index: {}]
  %s4 = inlined_call_operand.hbm [shape: bf16[2,512,128], index: 4, kind: output, shape index: {0}]
  %s5 = inlined_call_operand.hbm [shape: f32[2,8,2,128], index: 5, kind: output, shape index: {1}]
  %6 = xla_tuple %s4, %s5
  %s7 = sld [smem:[#allocation0]]
  $region57: #{tpu_custom_call.1} parent=0
    _
  %s9 = ssub.s32 1, %s7
  %s10 = scalar_select 0, %s9, %s7
  $region1: #{tpu_custom_call.1} parent=0
    #allocation2 [shape = 'u8[32768]{0}', space=vmem, size = 0x8000, scoped, tag = 'output window, operand 0']
    #allocation3 [shape = 's32[2]{0}', space=sflag, size = 0x8, scoped, tag = 'scoped memory for tpu_custom_call.1']
    #allocation4 [shape = 'u8[2048]{0}', space=vmem, size = 0x800, scoped, tag = 'output window, operand 1']
    #allocation5 [shape = 's32[2]{0}', space=sflag, size = 0x8, scoped, tag = 'scoped memory for tpu_custom_call.1']
    %11 = vsyncpa [#allocation3], 0
    %s12 = scalar_lea.sflag [#allocation3], 1
    %13 = vsyncpa %s12, 0
    %14 = vsyncpa [#allocation5], 0
    %s15 = scalar_lea.sflag [#allocation5], 1
    %16 = vsyncpa %s15, 0
    loop: start=0, step=1, limit=18
    $region2: #{tpu_custom_call.1} parent=1 // loop_pre_header
      _
    $region3: #{tpu_custom_call.1} parent=1 // loop_header
      %s18 = sphi 0, %s22
      %p19 = scmp.ge.s32.totalorder %s18, 18
      %s25 = sphi 0, %s37
      %s26 = sphi 0, %s33
      %s27 = sphi 0, %s25
      %s28 = sphi 0, %s26
      %s29 = sphi 0, %s27
      %s30 = sphi 0, %s28
      %s42 = sphi 0, %s44
      %s45 = sphi 0, %s42
      %s46 = sphi 0, %s45
      %s62 = sphi 0, %s46
      %s72 = sphi 0, %s74
      %s75 = sphi 0, %s72
      %s76 = sphi 0, %s75
      %s92 = sphi 0, %s76
      %s102 = sphi 0, %s104
      %s105 = sphi 0, %s102
      %s106 = sphi 0, %s105
      %s122 = sphi 0, %s106
      %s126 = sphi 0, %s126
      %s128 = sphi 0, %s126
      %s129 = sphi 0, %s128
      %s143 = sphi 0, %s129
      %s151 = sphi 0, %s153
      %s154 = sphi 0, %s151
      %s155 = sphi 0, %s154
      %s171 = sphi 0, %s155
      %s179 = sphi 0, %s181
      %s182 = sphi 0, %s179
      %s183 = sphi 0, %s182
      %s199 = sphi 0, %s183
    $region4: #{tpu_custom_call.1} parent=1 // loop_header_branch
      %21 = sbr.rel (%p19) target = $region8
    $region5: #{tpu_custom_call.1} parent=1 // loop_body
      %s23 = ssub.s32 %s18, 1
      %s24 = ssub.s32 %s18, 2
      %s31 = sadd.s32 1, %s26
      %p32 = scmp.ge.s32.totalorder %s31, 8
      %s33 = scalar_select %p32, 0, %s31
      %s34 = sadd.s32 1, %s25
      %s35 = scalar_select %p32, %s34, %s25
      %p36 = scmp.ge.s32.totalorder %s35, 2
      %s37 = scalar_select %p36, 0, %s35
      %s38 = ssub.s32 %s25, %s37
      %s39 = ssub.s32 %s26, %s33
      %s40 = sor.u32 %s38, %s39
      %p41 = scmp.eq.s32.totalorder %s40, 0
      %s43 = sadd.s32 %s42, 1
      %s44 = scalar_select %p41, %s42, %s43
      %p47 = pneg %p41
      %p48 = scmp.eq.s32.totalorder %s18, 15
      %p49 = por %p47, %p48
      %p50 = scmp.ne.s32.totalorder %s42, %s45
      %p51 = scmp.eq.s32.totalorder %s18, 0
      %p52 = por %p50, %p51
      %p53 = scmp.ne.s32.totalorder %s42, %s45
      %p54 = scmp.eq.s32.totalorder %s23, 15
      %p55 = por %p53, %p54
      %p56 = scmp.ne.s32.totalorder %s45, %s46
      %p57 = scmp.eq.s32.totalorder %s23, 0
      %p58 = por %p56, %p57
      %p59 = scmp.ne.s32.totalorder %s45, %s46
      %p60 = scmp.eq.s32.totalorder %s24, 15
      %p61 = por %p59, %p60
      %p63 = scmp.ne.s32.totalorder %s46, %s62
      %p64 = scmp.eq.s32.totalorder %s24, 0
      %p65 = por %p63, %p64
      %s66 = sadd.s32 %s26, 1
      %s67 = sadd.s32 %s33, 1
      %s68 = ssub.s32 %s25, %s37
      %s69 = ssub.s32 %s66, %s67
      %s70 = sor.u32 %s68, %s69
      %p71 = scmp.eq.s32.totalorder %s70, 0
      %s73 = sadd.s32 %s72, 1
      %s74 = scalar_select %p71, %s72, %s73
      %p77 = pneg %p71
      %p78 = scmp.eq.s32.totalorder %s18, 15
      %p79 = por %p77, %p78
      %p80 = scmp.ne.s32.totalorder %s72, %s75
      %p81 = scmp.eq.s32.totalorder %s18, 0
      %p82 = por %p80, %p81
      %p83 = scmp.ne.s32.totalorder %s72, %s75
      %p84 = scmp.eq.s32.totalorder %s23, 15
      %p85 = por %p83, %p84
      %p86 = scmp.ne.s32.totalorder %s75, %s76
      %p87 = scmp.eq.s32.totalorder %s23, 0
      %p88 = por %p86, %p87
      %p89 = scmp.ne.s32.totalorder %s75, %s76
      %p90 = scmp.eq.s32.totalorder %s24, 15
      %p91 = por %p89, %p90
      %p93 = scmp.ne.s32.totalorder %s76, %s92
      %p94 = scmp.eq.s32.totalorder %s24, 0
      %p95 = por %p93, %p94
      %s96 = sadd.s32 %s26, 2
      %s97 = sadd.s32 %s33, 2
      %s98 = ssub.s32 %s25, %s37
      %s99 = ssub.s32 %s96, %s97
      %s100 = sor.u32 %s98, %s99
      %p101 = scmp.eq.s32.totalorder %s100, 0
      %s103 = sadd.s32 %s102, 1
      %s104 = scalar_select %p101, %s102, %s103
      %p107 = pneg %p101
      %p108 = scmp.eq.s32.totalorder %s18, 15
      %p109 = por %p107, %p108
      %p110 = scmp.ne.s32.totalorder %s102, %s105
      %p111 = scmp.eq.s32.totalorder %s18, 0
      %p112 = por %p110, %p111
      %p113 = scmp.ne.s32.totalorder %s102, %s105
      %p114 = scmp.eq.s32.totalorder %s23, 15
      %p115 = por %p113, %p114
      %p116 = scmp.ne.s32.totalorder %s105, %s106
      %p117 = scmp.eq.s32.totalorder %s23, 0
      %p118 = por %p116, %p117
      %p119 = scmp.ne.s32.totalorder %s105, %s106
      %p120 = scmp.eq.s32.totalorder %s24, 15
      %p121 = por %p119, %p120
      %p123 = scmp.ne.s32.totalorder %s106, %s122
      %p124 = scmp.eq.s32.totalorder %s24, 0
      %p125 = por %p123, %p124
      %s127 = sadd.s32 %s126, 1
      %p130 = scmp.eq.s32.totalorder %s18, 15
      %p131 = scmp.ne.s32.totalorder %s126, %s128
      %p132 = scmp.eq.s32.totalorder %s18, 0
      %p133 = por %p131, %p132
      %p134 = scmp.ne.s32.totalorder %s126, %s128
      %p135 = scmp.eq.s32.totalorder %s23, 15
      %p136 = por %p134, %p135
      %p137 = scmp.ne.s32.totalorder %s128, %s129
      %p138 = scmp.eq.s32.totalorder %s23, 0
      %p139 = por %p137, %p138
      %p140 = scmp.ne.s32.totalorder %s128, %s129
      %p141 = scmp.eq.s32.totalorder %s24, 15
      %p142 = por %p140, %p141
      %p144 = scmp.ne.s32.totalorder %s129, %s143
      %p145 = scmp.eq.s32.totalorder %s24, 0
      %p146 = por %p144, %p145
      %s147 = ssub.s32 %s25, %s37
      %s148 = ssub.s32 %s26, %s33
      %s149 = sor.u32 %s147, %s148
      %p150 = scmp.eq.s32.totalorder %s149, 0
      %s152 = sadd.s32 %s151, 1
      %s153 = scalar_select %p150, %s151, %s152
      %p156 = pneg %p150
      %p157 = scmp.eq.s32.totalorder %s18, 15
      %p158 = por %p156, %p157
      %p159 = scmp.ne.s32.totalorder %s151, %s154
      %p160 = scmp.eq.s32.totalorder %s18, 0
      %p161 = por %p159, %p160
      %p162 = scmp.ne.s32.totalorder %s151, %s154
      %p163 = scmp.eq.s32.totalorder %s23, 15
      %p164 = por %p162, %p163
      %p165 = scmp.ne.s32.totalorder %s154, %s155
      %p166 = scmp.eq.s32.totalorder %s23, 0
      %p167 = por %p165, %p166
      %p168 = scmp.ne.s32.totalorder %s154, %s155
      %p169 = scmp.eq.s32.totalorder %s24, 15
      %p170 = por %p168, %p169
      %p172 = scmp.ne.s32.totalorder %s155, %s171
      %p173 = scmp.eq.s32.totalorder %s24, 0
      %p174 = por %p172, %p173
      %s175 = ssub.s32 %s25, %s37
      %s176 = ssub.s32 %s26, %s33
      %s177 = sor.u32 %s175, %s176
      %p178 = scmp.eq.s32.totalorder %s177, 0
      %s180 = sadd.s32 %s179, 1
      %s181 = scalar_select %p178, %s179, %s180
      %p184 = pneg %p178
      %p185 = scmp.eq.s32.totalorder %s18, 15
      %p186 = por %p184, %p185
      %p187 = scmp.ne.s32.totalorder %s179, %s182
      %p188 = scmp.eq.s32.totalorder %s18, 0
      %p189 = por %p187, %p188
      %p190 = scmp.ne.s32.totalorder %s179, %s182
      %p191 = scmp.eq.s32.totalorder %s23, 15
      %p192 = por %p190, %p191
      %p193 = scmp.ne.s32.totalorder %s182, %s183
      %p194 = scmp.eq.s32.totalorder %s23, 0
      %p195 = por %p193, %p194
      %p196 = scmp.ne.s32.totalorder %s182, %s183
      %p197 = scmp.eq.s32.totalorder %s24, 15
      %p198 = por %p196, %p197
      %p200 = scmp.ne.s32.totalorder %s183, %s199
      %p201 = scmp.eq.s32.totalorder %s24, 0
      %p202 = por %p200, %p201
      %p203 = scmp.le.s32.totalorder 1, %s18
      %p204 = scmp.lt.s32.totalorder %s18, 17
      %p205 = pnand %p203, %p204
      %p206 = pneg %p205
      // Predicated region
      $region9: #{tpu_custom_call.1} parent=5 // pred_check
        _
      $region10: #{tpu_custom_call.1} parent=5 // pred_check_branch
        %208 = sbr.rel (%p205) target = $region12
      $region11: #{tpu_custom_call.1} parent=5 // pred_region
        %s209 = ssub.s32 %s18, 1
        // Predicated region
        $region13: #{tpu_custom_call.1} parent=11 // pred_check
          %p210 = pneg %p139
        $region14: #{tpu_custom_call.1} parent=11 // pred_check_branch
          %212 = sbr.rel (%p210) target = $region16
        $region15: #{tpu_custom_call.1} parent=11 // pred_region
          _
        $region16: #{tpu_custom_call.1} parent=11 // pred_fallthru
          _
      $region12: #{tpu_custom_call.1} parent=5 // pred_fallthru
        _
      %p213 = scmp.lt.s32.totalorder %s18, 16
      // Predicated region
      $region17: #{tpu_custom_call.1} parent=5 // pred_check
        %p214 = pneg %p213
      $region18: #{tpu_custom_call.1} parent=5 // pred_check_branch
        %216 = sbr.rel (%p214) target = $region20
      $region19: #{tpu_custom_call.1} parent=5 // pred_region
        // Predicated region
        $region21: #{tpu_custom_call.1} parent=19 // pred_check
          %p217 = pneg %p52
        $region22: #{tpu_custom_call.1} parent=19 // pred_check_branch
          %219 = sbr.rel (%p217) target = $region24
        $region23: #{tpu_custom_call.1} parent=19 // pred_region
          %p220 = scmp.lt.s32.totalorder %s25, 1
          %s221 = scalar_select %p220, %s25, 1
          %p222 = scmp.lt.s32.totalorder %s26, 9
          %s223 = scalar_select %p222, %s26, 9
          %s224 = smul.addr %s223, 20
          %s225 = smul.addr %s221, 200
          %s226 = sadd.s32 %s224, %s225
          %s227 = smul.addr %s226, 4
          %s228 = scalar_lea.vmem %s0, %s227
        $region24: #{tpu_custom_call.1} parent=19 // pred_fallthru
          _
        // Predicated region
        $region25: #{tpu_custom_call.1} parent=19 // pred_check
          %p229 = pneg %p82
        $region26: #{tpu_custom_call.1} parent=19 // pred_check_branch
          %231 = sbr.rel (%p229) target = $region28
        $region27: #{tpu_custom_call.1} parent=19 // pred_region
          %s232 = sadd.s32 %s26, 1
          %p233 = scmp.lt.s32.totalorder %s25, 1
          %s234 = scalar_select %p233, %s25, 1
          %p235 = scmp.lt.s32.totalorder %s232, 9
          %s236 = scalar_select %p235, %s232, 9
          %s237 = smul.addr %s236, 20
          %s238 = smul.addr %s234, 200
          %s239 = sadd.s32 %s237, %s238
          %s240 = smul.addr %s239, 4
          %s241 = scalar_lea.vmem %s1, %s240
          %s242 = sadd.s32 %s26, 1
        $region28: #{tpu_custom_call.1} parent=19 // pred_fallthru
          _
        // Predicated region
        $region29: #{tpu_custom_call.1} parent=19 // pred_check
          %p243 = pneg %p112
        $region30: #{tpu_custom_call.1} parent=19 // pred_check_branch
          %245 = sbr.rel (%p243) target = $region32
        $region31: #{tpu_custom_call.1} parent=19 // pred_region
          %s246 = sadd.s32 %s26, 2
          %p247 = scmp.lt.s32.totalorder %s25, 1
          %s248 = scalar_select %p247, %s25, 1
          %p249 = scmp.lt.s32.totalorder %s246, 9
          %s250 = scalar_select %p249, %s246, 9
          %s251 = smul.addr %s250, 20
          %s252 = smul.addr %s248, 200
          %s253 = sadd.s32 %s251, %s252
          %s254 = smul.addr %s253, 4
          %s255 = scalar_lea.vmem %s2, %s254
          %s256 = sadd.s32 %s26, 2
        $region32: #{tpu_custom_call.1} parent=19 // pred_fallthru
          _
      $region20: #{tpu_custom_call.1} parent=5 // pred_fallthru
        _
      %p257 = scmp.le.s32.totalorder 1, %s18
      %p258 = scmp.lt.s32.totalorder %s18, 17
      %p259 = pnand %p257, %p258
      %p260 = pneg %p259
      // Predicated region
      $region33: #{tpu_custom_call.1} parent=5 // pred_check
        _
      $region34: #{tpu_custom_call.1} parent=5 // pred_check_branch
        %262 = sbr.rel (%p259) target = $region36
      $region35: #{tpu_custom_call.1} parent=5 // pred_region
        %s263 = ssub.s32 %s18, 1
        %p264 = scmp.lt.s32.totalorder %s27, 1
        %s265 = scalar_select %p264, %s27, 1
        %p266 = scmp.lt.s32.totalorder %s28, 9
        %s267 = scalar_select %p266, %s28, 9
        %s268 = smul.addr %s267, 20
        %s269 = smul.addr %s265, 200
        %s270 = sadd.s32 %s268, %s269
        %s271 = smul.addr %s270, 4
        %s272 = scalar_lea.vmem %s0, %s271
        %p273 = pneg %p58
        %p274 = pneg %p55
        %s275 = sadd.s32 %s28, 1
        %p276 = scmp.lt.s32.totalorder %s27, 1
        %s277 = scalar_select %p276, %s27, 1
        %p278 = scmp.lt.s32.totalorder %s275, 9
        %s279 = scalar_select %p278, %s275, 9
        %s280 = smul.addr %s279, 20
        %s281 = smul.addr %s277, 200
        %s282 = sadd.s32 %s280, %s281
        %s283 = smul.addr %s282, 4
        %s284 = scalar_lea.vmem %s1, %s283
        %p285 = pneg %p88
        %p286 = pneg %p85
        %s287 = sadd.s32 %s28, 2
        %p288 = scmp.lt.s32.totalorder %s27, 1
        %s289 = scalar_select %p288, %s27, 1
        %p290 = scmp.lt.s32.totalorder %s287, 9
        %s291 = scalar_select %p290, %s287, 9
        %s292 = smul.addr %s291, 20
        %s293 = smul.addr %s289, 200
        %s294 = sadd.s32 %s292, %s293
        %s295 = smul.addr %s294, 4
        %s296 = scalar_lea.vmem %s2, %s295
        %p297 = pneg %p118
        %p298 = pneg %p115
        %p299 = pneg %p139
        %p300 = pneg %p136
        %p301 = pneg %p167
        %p302 = pneg %p164
        %s303 = sand.u32 %s154, 1
        %s304 = scalar_lea.sflag [#allocation3], %s303
        %s305 = sand.u32 %s154, 1
        %s306 = smul.addr %s305, 32
        %s307 = scalar_lea.vmem [#allocation2], %s306
        %p308 = pneg %p195
        %p309 = pneg %p192
        %s310 = sand.u32 %s182, 1
        %s311 = scalar_lea.sflag [#allocation5], %s310
        %s312 = sand.u32 %s182, 1
        %s313 = smul.addr %s312, 2
        %s314 = scalar_lea.vmem [#allocation4], %s313
        %p315 = scmp.lt.s32.totalorder %s27, 1
        %s316 = scalar_select %p315, %s27, 1
        %p317 = scmp.lt.s32.totalorder %s28, 9
        %s318 = scalar_select %p317, %s28, 9
        %s319 = smul.addr %s318, 20
        %s320 = smul.addr %s316, 200
        %s321 = sadd.s32 %s319, %s320
        %s322 = smul.addr %s321, 4
        %s323 = scalar_lea.vmem %s0, %s322
        %s324 = sadd.s32 %s28, 1
        %p325 = scmp.lt.s32.totalorder %s27, 1
        %s326 = scalar_select %p325, %s27, 1
        %p327 = scmp.lt.s32.totalorder %s324, 9
        %s328 = scalar_select %p327, %s324, 9
        %s329 = smul.addr %s328, 20
        %s330 = smul.addr %s326, 200
        %s331 = sadd.s32 %s329, %s330
        %s332 = smul.addr %s331, 4
        %s333 = scalar_lea.vmem %s1, %s332
        %s334 = sadd.s32 %s28, 1
        %s335 = sadd.s32 %s28, 2
        %p336 = scmp.lt.s32.totalorder %s27, 1
        %s337 = scalar_select %p336, %s27, 1
        %p338 = scmp.lt.s32.totalorder %s335, 9
        %s339 = scalar_select %p338, %s335, 9
        %s340 = smul.addr %s339, 20
        %s341 = smul.addr %s337, 200
        %s342 = sadd.s32 %s340, %s341
        %s343 = smul.addr %s342, 4
        %s344 = scalar_lea.vmem %s2, %s343
        %s345 = sadd.s32 %s28, 2
        %s346 = smul.u32 8, %s28
        %v348 = vld [vmem:[%s323] sm:$0xf]
        %v349 = vld [vmem:[%s323 + $0x8] sm:$0xf]
        %v350 = vld [vmem:[%s323 + $0x10] sm:$0xf]
        %v351 = vld [vmem:[%s323 + $0x18] sm:$0xf]
        %v352 = vld [vmem:[%s323 + $0x20] sm:$0xf]
        %v353 = vld [vmem:[%s323 + $0x28] sm:$0xf]
        %v354 = vld [vmem:[%s323 + $0x30] sm:$0xf]
        %v355 = vld [vmem:[%s323 + $0x38] sm:$0xf]
        %v356 = vld [vmem:[%s3] sm:$0x3]
        %v357 = vld [vmem:[%s323 + $0x4] sm:$0x1]
        %v358 = vld [vmem:[%s323 + $0xc] sm:$0x1]
        %v359 = vld [vmem:[%s323 + $0x14] sm:$0x1]
        %v360 = vld [vmem:[%s323 + $0x1c] sm:$0x1]
        %v361 = vld [vmem:[%s323 + $0x24] sm:$0x1]
        %v362 = vld [vmem:[%s323 + $0x2c] sm:$0x1]
        %v363 = vld [vmem:[%s323 + $0x34] sm:$0x1]
        %v364 = vld [vmem:[%s323 + $0x3c] sm:$0x1]
        %vm365 = vsmask.f32 3328
        %vm366 = vsmask.f32 7440
        %vm367 = vmor %vm365, %vm366
        %v369 = vshrl.u32 %v348, 16
        %v371 = vrot.slane %v369, 4
        %v372 = vshll.u32 %v348, 16
        %v374 = vrot.slane %v372, 5
        %v375 = vor.u32 %v371, %v374
        %v376 = vrot.slane %v375, 4
        %v378 = vshll.u32 %v357, 16
        %v380 = vrot.slane %v378, 5
        %v381 = vsel %vm367, %v376, %v380
        %v383 = vshrl.u32 %v349, 16
        %v385 = vrot.slane %v383, 4
        %v386 = vshll.u32 %v349, 16
        %v388 = vrot.slane %v386, 5
        %v389 = vor.u32 %v385, %v388
        %v390 = vrot.slane %v389, 4
        %v392 = vshll.u32 %v358, 16
        %v394 = vrot.slane %v392, 5
        %v395 = vsel %vm367, %v390, %v394
        %v397 = vshrl.u32 %v350, 16
        %v399 = vrot.slane %v397, 4
        %v400 = vshll.u32 %v350, 16
        %v402 = vrot.slane %v400, 5
        %v403 = vor.u32 %v399, %v402
        %v404 = vrot.slane %v403, 4
        %v406 = vshll.u32 %v359, 16
        %v408 = vrot.slane %v406, 5
        %v409 = vsel %vm367, %v404, %v408
        %v411 = vshrl.u32 %v351, 16
        %v413 = vrot.slane %v411, 4
        %v414 = vshll.u32 %v351, 16
        %v416 = vrot.slane %v414, 5
        %v417 = vor.u32 %v413, %v416
        %v418 = vrot.slane %v417, 4
        %v420 = vshll.u32 %v360, 16
        %v422 = vrot.slane %v420, 5
        %v423 = vsel %vm367, %v418, %v422
        %v425 = vshrl.u32 %v352, 16
        %v427 = vrot.slane %v425, 4
        %v428 = vshll.u32 %v352, 16
        %v430 = vrot.slane %v428, 5
        %v431 = vor.u32 %v427, %v430
        %v432 = vrot.slane %v431, 4
        %v434 = vshll.u32 %v361, 16
        %v436 = vrot.slane %v434, 5
        %v437 = vsel %vm367, %v432, %v436
        %v439 = vshrl.u32 %v353, 16
        %v441 = vrot.slane %v439, 4
        %v442 = vshll.u32 %v353, 16
        %v444 = vrot.slane %v442, 5
        %v445 = vor.u32 %v441, %v444
        %v446 = vrot.slane %v445, 4
        %v448 = vshll.u32 %v362, 16
        %v450 = vrot.slane %v448, 5
        %v451 = vsel %vm367, %v446, %v450
        %v453 = vshrl.u32 %v354, 16
        %v455 = vrot.slane %v453, 4
        %v456 = vshll.u32 %v354, 16
        %v458 = vrot.slane %v456, 5
        %v459 = vor.u32 %v455, %v458
        %v460 = vrot.slane %v459, 4
        %v462 = vshll.u32 %v363, 16
        %v464 = vrot.slane %v462, 5
        %v465 = vsel %vm367, %v460, %v464
        %v467 = vshrl.u32 %v355, 16
        %v469 = vrot.slane %v467, 4
        %v470 = vshll.u32 %v355, 16
        %v472 = vrot.slane %v470, 5
        %v473 = vor.u32 %v469, %v472
        %v474 = vrot.slane %v473, 4
        %v476 = vshll.u32 %v364, 16
        %v478 = vrot.slane %v476, 5
        %v479 = vsel %vm367, %v474, %v478
        %s480 = scalar_lea.vmem %s3, 2
        %v481 = vld [vmem:[%s480] sm:$0x3]
        %v482 = vunpack.c.l.b16 %v381
        %v483 = vunpack.c.l.b16 %v395
        %v484 = vunpack.c.l.b16 %v409
        %v485 = vunpack.c.l.b16 %v423
        %v486 = vunpack.c.l.b16 %v437
        %v487 = vunpack.c.l.b16 %v451
        %v488 = vunpack.c.l.b16 %v465
        %v489 = vunpack.c.l.b16 %v479
        %v490 = vpack.c.b16 %v483, %v482
        %v491 = vpack.c.b16 %v485, %v484
        %v492 = vpack.c.b16 %v487, %v486
        %v493 = vpack.c.b16 %v489, %v488
        %vm494 = vcmask 31744
        %v496 = vsel %vm494, %v490, 0
        %v499 = vsel %vm494, %v491, 0
        %v502 = vsel %vm494, %v492, 0
        %v505 = vsel %vm494, %v493, 0
        %vm507 = vcmask 1041408
        %v509 = vsel %vm507, %v481, 0
        %511 = vmatprep.subr.bf16.mxu0 0
        %512 = vmatpush1.bf16.msra.mxu0 %v509
        %513 = vmatprep.subr.bf16.mxu0 0
        %514 = vmatpush1.bf16.msra.mxu0 0
        %515 = vmatprep.subr.bf16.mxu0 0
        %516 = vmatpush1.bf16.msra.mxu0 0
        %517 = vmatprep.subr.bf16.mxu0 0
        %518 = vmatpush1.bf16.msra.mxu0 0
        %519 = vmatprep.subr.bf16.mxu0 0
        %520 = vmatpush1.bf16.msra.mxu0 0
        %521 = vmatprep.subr.bf16.mxu0 0
        %522 = vmatpush1.bf16.msra.mxu0 0
        %523 = vmatprep.subr.bf16.mxu0 0
        %524 = vmatpush1.bf16.msra.mxu0 0
        %525 = vmatprep.subr.bf16.mxu0 0
        %526 = vmatpush1.bf16.msra.mxu0 0
        %527 = vmatprep.subr.bf16.mxu0 0
        %528 = vmatpush1.bf16.msra.mxu0 0
        %529 = vmatprep.subr.bf16.mxu0 0
        %530 = vmatpush1.bf16.msra.mxu0 0
        %531 = vmatprep.subr.bf16.mxu0 0
        %532 = vmatpush1.bf16.msra.mxu0 0
        %533 = vmatprep.subr.bf16.mxu0 0
        %534 = vmatpush1.bf16.msra.mxu0 0
        %535 = vmatprep.subr.bf16.mxu0 0
        %536 = vmatpush1.bf16.msra.mxu0 0
        %537 = vmatprep.subr.bf16.mxu0 0
        %538 = vmatpush1.bf16.msra.mxu0 0
        %539 = vmatprep.subr.bf16.mxu0 0
        %540 = vmatpush1.bf16.msra.mxu0 0
        %541 = vmatprep.subr.bf16.mxu0 0
        %542 = vmatpush1.bf16.msra.mxu0 0
        %543 = vmatprep.mubr.bf16.mxu0 0
        %544 = vmatmul.mubr.bf16.gmra.mrb[0].mxu0 %v496
        %v545 = vpop.f32.mrb[0].mxu0
        %v546 = vadd.f32 0.0, %v545
        %v547 = vpop.f32.mrb[0].mxu0
        %v548 = vpop.f32.mrb[0].mxu0
        %v549 = vadd.f32 0.0, %v548
        %v550 = vpop.f32.mrb[0].mxu0
        %551 = vmatprep.mubr.bf16.mxu0 0
        %552 = vmatmul.mubr.bf16.gmra.mrb[0].mxu0 %v499
        %v553 = vpop.f32.mrb[0].mxu0
        %v554 = vadd.f32 0.0, %v553
        %v555 = vpop.f32.mrb[0].mxu0
        %v556 = vpop.f32.mrb[0].mxu0
        %v557 = vadd.f32 0.0, %v556
        %v558 = vpop.f32.mrb[0].mxu0
        %559 = vmatprep.mubr.bf16.mxu0 0
        %560 = vmatmul.mubr.bf16.gmra.mrb[0].mxu0 %v502
        %v561 = vpop.f32.mrb[0].mxu0
        %v562 = vadd.f32 0.0, %v561
        %v563 = vpop.f32.mrb[0].mxu0
        %v564 = vpop.f32.mrb[0].mxu0
        %v565 = vadd.f32 0.0, %v564
        %v566 = vpop.f32.mrb[0].mxu0
        %567 = vmatprep.mubr.bf16.mxu0 0
        %568 = vmatmul.mubr.bf16.gmra.mrb[0].mxu0 %v505
        %v569 = vpop.f32.mrb[0].mxu0
        %v570 = vadd.f32 0.0, %v569
        %v571 = vpop.f32.mrb[0].mxu0
        %v572 = vpop.f32.mrb[0].mxu0
        %v573 = vadd.f32 0.0, %v572
        %v574 = vpop.f32.mrb[0].mxu0
        %575 = vdwg.mxu0
        %v584 = vunpack.c.l.b16 %v348
        %v585 = vunpack.c.l.b16 %v349
        %v586 = vunpack.c.l.b16 %v350
        %v587 = vunpack.c.l.b16 %v351
        %v588 = vunpack.c.l.b16 %v352
        %v589 = vunpack.c.l.b16 %v353
        %v590 = vunpack.c.l.b16 %v354
        %v591 = vunpack.c.l.b16 %v355
        %v592 = vpack.c.b16 %v585, %v584
        %v593 = vpack.c.b16 %v587, %v586
        %v594 = vpack.c.b16 %v589, %v588
        %v595 = vpack.c.b16 %v591, %v590
        %v597 = vsel %vm494, %v592, 0
        %v600 = vsel %vm494, %v593, 0
        %v603 = vsel %vm494, %v594, 0
        %v606 = vsel %vm494, %v595, 0
        %v609 = vsel %vm507, %v356, 0
        %611 = vmatprep.subr.bf16.mxu0 0
        %612 = vmatpush1.bf16.msra.mxu0 %v609
        %613 = vmatprep.subr.bf16.mxu0 0
        %614 = vmatpush1.bf16.msra.mxu0 0
        %615 = vmatprep.subr.bf16.mxu0 0
        %616 = vmatpush1.bf16.msra.mxu0 0
        %617 = vmatprep.subr.bf16.mxu0 0
        %618 = vmatpush1.bf16.msra.mxu0 0
        %619 = vmatprep.subr.bf16.mxu0 0
        %620 = vmatpush1.bf16.msra.mxu0 0
        %621 = vmatprep.subr.bf16.mxu0 0
        %622 = vmatpush1.bf16.msra.mxu0 0
        %623 = vmatprep.subr.bf16.mxu0 0
        %624 = vmatpush1.bf16.msra.mxu0 0
        %625 = vmatprep.subr.bf16.mxu0 0
        %626 = vmatpush1.bf16.msra.mxu0 0
        %627 = vmatprep.subr.bf16.mxu0 0
        %628 = vmatpush1.bf16.msra.mxu0 0
        %629 = vmatprep.subr.bf16.mxu0 0
        %630 = vmatpush1.bf16.msra.mxu0 0
        %631 = vmatprep.subr.bf16.mxu0 0
        %632 = vmatpush1.bf16.msra.mxu0 0
        %633 = vmatprep.subr.bf16.mxu0 0
        %634 = vmatpush1.bf16.msra.mxu0 0
        %635 = vmatprep.subr.bf16.mxu0 0
        %636 = vmatpush1.bf16.msra.mxu0 0
        %637 = vmatprep.subr.bf16.mxu0 0
        %638 = vmatpush1.bf16.msra.mxu0 0
        %639 = vmatprep.subr.bf16.mxu0 0
        %640 = vmatpush1.bf16.msra.mxu0 0
        %641 = vmatprep.subr.bf16.mxu0 0
        %642 = vmatpush1.bf16.msra.mxu0 0
        %643 = vmatprep.mubr.bf16.mxu0 0
        %644 = vmatmul.mubr.bf16.gmra.mrb[0].mxu0 %v597
        %v645 = vpop.f32.mrb[0].mxu0
        %v646 = vadd.f32 %v546, %v645
        %v647 = vpop.f32.mrb[0].mxu0
        %v648 = vpop.f32.mrb[0].mxu0
        %v649 = vadd.f32 %v549, %v648
        %v650 = vpop.f32.mrb[0].mxu0
        %651 = vmatprep.mubr.bf16.mxu0 0
        %652 = vmatmul.mubr.bf16.gmra.mrb[0].mxu0 %v600
        %v653 = vpop.f32.mrb[0].mxu0
        %v654 = vadd.f32 %v554, %v653
        %v655 = vpop.f32.mrb[0].mxu0
        %v656 = vpop.f32.mrb[0].mxu0
        %v657 = vadd.f32 %v557, %v656
        %v658 = vpop.f32.mrb[0].mxu0
        %659 = vmatprep.mubr.bf16.mxu0 0
        %660 = vmatmul.mubr.bf16.gmra.mrb[0].mxu0 %v603
        %v661 = vpop.f32.mrb[0].mxu0
        %v662 = vadd.f32 %v562, %v661
        %v663 = vpop.f32.mrb[0].mxu0
        %v664 = vpop.f32.mrb[0].mxu0
        %v665 = vadd.f32 %v565, %v664
        %v666 = vpop.f32.mrb[0].mxu0
        %667 = vmatprep.mubr.bf16.mxu0 0
        %668 = vmatmul.mubr.bf16.gmra.mrb[0].mxu0 %v606
        %v669 = vpop.f32.mrb[0].mxu0
        %v670 = vadd.f32 %v570, %v669
        %v671 = vpop.f32.mrb[0].mxu0
        %v672 = vpop.f32.mrb[0].mxu0
        %v673 = vadd.f32 %v573, %v672
        %v674 = vpop.f32.mrb[0].mxu0
        %675 = vdwg.mxu0
        %v676 = vld [vmem:[%s323] sm:$0xe]
        %v677 = vld [vmem:[%s323 + $0x8] sm:$0xe]
        %v678 = vld [vmem:[%s323 + $0x10] sm:$0xe]
        %v679 = vld [vmem:[%s323 + $0x18] sm:$0xe]
        %v680 = vld [vmem:[%s323 + $0x20] sm:$0xe]
        %v681 = vld [vmem:[%s323 + $0x28] sm:$0xe]
        %v682 = vld [vmem:[%s323 + $0x30] sm:$0xe]
        %v683 = vld [vmem:[%s323 + $0x38] sm:$0xe]
        %vm700 = vcmask 1042432
        %vm701 = vcmask 1046532
        %vm702 = vmor %vm700, %vm701
        %v703 = vrot.slane %v676, 5
        %v704 = vrot.slane %v703, 4
        %v705 = vrot.slane %v357, 5
        %v706 = vsel %vm702, %v704, %v705
        %v707 = vrot.slane %v677, 5
        %v708 = vrot.slane %v707, 4
        %v709 = vrot.slane %v358, 5
        %v710 = vsel %vm702, %v708, %v709
        %v711 = vrot.slane %v678, 5
        %v712 = vrot.slane %v711, 4
        %v713 = vrot.slane %v359, 5
        %v714 = vsel %vm702, %v712, %v713
        %v715 = vrot.slane %v679, 5
        %v716 = vrot.slane %v715, 4
        %v717 = vrot.slane %v360, 5
        %v718 = vsel %vm702, %v716, %v717
        %v719 = vrot.slane %v680, 5
        %v720 = vrot.slane %v719, 4
        %v721 = vrot.slane %v361, 5
        %v722 = vsel %vm702, %v720, %v721
        %v723 = vrot.slane %v681, 5
        %v724 = vrot.slane %v723, 4
        %v725 = vrot.slane %v362, 5
        %v726 = vsel %vm702, %v724, %v725
        %v727 = vrot.slane %v682, 5
        %v728 = vrot.slane %v727, 4
        %v729 = vrot.slane %v363, 5
        %v730 = vsel %vm702, %v728, %v729
        %v731 = vrot.slane %v683, 5
        %v732 = vrot.slane %v731, 4
        %v733 = vrot.slane %v364, 5
        %v734 = vsel %vm702, %v732, %v733
        %s735 = scalar_lea.vmem %s3, 4
        %v736 = vld [vmem:[%s735] sm:$0x3]
        %v737 = vunpack.c.l.b16 %v706
        %v738 = vunpack.c.l.b16 %v710
        %v739 = vunpack.c.l.b16 %v714
        %v740 = vunpack.c.l.b16 %v718
        %v741 = vunpack.c.l.b16 %v722
        %v742 = vunpack.c.l.b16 %v726
        %v743 = vunpack.c.l.b16 %v730
        %v744 = vunpack.c.l.b16 %v734
        %v745 = vpack.c.b16 %v738, %v737
        %v746 = vpack.c.b16 %v740, %v739
        %v747 = vpack.c.b16 %v742, %v741
        %v748 = vpack.c.b16 %v744, %v743
        %v750 = vsel %vm494, %v745, 0
        %v753 = vsel %vm494, %v746, 0
        %v756 = vsel %vm494, %v747, 0
        %v759 = vsel %vm494, %v748, 0
        %v762 = vsel %vm507, %v736, 0
        %764 = vmatprep.subr.bf16.mxu0 0
        %765 = vmatpush1.bf16.msra.mxu0 %v762
        %766 = vmatprep.subr.bf16.mxu0 0
        %767 = vmatpush1.bf16.msra.mxu0 0
        %768 = vmatprep.subr.bf16.mxu0 0
        %769 = vmatpush1.bf16.msra.mxu0 0
        %770 = vmatprep.subr.bf16.mxu0 0
        %771 = vmatpush1.bf16.msra.mxu0 0
        %772 = vmatprep.subr.bf16.mxu0 0
        %773 = vmatpush1.bf16.msra.mxu0 0
        %774 = vmatprep.subr.bf16.mxu0 0
        %775 = vmatpush1.bf16.msra.mxu0 0
        %776 = vmatprep.subr.bf16.mxu0 0
        %777 = vmatpush1.bf16.msra.mxu0 0
        %778 = vmatprep.subr.bf16.mxu0 0
        %779 = vmatpush1.bf16.msra.mxu0 0
        %780 = vmatprep.subr.bf16.mxu0 0
        %781 = vmatpush1.bf16.msra.mxu0 0
        %782 = vmatprep.subr.bf16.mxu0 0
        %783 = vmatpush1.bf16.msra.mxu0 0
        %784 = vmatprep.subr.bf16.mxu0 0
        %785 = vmatpush1.bf16.msra.mxu0 0
        %786 = vmatprep.subr.bf16.mxu0 0
        %787 = vmatpush1.bf16.msra.mxu0 0
        %788 = vmatprep.subr.bf16.mxu0 0
        %789 = vmatpush1.bf16.msra.mxu0 0
        %790 = vmatprep.subr.bf16.mxu0 0
        %791 = vmatpush1.bf16.msra.mxu0 0
        %792 = vmatprep.subr.bf16.mxu0 0
        %793 = vmatpush1.bf16.msra.mxu0 0
        %794 = vmatprep.subr.bf16.mxu0 0
        %795 = vmatpush1.bf16.msra.mxu0 0
        %796 = vmatprep.mubr.bf16.mxu0 0
        %797 = vmatmul.mubr.bf16.gmra.mrb[0].mxu0 %v750
        %v798 = vpop.f32.mrb[0].mxu0
        %v799 = vadd.f32 0.0, %v798
        %v800 = vpop.f32.mrb[0].mxu0
        %v801 = vpop.f32.mrb[0].mxu0
        %v802 = vadd.f32 0.0, %v801
        %v803 = vpop.f32.mrb[0].mxu0
        %804 = vmatprep.mubr.bf16.mxu0 0
        %805 = vmatmul.mubr.bf16.gmra.mrb[0].mxu0 %v753
        %v806 = vpop.f32.mrb[0].mxu0
        %v807 = vadd.f32 0.0, %v806
        %v808 = vpop.f32.mrb[0].mxu0
        %v809 = vpop.f32.mrb[0].mxu0
        %v810 = vadd.f32 0.0, %v809
        %v811 = vpop.f32.mrb[0].mxu0
        %812 = vmatprep.mubr.bf16.mxu0 0
        %813 = vmatmul.mubr.bf16.gmra.mrb[0].mxu0 %v756
        %v814 = vpop.f32.mrb[0].mxu0
        %v815 = vadd.f32 0.0, %v814
        %v816 = vpop.f32.mrb[0].mxu0
        %v817 = vpop.f32.mrb[0].mxu0
        %v818 = vadd.f32 0.0, %v817
        %v819 = vpop.f32.mrb[0].mxu0
        %820 = vmatprep.mubr.bf16.mxu0 0
        %821 = vmatmul.mubr.bf16.gmra.mrb[0].mxu0 %v759
        %v822 = vpop.f32.mrb[0].mxu0
        %v823 = vadd.f32 0.0, %v822
        %v824 = vpop.f32.mrb[0].mxu0
        %v825 = vpop.f32.mrb[0].mxu0
        %v826 = vadd.f32 0.0, %v825
        %v827 = vpop.f32.mrb[0].mxu0
        %828 = vdwg.mxu0
        %v829 = vadd.f32 %v646, %v799
        %v830 = vadd.f32 %v649, %v802
        %v831 = vadd.f32 %v654, %v807
        %v832 = vadd.f32 %v657, %v810
        %v833 = vadd.f32 %v662, %v815
        %v834 = vadd.f32 %v665, %v818
        %v835 = vadd.f32 %v670, %v823
        %v836 = vadd.f32 %v673, %v826
        %s837 = scalar_lea.vmem %s323, 8
        %v838 = vld [vmem:[%s837] sm:$0xf]
        %v839 = vld [vmem:[%s837 + $0x8] sm:$0xf]
        %v840 = vld [vmem:[%s837 + $0x10] sm:$0xf]
        %v841 = vld [vmem:[%s837 + $0x18] sm:$0xf]
        %v842 = vld [vmem:[%s837 + $0x20] sm:$0xf]
        %v843 = vld [vmem:[%s837 + $0x28] sm:$0xf]
        %v844 = vld [vmem:[%s837 + $0x30] sm:$0xf]
        %v845 = vld [vmem:[%s837 + $0x38] sm:$0xf]
        %s846 = scalar_lea.vmem %s3, 6
        %v847 = vld [vmem:[%s846] sm:$0x3]
        %v856 = vunpack.c.l.b16 %v838
        %v857 = vunpack.c.l.b16 %v839
        %v858 = vunpack.c.l.b16 %v840
        %v859 = vunpack.c.l.b16 %v841
        %v860 = vunpack.c.l.b16 %v842
        %v861 = vunpack.c.l.b16 %v843
        %v862 = vunpack.c.l.b16 %v844
        %v863 = vunpack.c.l.b16 %v845
        %v864 = vpack.c.b16 %v857, %v856
        %v865 = vpack.c.b16 %v859, %v858
        %v866 = vpack.c.b16 %v861, %v860
        %v867 = vpack.c.b16 %v863, %v862
        %v869 = vsel %vm494, %v864, 0
        %v872 = vsel %vm494, %v865, 0
        %v875 = vsel %vm494, %v866, 0
        %v878 = vsel %vm494, %v867, 0
        %v881 = vsel %vm507, %v847, 0
        %883 = vmatprep.subr.bf16.mxu0 0
        %884 = vmatpush1.bf16.msra.mxu0 %v881
        %885 = vmatprep.subr.bf16.mxu0 0
        %886 = vmatpush1.bf16.msra.mxu0 0
        %887 = vmatprep.subr.bf16.mxu0 0
        %888 = vmatpush1.bf16.msra.mxu0 0
        %889 = vmatprep.subr.bf16.mxu0 0
        %890 = vmatpush1.bf16.msra.mxu0 0
        %891 = vmatprep.subr.bf16.mxu0 0
        %892 = vmatpush1.bf16.msra.mxu0 0
        %893 = vmatprep.subr.bf16.mxu0 0
        %894 = vmatpush1.bf16.msra.mxu0 0
        %895 = vmatprep.subr.bf16.mxu0 0
        %896 = vmatpush1.bf16.msra.mxu0 0
        %897 = vmatprep.subr.bf16.mxu0 0
        %898 = vmatpush1.bf16.msra.mxu0 0
        %899 = vmatprep.subr.bf16.mxu0 0
        %900 = vmatpush1.bf16.msra.mxu0 0
        %901 = vmatprep.subr.bf16.mxu0 0
        %902 = vmatpush1.bf16.msra.mxu0 0
        %903 = vmatprep.subr.bf16.mxu0 0
        %904 = vmatpush1.bf16.msra.mxu0 0
        %905 = vmatprep.subr.bf16.mxu0 0
        %906 = vmatpush1.bf16.msra.mxu0 0
        %907 = vmatprep.subr.bf16.mxu0 0
        %908 = vmatpush1.bf16.msra.mxu0 0
        %909 = vmatprep.subr.bf16.mxu0 0
        %910 = vmatpush1.bf16.msra.mxu0 0
        %911 = vmatprep.subr.bf16.mxu0 0
        %912 = vmatpush1.bf16.msra.mxu0 0
        %913 = vmatprep.subr.bf16.mxu0 0
        %914 = vmatpush1.bf16.msra.mxu0 0
        %915 = vmatprep.mubr.bf16.mxu0 0
        %916 = vmatmul.mubr.bf16.gmra.mrb[0].mxu0 %v869
        %v917 = vpop.f32.mrb[0].mxu0
        %v918 = vadd.f32 0.0, %v917
        %v919 = vpop.f32.mrb[0].mxu0
        %v920 = vpop.f32.mrb[0].mxu0
        %v921 = vadd.f32 0.0, %v920
        %v922 = vpop.f32.mrb[0].mxu0
        %923 = vmatprep.mubr.bf16.mxu0 0
        %924 = vmatmul.mubr.bf16.gmra.mrb[0].mxu0 %v872
        %v925 = vpop.f32.mrb[0].mxu0
        %v926 = vadd.f32 0.0, %v925
        %v927 = vpop.f32.mrb[0].mxu0
        %v928 = vpop.f32.mrb[0].mxu0
        %v929 = vadd.f32 0.0, %v928
        %v930 = vpop.f32.mrb[0].mxu0
        %931 = vmatprep.mubr.bf16.mxu0 0
        %932 = vmatmul.mubr.bf16.gmra.mrb[0].mxu0 %v875
        %v933 = vpop.f32.mrb[0].mxu0
        %v934 = vadd.f32 0.0, %v933
        %v935 = vpop.f32.mrb[0].mxu0
        %v936 = vpop.f32.mrb[0].mxu0
        %v937 = vadd.f32 0.0, %v936
        %v938 = vpop.f32.mrb[0].mxu0
        %939 = vmatprep.mubr.bf16.mxu0 0
        %940 = vmatmul.mubr.bf16.gmra.mrb[0].mxu0 %v878
        %v941 = vpop.f32.mrb[0].mxu0
        %v942 = vadd.f32 0.0, %v941
        %v943 = vpop.f32.mrb[0].mxu0
        %v944 = vpop.f32.mrb[0].mxu0
        %v945 = vadd.f32 0.0, %v944
        %v946 = vpop.f32.mrb[0].mxu0
        %947 = vdwg.mxu0
        %v948 = vadd.f32 %v829, %v918
        %v949 = vadd.f32 %v830, %v921
        %v950 = vadd.f32 %v831, %v926
        %v951 = vadd.f32 %v832, %v929
        %v952 = vadd.f32 %v833, %v934
        %v953 = vadd.f32 %v834, %v937
        %v954 = vadd.f32 %v835, %v942
        %v955 = vadd.f32 %v836, %v945
        %v956 = vld [vmem:[%s837] sm:$0xf]
        %v957 = vld [vmem:[%s837 + $0x4] sm:$0x1]
        %v958 = vld [vmem:[%s837 + $0x8] sm:$0xf]
        %v959 = vld [vmem:[%s837 + $0xc] sm:$0x1]
        %v960 = vld [vmem:[%s837 + $0x10] sm:$0xf]
        %v961 = vld [vmem:[%s837 + $0x14] sm:$0x1]
        %v962 = vld [vmem:[%s837 + $0x18] sm:$0xf]
        %v963 = vld [vmem:[%s837 + $0x1c] sm:$0x1]
        %v964 = vld [vmem:[%s837 + $0x20] sm:$0xf]
        %v965 = vld [vmem:[%s837 + $0x24] sm:$0x1]
        %v966 = vld [vmem:[%s837 + $0x28] sm:$0xf]
        %v967 = vld [vmem:[%s837 + $0x2c] sm:$0x1]
        %v968 = vld [vmem:[%s837 + $0x30] sm:$0xf]
        %v969 = vld [vmem:[%s837 + $0x34] sm:$0x1]
        %v970 = vld [vmem:[%s837 + $0x38] sm:$0xf]
        %v971 = vld [vmem:[%s837 + $0x3c] sm:$0x1]
        %v973 = vshrl.u32 %v956, 16
        %v975 = vrot.slane %v973, 4
        %v976 = vshll.u32 %v956, 16
        %v978 = vrot.slane %v976, 5
        %v979 = vor.u32 %v975, %v978
        %v980 = vrot.slane %v979, 4
        %v982 = vshll.u32 %v957, 16
        %v984 = vrot.slane %v982, 5
        %v985 = vsel %vm367, %v980, %v984
        %v987 = vshrl.u32 %v958, 16
        %v989 = vrot.slane %v987, 4
        %v990 = vshll.u32 %v958, 16
        %v992 = vrot.slane %v990, 5
        %v993 = vor.u32 %v989, %v992
        %v994 = vrot.slane %v993, 4
        %v996 = vshll.u32 %v959, 16
        %v998 = vrot.slane %v996, 5
        %v999 = vsel %vm367, %v994, %v998
        %v1001 = vshrl.u32 %v960, 16
        %v1003 = vrot.slane %v1001, 4
        %v1004 = vshll.u32 %v960, 16
        %v1006 = vrot.slane %v1004, 5
        %v1007 = vor.u32 %v1003, %v1006
        %v1008 = vrot.slane %v1007, 4
        %v1010 = vshll.u32 %v961, 16
        %v1012 = vrot.slane %v1010, 5
        %v1013 = vsel %vm367, %v1008, %v1012
        %v1015 = vshrl.u32 %v962, 16
        %v1017 = vrot.slane %v1015, 4
        %v1018 = vshll.u32 %v962, 16
        %v1020 = vrot.slane %v1018, 5
        %v1021 = vor.u32 %v1017, %v1020
        %v1022 = vrot.slane %v1021, 4
        %v1024 = vshll.u32 %v963, 16
        %v1026 = vrot.slane %v1024, 5
        %v1027 = vsel %vm367, %v1022, %v1026
        %v1029 = vshrl.u32 %v964, 16
        %v1031 = vrot.slane %v1029, 4
        %v1032 = vshll.u32 %v964, 16
        %v1034 = vrot.slane %v1032, 5
        %v1035 = vor.u32 %v1031, %v1034
        %v1036 = vrot.slane %v1035, 4
        %v1038 = vshll.u32 %v965, 16
        %v1040 = vrot.slane %v1038, 5
        %v1041 = vsel %vm367, %v1036, %v1040
        %v1043 = vshrl.u32 %v966, 16
        %v1045 = vrot.slane %v1043, 4
        %v1046 = vshll.u32 %v966, 16
        %v1048 = vrot.slane %v1046, 5
        %v1049 = vor.u32 %v1045, %v1048
        %v1050 = vrot.slane %v1049, 4
        %v1052 = vshll.u32 %v967, 16
        %v1054 = vrot.slane %v1052, 5
        %v1055 = vsel %vm367, %v1050, %v1054
        %v1057 = vshrl.u32 %v968, 16
        %v1059 = vrot.slane %v1057, 4
        %v1060 = vshll.u32 %v968, 16
        %v1062 = vrot.slane %v1060, 5
        %v1063 = vor.u32 %v1059, %v1062
        %v1064 = vrot.slane %v1063, 4
        %v1066 = vshll.u32 %v969, 16
        %v1068 = vrot.slane %v1066, 5
        %v1069 = vsel %vm367, %v1064, %v1068
        %v1071 = vshrl.u32 %v970, 16
        %v1073 = vrot.slane %v1071, 4
        %v1074 = vshll.u32 %v970, 16
        %v1076 = vrot.slane %v1074, 5
        %v1077 = vor.u32 %v1073, %v1076
        %v1078 = vrot.slane %v1077, 4
        %v1080 = vshll.u32 %v971, 16
        %v1082 = vrot.slane %v1080, 5
        %v1083 = vsel %vm367, %v1078, %v1082
        %s1084 = scalar_lea.vmem %s3, 8
        %v1085 = vld [vmem:[%s1084] sm:$0x3]
        %v1086 = vunpack.c.l.b16 %v985
        %v1087 = vunpack.c.l.b16 %v999
        %v1088 = vunpack.c.l.b16 %v1013
        %v1089 = vunpack.c.l.b16 %v1027
        %v1090 = vunpack.c.l.b16 %v1041
        %v1091 = vunpack.c.l.b16 %v1055
        %v1092 = vunpack.c.l.b16 %v1069
        %v1093 = vunpack.c.l.b16 %v1083
        %v1094 = vpack.c.b16 %v1087, %v1086
        %v1095 = vpack.c.b16 %v1089, %v1088
        %v1096 = vpack.c.b16 %v1091, %v1090
        %v1097 = vpack.c.b16 %v1093, %v1092
        %v1099 = vsel %vm494, %v1094, 0
        %v1102 = vsel %vm494, %v1095, 0
        %v1105 = vsel %vm494, %v1096, 0
        %v1108 = vsel %vm494, %v1097, 0
        %v1111 = vsel %vm507, %v1085, 0
        %1113 = vmatprep.subr.bf16.mxu0 0
        %1114 = vmatpush1.bf16.msra.mxu0 %v1111
        %1115 = vmatprep.subr.bf16.mxu0 0
        %1116 = vmatpush1.bf16.msra.mxu0 0
        %1117 = vmatprep.subr.bf16.mxu0 0
        %1118 = vmatpush1.bf16.msra.mxu0 0
        %1119 = vmatprep.subr.bf16.mxu0 0
        %1120 = vmatpush1.bf16.msra.mxu0 0
        %1121 = vmatprep.subr.bf16.mxu0 0
        %1122 = vmatpush1.bf16.msra.mxu0 0
        %1123 = vmatprep.subr.bf16.mxu0 0
        %1124 = vmatpush1.bf16.msra.mxu0 0
        %1125 = vmatprep.subr.bf16.mxu0 0
        %1126 = vmatpush1.bf16.msra.mxu0 0
        %1127 = vmatprep.subr.bf16.mxu0 0
        %1128 = vmatpush1.bf16.msra.mxu0 0
        %1129 = vmatprep.subr.bf16.mxu0 0
        %1130 = vmatpush1.bf16.msra.mxu0 0
        %1131 = vmatprep.subr.bf16.mxu0 0
        %1132 = vmatpush1.bf16.msra.mxu0 0
        %1133 = vmatprep.subr.bf16.mxu0 0
        %1134 = vmatpush1.bf16.msra.mxu0 0
        %1135 = vmatprep.subr.bf16.mxu0 0
        %1136 = vmatpush1.bf16.msra.mxu0 0
        %1137 = vmatprep.subr.bf16.mxu0 0
        %1138 = vmatpush1.bf16.msra.mxu0 0
        %1139 = vmatprep.subr.bf16.mxu0 0
        %1140 = vmatpush1.bf16.msra.mxu0 0
        %1141 = vmatprep.subr.bf16.mxu0 0
        %1142 = vmatpush1.bf16.msra.mxu0 0
        %1143 = vmatprep.subr.bf16.mxu0 0
        %1144 = vmatpush1.bf16.msra.mxu0 0
        %1145 = vmatprep.mubr.bf16.mxu0 0
        %1146 = vmatmul.mubr.bf16.gmra.mrb[0].mxu0 %v1099
        %v1147 = vpop.f32.mrb[0].mxu0
        %v1148 = vadd.f32 0.0, %v1147
        %v1149 = vpop.f32.mrb[0].mxu0
        %v1150 = vpop.f32.mrb[0].mxu0
        %v1151 = vadd.f32 0.0, %v1150
        %v1152 = vpop.f32.mrb[0].mxu0
        %1153 = vmatprep.mubr.bf16.mxu0 0
        %1154 = vmatmul.mubr.bf16.gmra.mrb[0].mxu0 %v1102
        %v1155 = vpop.f32.mrb[0].mxu0
        %v1156 = vadd.f32 0.0, %v1155
        %v1157 = vpop.f32.mrb[0].mxu0
        %v1158 = vpop.f32.mrb[0].mxu0
        %v1159 = vadd.f32 0.0, %v1158
        %v1160 = vpop.f32.mrb[0].mxu0
        %1161 = vmatprep.mubr.bf16.mxu0 0
        %1162 = vmatmul.mubr.bf16.gmra.mrb[0].mxu0 %v1105
        %v1163 = vpop.f32.mrb[0].mxu0
        %v1164 = vadd.f32 0.0, %v1163
        %v1165 = vpop.f32.mrb[0].mxu0
        %v1166 = vpop.f32.mrb[0].mxu0
        %v1167 = vadd.f32 0.0, %v1166
        %v1168 = vpop.f32.mrb[0].mxu0
        %1169 = vmatprep.mubr.bf16.mxu0 0
        %1170 = vmatmul.mubr.bf16.gmra.mrb[0].mxu0 %v1108
        %v1171 = vpop.f32.mrb[0].mxu0
        %v1172 = vadd.f32 0.0, %v1171
        %v1173 = vpop.f32.mrb[0].mxu0
        %v1174 = vpop.f32.mrb[0].mxu0
        %v1175 = vadd.f32 0.0, %v1174
        %v1176 = vpop.f32.mrb[0].mxu0
        %1177 = vdwg.mxu0
        %v1178 = vadd.f32 %v948, %v1148
        %v1179 = vadd.f32 %v949, %v1151
        %v1180 = vadd.f32 %v950, %v1156
        %v1181 = vadd.f32 %v951, %v1159
        %v1182 = vadd.f32 %v952, %v1164
        %v1183 = vadd.f32 %v953, %v1167
        %v1184 = vadd.f32 %v954, %v1172
        %v1185 = vadd.f32 %v955, %v1175
        %v1186 = vld [vmem:[%s837] sm:$0xe]
        %v1187 = vld [vmem:[%s837 + $0x8] sm:$0xe]
        %v1188 = vld [vmem:[%s837 + $0x10] sm:$0xe]
        %v1189 = vld [vmem:[%s837 + $0x18] sm:$0xe]
        %v1190 = vld [vmem:[%s837 + $0x20] sm:$0xe]
        %v1191 = vld [vmem:[%s837 + $0x28] sm:$0xe]
        %v1192 = vld [vmem:[%s837 + $0x30] sm:$0xe]
        %v1193 = vld [vmem:[%s837 + $0x38] sm:$0xe]
        %v1210 = vrot.slane %v1186, 5
        %v1211 = vrot.slane %v1210, 4
        %v1212 = vrot.slane %v957, 5
        %v1213 = vsel %vm702, %v1211, %v1212
        %v1214 = vrot.slane %v1187, 5
        %v1215 = vrot.slane %v1214, 4
        %v1216 = vrot.slane %v959, 5
        %v1217 = vsel %vm702, %v1215, %v1216
        %v1218 = vrot.slane %v1188, 5
        %v1219 = vrot.slane %v1218, 4
        %v1220 = vrot.slane %v961, 5
        %v1221 = vsel %vm702, %v1219, %v1220
        %v1222 = vrot.slane %v1189, 5
        %v1223 = vrot.slane %v1222, 4
        %v1224 = vrot.slane %v963, 5
        %v1225 = vsel %vm702, %v1223, %v1224
        %v1226 = vrot.slane %v1190, 5
        %v1227 = vrot.slane %v1226, 4
        %v1228 = vrot.slane %v965, 5
        %v1229 = vsel %vm702, %v1227, %v1228
        %v1230 = vrot.slane %v1191, 5
        %v1231 = vrot.slane %v1230, 4
        %v1232 = vrot.slane %v967, 5
        %v1233 = vsel %vm702, %v1231, %v1232
        %v1234 = vrot.slane %v1192, 5
        %v1235 = vrot.slane %v1234, 4
        %v1236 = vrot.slane %v969, 5
        %v1237 = vsel %vm702, %v1235, %v1236
        %v1238 = vrot.slane %v1193, 5
        %v1239 = vrot.slane %v1238, 4
        %v1240 = vrot.slane %v971, 5
        %v1241 = vsel %vm702, %v1239, %v1240
        %s1242 = scalar_lea.vmem %s3, 10
        %v1243 = vld [vmem:[%s1242] sm:$0x3]
        %v1244 = vunpack.c.l.b16 %v1213
        %v1245 = vunpack.c.l.b16 %v1217
        %v1246 = vunpack.c.l.b16 %v1221
        %v1247 = vunpack.c.l.b16 %v1225
        %v1248 = vunpack.c.l.b16 %v1229
        %v1249 = vunpack.c.l.b16 %v1233
        %v1250 = vunpack.c.l.b16 %v1237
        %v1251 = vunpack.c.l.b16 %v1241
        %v1252 = vpack.c.b16 %v1245, %v1244
        %v1253 = vpack.c.b16 %v1247, %v1246
        %v1254 = vpack.c.b16 %v1249, %v1248
        %v1255 = vpack.c.b16 %v1251, %v1250
        %v1257 = vsel %vm494, %v1252, 0
        %v1260 = vsel %vm494, %v1253, 0
        %v1263 = vsel %vm494, %v1254, 0
        %v1266 = vsel %vm494, %v1255, 0
        %v1269 = vsel %vm507, %v1243, 0
        %1271 = vmatprep.subr.bf16.mxu0 0
        %1272 = vmatpush1.bf16.msra.mxu0 %v1269
        %1273 = vmatprep.subr.bf16.mxu0 0
        %1274 = vmatpush1.bf16.msra.mxu0 0
        %1275 = vmatprep.subr.bf16.mxu0 0
        %1276 = vmatpush1.bf16.msra.mxu0 0
        %1277 = vmatprep.subr.bf16.mxu0 0
        %1278 = vmatpush1.bf16.msra.mxu0 0
        %1279 = vmatprep.subr.bf16.mxu0 0
        %1280 = vmatpush1.bf16.msra.mxu0 0
        %1281 = vmatprep.subr.bf16.mxu0 0
        %1282 = vmatpush1.bf16.msra.mxu0 0
        %1283 = vmatprep.subr.bf16.mxu0 0
        %1284 = vmatpush1.bf16.msra.mxu0 0
        %1285 = vmatprep.subr.bf16.mxu0 0
        %1286 = vmatpush1.bf16.msra.mxu0 0
        %1287 = vmatprep.subr.bf16.mxu0 0
        %1288 = vmatpush1.bf16.msra.mxu0 0
        %1289 = vmatprep.subr.bf16.mxu0 0
        %1290 = vmatpush1.bf16.msra.mxu0 0
        %1291 = vmatprep.subr.bf16.mxu0 0
        %1292 = vmatpush1.bf16.msra.mxu0 0
        %1293 = vmatprep.subr.bf16.mxu0 0
        %1294 = vmatpush1.bf16.msra.mxu0 0
        %1295 = vmatprep.subr.bf16.mxu0 0
        %1296 = vmatpush1.bf16.msra.mxu0 0
        %1297 = vmatprep.subr.bf16.mxu0 0
        %1298 = vmatpush1.bf16.msra.mxu0 0
        %1299 = vmatprep.subr.bf16.mxu0 0
        %1300 = vmatpush1.bf16.msra.mxu0 0
        %1301 = vmatprep.subr.bf16.mxu0 0
        %1302 = vmatpush1.bf16.msra.mxu0 0
        %1303 = vmatprep.mubr.bf16.mxu0 0
        %1304 = vmatmul.mubr.bf16.gmra.mrb[0].mxu0 %v1257
        %v1305 = vpop.f32.mrb[0].mxu0
        %v1306 = vadd.f32 0.0, %v1305
        %v1307 = vpop.f32.mrb[0].mxu0
        %v1308 = vpop.f32.mrb[0].mxu0
        %v1309 = vadd.f32 0.0, %v1308
        %v1310 = vpop.f32.mrb[0].mxu0
        %1311 = vmatprep.mubr.bf16.mxu0 0
        %1312 = vmatmul.mubr.bf16.gmra.mrb[0].mxu0 %v1260
        %v1313 = vpop.f32.mrb[0].mxu0
        %v1314 = vadd.f32 0.0, %v1313
        %v1315 = vpop.f32.mrb[0].mxu0
        %v1316 = vpop.f32.mrb[0].mxu0
        %v1317 = vadd.f32 0.0, %v1316
        %v1318 = vpop.f32.mrb[0].mxu0
        %1319 = vmatprep.mubr.bf16.mxu0 0
        %1320 = vmatmul.mubr.bf16.gmra.mrb[0].mxu0 %v1263
        %v1321 = vpop.f32.mrb[0].mxu0
        %v1322 = vadd.f32 0.0, %v1321
        %v1323 = vpop.f32.mrb[0].mxu0
        %v1324 = vpop.f32.mrb[0].mxu0
        %v1325 = vadd.f32 0.0, %v1324
        %v1326 = vpop.f32.mrb[0].mxu0
        %1327 = vmatprep.mubr.bf16.mxu0 0
        %1328 = vmatmul.mubr.bf16.gmra.mrb[0].mxu0 %v1266
        %v1329 = vpop.f32.mrb[0].mxu0
        %v1330 = vadd.f32 0.0, %v1329
        %v1331 = vpop.f32.mrb[0].mxu0
        %v1332 = vpop.f32.mrb[0].mxu0
        %v1333 = vadd.f32 0.0, %v1332
        %v1334 = vpop.f32.mrb[0].mxu0
        %1335 = vdwg.mxu0
        %v1336 = vadd.f32 %v1178, %v1306
        %v1337 = vadd.f32 %v1179, %v1309
        %v1338 = vadd.f32 %v1180, %v1314
        %v1339 = vadd.f32 %v1181, %v1317
        %v1340 = vadd.f32 %v1182, %v1322
        %v1341 = vadd.f32 %v1183, %v1325
        %v1342 = vadd.f32 %v1184, %v1330
        %v1343 = vadd.f32 %v1185, %v1333
        %s1344 = scalar_lea.vmem %s323, 16
        %v1345 = vld [vmem:[%s1344] sm:$0xf]
        %v1346 = vld [vmem:[%s1344 + $0x8] sm:$0xf]
        %v1347 = vld [vmem:[%s1344 + $0x10] sm:$0xf]
        %v1348 = vld [vmem:[%s1344 + $0x18] sm:$0xf]
        %v1349 = vld [vmem:[%s1344 + $0x20] sm:$0xf]
        %v1350 = vld [vmem:[%s1344 + $0x28] sm:$0xf]
        %v1351 = vld [vmem:[%s1344 + $0x30] sm:$0xf]
        %v1352 = vld [vmem:[%s1344 + $0x38] sm:$0xf]
        %s1353 = scalar_lea.vmem %s3, 12
        %v1354 = vld [vmem:[%s1353] sm:$0x3]
        %v1363 = vunpack.c.l.b16 %v1345
        %v1364 = vunpack.c.l.b16 %v1346
        %v1365 = vunpack.c.l.b16 %v1347
        %v1366 = vunpack.c.l.b16 %v1348
        %v1367 = vunpack.c.l.b16 %v1349
        %v1368 = vunpack.c.l.b16 %v1350
        %v1369 = vunpack.c.l.b16 %v1351
        %v1370 = vunpack.c.l.b16 %v1352
        %v1371 = vpack.c.b16 %v1364, %v1363
        %v1372 = vpack.c.b16 %v1366, %v1365
        %v1373 = vpack.c.b16 %v1368, %v1367
        %v1374 = vpack.c.b16 %v1370, %v1369
        %v1376 = vsel %vm494, %v1371, 0
        %v1379 = vsel %vm494, %v1372, 0
        %v1382 = vsel %vm494, %v1373, 0
        %v1385 = vsel %vm494, %v1374, 0
        %v1388 = vsel %vm507, %v1354, 0
        %1390 = vmatprep.subr.bf16.mxu0 0
        %1391 = vmatpush1.bf16.msra.mxu0 %v1388
        %1392 = vmatprep.subr.bf16.mxu0 0
        %1393 = vmatpush1.bf16.msra.mxu0 0
        %1394 = vmatprep.subr.bf16.mxu0 0
        %1395 = vmatpush1.bf16.msra.mxu0 0
        %1396 = vmatprep.subr.bf16.mxu0 0
        %1397 = vmatpush1.bf16.msra.mxu0 0
        %1398 = vmatprep.subr.bf16.mxu0 0
        %1399 = vmatpush1.bf16.msra.mxu0 0
        %1400 = vmatprep.subr.bf16.mxu0 0
        %1401 = vmatpush1.bf16.msra.mxu0 0
        %1402 = vmatprep.subr.bf16.mxu0 0
        %1403 = vmatpush1.bf16.msra.mxu0 0
        %1404 = vmatprep.subr.bf16.mxu0 0
        %1405 = vmatpush1.bf16.msra.mxu0 0
        %1406 = vmatprep.subr.bf16.mxu0 0
        %1407 = vmatpush1.bf16.msra.mxu0 0
        %1408 = vmatprep.subr.bf16.mxu0 0
        %1409 = vmatpush1.bf16.msra.mxu0 0
        %1410 = vmatprep.subr.bf16.mxu0 0
        %1411 = vmatpush1.bf16.msra.mxu0 0
        %1412 = vmatprep.subr.bf16.mxu0 0
        %1413 = vmatpush1.bf16.msra.mxu0 0
        %1414 = vmatprep.subr.bf16.mxu0 0
        %1415 = vmatpush1.bf16.msra.mxu0 0
        %1416 = vmatprep.subr.bf16.mxu0 0
        %1417 = vmatpush1.bf16.msra.mxu0 0
        %1418 = vmatprep.subr.bf16.mxu0 0
        %1419 = vmatpush1.bf16.msra.mxu0 0
        %1420 = vmatprep.subr.bf16.mxu0 0
        %1421 = vmatpush1.bf16.msra.mxu0 0
        %1422 = vmatprep.mubr.bf16.mxu0 0
        %1423 = vmatmul.mubr.bf16.gmra.mrb[0].mxu0 %v1376
        %v1424 = vpop.f32.mrb[0].mxu0
        %v1425 = vadd.f32 0.0, %v1424
        %v1426 = vpop.f32.mrb[0].mxu0
        %v1427 = vpop.f32.mrb[0].mxu0
        %v1428 = vadd.f32 0.0, %v1427
        %v1429 = vpop.f32.mrb[0].mxu0
        %1430 = vmatprep.mubr.bf16.mxu0 0
        %1431 = vmatmul.mubr.bf16.gmra.mrb[0].mxu0 %v1379
        %v1432 = vpop.f32.mrb[0].mxu0
        %v1433 = vadd.f32 0.0, %v1432
        %v1434 = vpop.f32.mrb[0].mxu0
        %v1435 = vpop.f32.mrb[0].mxu0
        %v1436 = vadd.f32 0.0, %v1435
        %v1437 = vpop.f32.mrb[0].mxu0
        %1438 = vmatprep.mubr.bf16.mxu0 0
        %1439 = vmatmul.mubr.bf16.gmra.mrb[0].mxu0 %v1382
        %v1440 = vpop.f32.mrb[0].mxu0
        %v1441 = vadd.f32 0.0, %v1440
        %v1442 = vpop.f32.mrb[0].mxu0
        %v1443 = vpop.f32.mrb[0].mxu0
        %v1444 = vadd.f32 0.0, %v1443
        %v1445 = vpop.f32.mrb[0].mxu0
        %1446 = vmatprep.mubr.bf16.mxu0 0
        %1447 = vmatmul.mubr.bf16.gmra.mrb[0].mxu0 %v1385
        %v1448 = vpop.f32.mrb[0].mxu0
        %v1449 = vadd.f32 0.0, %v1448
        %v1450 = vpop.f32.mrb[0].mxu0
        %v1451 = vpop.f32.mrb[0].mxu0
        %v1452 = vadd.f32 0.0, %v1451
        %v1453 = vpop.f32.mrb[0].mxu0
        %1454 = vdwg.mxu0
        %v1455 = vadd.f32 %v1336, %v1425
        %v1456 = vadd.f32 %v1337, %v1428
        %v1457 = vadd.f32 %v1338, %v1433
        %v1458 = vadd.f32 %v1339, %v1436
        %v1459 = vadd.f32 %v1340, %v1441
        %v1460 = vadd.f32 %v1341, %v1444
        %v1461 = vadd.f32 %v1342, %v1449
        %v1462 = vadd.f32 %v1343, %v1452
        %v1463 = vld [vmem:[%s1344] sm:$0xf]
        %v1464 = vld [vmem:[%s1344 + $0x4] sm:$0x1]
        %v1465 = vld [vmem:[%s1344 + $0x8] sm:$0xf]
        %v1466 = vld [vmem:[%s1344 + $0xc] sm:$0x1]
        %v1467 = vld [vmem:[%s1344 + $0x10] sm:$0xf]
        %v1468 = vld [vmem:[%s1344 + $0x14] sm:$0x1]
        %v1469 = vld [vmem:[%s1344 + $0x18] sm:$0xf]
        %v1470 = vld [vmem:[%s1344 + $0x1c] sm:$0x1]
        %v1471 = vld [vmem:[%s1344 + $0x20] sm:$0xf]
        %v1472 = vld [vmem:[%s1344 + $0x24] sm:$0x1]
        %v1473 = vld [vmem:[%s1344 + $0x28] sm:$0xf]
        %v1474 = vld [vmem:[%s1344 + $0x2c] sm:$0x1]
        %v1475 = vld [vmem:[%s1344 + $0x30] sm:$0xf]
        %v1476 = vld [vmem:[%s1344 + $0x34] sm:$0x1]
        %v1477 = vld [vmem:[%s1344 + $0x38] sm:$0xf]
        %v1478 = vld [vmem:[%s1344 + $0x3c] sm:$0x1]
        %v1480 = vshrl.u32 %v1463, 16
        %v1482 = vrot.slane %v1480, 4
        %v1483 = vshll.u32 %v1463, 16
        %v1485 = vrot.slane %v1483, 5
        %v1486 = vor.u32 %v1482, %v1485
        %v1487 = vrot.slane %v1486, 4
        %v1489 = vshll.u32 %v1464, 16
        %v1491 = vrot.slane %v1489, 5
        %v1492 = vsel %vm367, %v1487, %v1491
        %v1494 = vshrl.u32 %v1465, 16
        %v1496 = vrot.slane %v1494, 4
        %v1497 = vshll.u32 %v1465, 16
        %v1499 = vrot.slane %v1497, 5
        %v1500 = vor.u32 %v1496, %v1499
        %v1501 = vrot.slane %v1500, 4
        %v1503 = vshll.u32 %v1466, 16
        %v1505 = vrot.slane %v1503, 5
        %v1506 = vsel %vm367, %v1501, %v1505
        %v1508 = vshrl.u32 %v1467, 16
        %v1510 = vrot.slane %v1508, 4
        %v1511 = vshll.u32 %v1467, 16
        %v1513 = vrot.slane %v1511, 5
        %v1514 = vor.u32 %v1510, %v1513
        %v1515 = vrot.slane %v1514, 4
        %v1517 = vshll.u32 %v1468, 16
        %v1519 = vrot.slane %v1517, 5
        %v1520 = vsel %vm367, %v1515, %v1519
        %v1522 = vshrl.u32 %v1469, 16
        %v1524 = vrot.slane %v1522, 4
        %v1525 = vshll.u32 %v1469, 16
        %v1527 = vrot.slane %v1525, 5
        %v1528 = vor.u32 %v1524, %v1527
        %v1529 = vrot.slane %v1528, 4
        %v1531 = vshll.u32 %v1470, 16
        %v1533 = vrot.slane %v1531, 5
        %v1534 = vsel %vm367, %v1529, %v1533
        %v1536 = vshrl.u32 %v1471, 16
        %v1538 = vrot.slane %v1536, 4
        %v1539 = vshll.u32 %v1471, 16
        %v1541 = vrot.slane %v1539, 5
        %v1542 = vor.u32 %v1538, %v1541
        %v1543 = vrot.slane %v1542, 4
        %v1545 = vshll.u32 %v1472, 16
        %v1547 = vrot.slane %v1545, 5
        %v1548 = vsel %vm367, %v1543, %v1547
        %v1550 = vshrl.u32 %v1473, 16
        %v1552 = vrot.slane %v1550, 4
        %v1553 = vshll.u32 %v1473, 16
        %v1555 = vrot.slane %v1553, 5
        %v1556 = vor.u32 %v1552, %v1555
        %v1557 = vrot.slane %v1556, 4
        %v1559 = vshll.u32 %v1474, 16
        %v1561 = vrot.slane %v1559, 5
        %v1562 = vsel %vm367, %v1557, %v1561
        %v1564 = vshrl.u32 %v1475, 16
        %v1566 = vrot.slane %v1564, 4
        %v1567 = vshll.u32 %v1475, 16
        %v1569 = vrot.slane %v1567, 5
        %v1570 = vor.u32 %v1566, %v1569
        %v1571 = vrot.slane %v1570, 4
        %v1573 = vshll.u32 %v1476, 16
        %v1575 = vrot.slane %v1573, 5
        %v1576 = vsel %vm367, %v1571, %v1575
        %v1578 = vshrl.u32 %v1477, 16
        %v1580 = vrot.slane %v1578, 4
        %v1581 = vshll.u32 %v1477, 16
        %v1583 = vrot.slane %v1581, 5
        %v1584 = vor.u32 %v1580, %v1583
        %v1585 = vrot.slane %v1584, 4
        %v1587 = vshll.u32 %v1478, 16
        %v1589 = vrot.slane %v1587, 5
        %v1590 = vsel %vm367, %v1585, %v1589
        %s1591 = scalar_lea.vmem %s3, 14
        %v1592 = vld [vmem:[%s1591] sm:$0x3]
        %v1593 = vunpack.c.l.b16 %v1492
        %v1594 = vunpack.c.l.b16 %v1506
        %v1595 = vunpack.c.l.b16 %v1520
        %v1596 = vunpack.c.l.b16 %v1534
        %v1597 = vunpack.c.l.b16 %v1548
        %v1598 = vunpack.c.l.b16 %v1562
        %v1599 = vunpack.c.l.b16 %v1576
        %v1600 = vunpack.c.l.b16 %v1590
        %v1601 = vpack.c.b16 %v1594, %v1593
        %v1602 = vpack.c.b16 %v1596, %v1595
        %v1603 = vpack.c.b16 %v1598, %v1597
        %v1604 = vpack.c.b16 %v1600, %v1599
        %v1606 = vsel %vm494, %v1601, 0
        %v1609 = vsel %vm494, %v1602, 0
        %v1612 = vsel %vm494, %v1603, 0
        %v1615 = vsel %vm494, %v1604, 0
        %v1618 = vsel %vm507, %v1592, 0
        %1620 = vmatprep.subr.bf16.mxu0 0
        %1621 = vmatpush1.bf16.msra.mxu0 %v1618
        %1622 = vmatprep.subr.bf16.mxu0 0
        %1623 = vmatpush1.bf16.msra.mxu0 0
        %1624 = vmatprep.subr.bf16.mxu0 0
        %1625 = vmatpush1.bf16.msra.mxu0 0
        %1626 = vmatprep.subr.bf16.mxu0 0
        %1627 = vmatpush1.bf16.msra.mxu0 0
        %1628 = vmatprep.subr.bf16.mxu0 0
        %1629 = vmatpush1.bf16.msra.mxu0 0
        %1630 = vmatprep.subr.bf16.mxu0 0
        %1631 = vmatpush1.bf16.msra.mxu0 0
        %1632 = vmatprep.subr.bf16.mxu0 0
        %1633 = vmatpush1.bf16.msra.mxu0 0
        %1634 = vmatprep.subr.bf16.mxu0 0
        %1635 = vmatpush1.bf16.msra.mxu0 0
        %1636 = vmatprep.subr.bf16.mxu0 0
        %1637 = vmatpush1.bf16.msra.mxu0 0
        %1638 = vmatprep.subr.bf16.mxu0 0
        %1639 = vmatpush1.bf16.msra.mxu0 0
        %1640 = vmatprep.subr.bf16.mxu0 0
        %1641 = vmatpush1.bf16.msra.mxu0 0
        %1642 = vmatprep.subr.bf16.mxu0 0
        %1643 = vmatpush1.bf16.msra.mxu0 0
        %1644 = vmatprep.subr.bf16.mxu0 0
        %1645 = vmatpush1.bf16.msra.mxu0 0
        %1646 = vmatprep.subr.bf16.mxu0 0
        %1647 = vmatpush1.bf16.msra.mxu0 0
        %1648 = vmatprep.subr.bf16.mxu0 0
        %1649 = vmatpush1.bf16.msra.mxu0 0
        %1650 = vmatprep.subr.bf16.mxu0 0
        %1651 = vmatpush1.bf16.msra.mxu0 0
        %1652 = vmatprep.mubr.bf16.mxu0 0
        %1653 = vmatmul.mubr.bf16.gmra.mrb[0].mxu0 %v1606
        %v1654 = vpop.f32.mrb[0].mxu0
        %v1655 = vadd.f32 0.0, %v1654
        %v1656 = vpop.f32.mrb[0].mxu0
        %v1657 = vpop.f32.mrb[0].mxu0
        %v1658 = vadd.f32 0.0, %v1657
        %v1659 = vpop.f32.mrb[0].mxu0
        %1660 = vmatprep.mubr.bf16.mxu0 0
        %1661 = vmatmul.mubr.bf16.gmra.mrb[0].mxu0 %v1609
        %v1662 = vpop.f32.mrb[0].mxu0
        %v1663 = vadd.f32 0.0, %v1662
        %v1664 = vpop.f32.mrb[0].mxu0
        %v1665 = vpop.f32.mrb[0].mxu0
        %v1666 = vadd.f32 0.0, %v1665
        %v1667 = vpop.f32.mrb[0].mxu0
        %1668 = vmatprep.mubr.bf16.mxu0 0
        %1669 = vmatmul.mubr.bf16.gmra.mrb[0].mxu0 %v1612
        %v1670 = vpop.f32.mrb[0].mxu0
        %v1671 = vadd.f32 0.0, %v1670
        %v1672 = vpop.f32.mrb[0].mxu0
        %v1673 = vpop.f32.mrb[0].mxu0
        %v1674 = vadd.f32 0.0, %v1673
        %v1675 = vpop.f32.mrb[0].mxu0
        %1676 = vmatprep.mubr.bf16.mxu0 0
        %1677 = vmatmul.mubr.bf16.gmra.mrb[0].mxu0 %v1615
        %v1678 = vpop.f32.mrb[0].mxu0
        %v1679 = vadd.f32 0.0, %v1678
        %v1680 = vpop.f32.mrb[0].mxu0
        %v1681 = vpop.f32.mrb[0].mxu0
        %v1682 = vadd.f32 0.0, %v1681
        %v1683 = vpop.f32.mrb[0].mxu0
        %1684 = vdwg.mxu0
        %v1685 = vadd.f32 %v1455, %v1655
        %v1686 = vadd.f32 %v1456, %v1658
        %v1687 = vadd.f32 %v1457, %v1663
        %v1688 = vadd.f32 %v1458, %v1666
        %v1689 = vadd.f32 %v1459, %v1671
        %v1690 = vadd.f32 %v1460, %v1674
        %v1691 = vadd.f32 %v1461, %v1679
        %v1692 = vadd.f32 %v1462, %v1682
        %v1693 = vld [vmem:[%s1344] sm:$0xe]
        %v1694 = vld [vmem:[%s1344 + $0x8] sm:$0xe]
        %v1695 = vld [vmem:[%s1344 + $0x10] sm:$0xe]
        %v1696 = vld [vmem:[%s1344 + $0x18] sm:$0xe]
        %v1697 = vld [vmem:[%s1344 + $0x20] sm:$0xe]
        %v1698 = vld [vmem:[%s1344 + $0x28] sm:$0xe]
        %v1699 = vld [vmem:[%s1344 + $0x30] sm:$0xe]
        %v1700 = vld [vmem:[%s1344 + $0x38] sm:$0xe]
        %v1717 = vrot.slane %v1693, 5
        %v1718 = vrot.slane %v1717, 4
        %v1719 = vrot.slane %v1464, 5
        %v1720 = vsel %vm702, %v1718, %v1719
        %v1721 = vrot.slane %v1694, 5
        %v1722 = vrot.slane %v1721, 4
        %v1723 = vrot.slane %v1466, 5
        %v1724 = vsel %vm702, %v1722, %v1723
        %v1725 = vrot.slane %v1695, 5
        %v1726 = vrot.slane %v1725, 4
        %v1727 = vrot.slane %v1468, 5
        %v1728 = vsel %vm702, %v1726, %v1727
        %v1729 = vrot.slane %v1696, 5
        %v1730 = vrot.slane %v1729, 4
        %v1731 = vrot.slane %v1470, 5
        %v1732 = vsel %vm702, %v1730, %v1731
        %v1733 = vrot.slane %v1697, 5
        %v1734 = vrot.slane %v1733, 4
        %v1735 = vrot.slane %v1472, 5
        %v1736 = vsel %vm702, %v1734, %v1735
        %v1737 = vrot.slane %v1698, 5
        %v1738 = vrot.slane %v1737, 4
        %v1739 = vrot.slane %v1474, 5
        %v1740 = vsel %vm702, %v1738, %v1739
        %v1741 = vrot.slane %v1699, 5
        %v1742 = vrot.slane %v1741, 4
        %v1743 = vrot.slane %v1476, 5
        %v1744 = vsel %vm702, %v1742, %v1743
        %v1745 = vrot.slane %v1700, 5
        %v1746 = vrot.slane %v1745, 4
        %v1747 = vrot.slane %v1478, 5
        %v1748 = vsel %vm702, %v1746, %v1747
        %s1749 = scalar_lea.vmem %s3, 16
        %v1750 = vld [vmem:[%s1749] sm:$0x3]
        %v1751 = vunpack.c.l.b16 %v1720
        %v1752 = vunpack.c.l.b16 %v1724
        %v1753 = vunpack.c.l.b16 %v1728
        %v1754 = vunpack.c.l.b16 %v1732
        %v1755 = vunpack.c.l.b16 %v1736
        %v1756 = vunpack.c.l.b16 %v1740
        %v1757 = vunpack.c.l.b16 %v1744
        %v1758 = vunpack.c.l.b16 %v1748
        %v1759 = vpack.c.b16 %v1752, %v1751
        %v1760 = vpack.c.b16 %v1754, %v1753
        %v1761 = vpack.c.b16 %v1756, %v1755
        %v1762 = vpack.c.b16 %v1758, %v1757
        %v1764 = vsel %vm494, %v1759, 0
        %v1767 = vsel %vm494, %v1760, 0
        %v1770 = vsel %vm494, %v1761, 0
        %v1773 = vsel %vm494, %v1762, 0
        %v1776 = vsel %vm507, %v1750, 0
        %1778 = vmatprep.subr.bf16.mxu0 0
        %1779 = vmatpush1.bf16.msra.mxu0 %v1776
        %1780 = vmatprep.subr.bf16.mxu0 0
        %1781 = vmatpush1.bf16.msra.mxu0 0
        %1782 = vmatprep.subr.bf16.mxu0 0
        %1783 = vmatpush1.bf16.msra.mxu0 0
        %1784 = vmatprep.subr.bf16.mxu0 0
        %1785 = vmatpush1.bf16.msra.mxu0 0
        %1786 = vmatprep.subr.bf16.mxu0 0
        %1787 = vmatpush1.bf16.msra.mxu0 0
        %1788 = vmatprep.subr.bf16.mxu0 0
        %1789 = vmatpush1.bf16.msra.mxu0 0
        %1790 = vmatprep.subr.bf16.mxu0 0
        %1791 = vmatpush1.bf16.msra.mxu0 0
        %1792 = vmatprep.subr.bf16.mxu0 0
        %1793 = vmatpush1.bf16.msra.mxu0 0
        %1794 = vmatprep.subr.bf16.mxu0 0
        %1795 = vmatpush1.bf16.msra.mxu0 0
        %1796 = vmatprep.subr.bf16.mxu0 0
        %1797 = vmatpush1.bf16.msra.mxu0 0
        %1798 = vmatprep.subr.bf16.mxu0 0
        %1799 = vmatpush1.bf16.msra.mxu0 0
        %1800 = vmatprep.subr.bf16.mxu0 0
        %1801 = vmatpush1.bf16.msra.mxu0 0
        %1802 = vmatprep.subr.bf16.mxu0 0
        %1803 = vmatpush1.bf16.msra.mxu0 0
        %1804 = vmatprep.subr.bf16.mxu0 0
        %1805 = vmatpush1.bf16.msra.mxu0 0
        %1806 = vmatprep.subr.bf16.mxu0 0
        %1807 = vmatpush1.bf16.msra.mxu0 0
        %1808 = vmatprep.subr.bf16.mxu0 0
        %1809 = vmatpush1.bf16.msra.mxu0 0
        %1810 = vmatprep.mubr.bf16.mxu0 0
        %1811 = vmatmul.mubr.bf16.gmra.mrb[0].mxu0 %v1764
        %v1812 = vpop.f32.mrb[0].mxu0
        %v1813 = vadd.f32 0.0, %v1812
        %v1814 = vpop.f32.mrb[0].mxu0
        %v1815 = vpop.f32.mrb[0].mxu0
        %v1816 = vadd.f32 0.0, %v1815
        %v1817 = vpop.f32.mrb[0].mxu0
        %1818 = vmatprep.mubr.bf16.mxu0 0
        %1819 = vmatmul.mubr.bf16.gmra.mrb[0].mxu0 %v1767
        %v1820 = vpop.f32.mrb[0].mxu0
        %v1821 = vadd.f32 0.0, %v1820
        %v1822 = vpop.f32.mrb[0].mxu0
        %v1823 = vpop.f32.mrb[0].mxu0
        %v1824 = vadd.f32 0.0, %v1823
        %v1825 = vpop.f32.mrb[0].mxu0
        %1826 = vmatprep.mubr.bf16.mxu0 0
        %1827 = vmatmul.mubr.bf16.gmra.mrb[0].mxu0 %v1770
        %v1828 = vpop.f32.mrb[0].mxu0
        %v1829 = vadd.f32 0.0, %v1828
        %v1830 = vpop.f32.mrb[0].mxu0
        %v1831 = vpop.f32.mrb[0].mxu0
        %v1832 = vadd.f32 0.0, %v1831
        %v1833 = vpop.f32.mrb[0].mxu0
        %1834 = vmatprep.mubr.bf16.mxu0 0
        %1835 = vmatmul.mubr.bf16.gmra.mrb[0].mxu0 %v1773
        %v1836 = vpop.f32.mrb[0].mxu0
        %v1837 = vadd.f32 0.0, %v1836
        %v1838 = vpop.f32.mrb[0].mxu0
        %v1839 = vpop.f32.mrb[0].mxu0
        %v1840 = vadd.f32 0.0, %v1839
        %v1841 = vpop.f32.mrb[0].mxu0
        %1842 = vdwg.mxu0
        %v1843 = vadd.f32 %v1685, %v1813
        %v1844 = vadd.f32 %v1686, %v1816
        %v1845 = vadd.f32 %v1687, %v1821
        %v1846 = vadd.f32 %v1688, %v1824
        %v1847 = vadd.f32 %v1689, %v1829
        %v1848 = vadd.f32 %v1690, %v1832
        %v1849 = vadd.f32 %v1691, %v1837
        %v1850 = vadd.f32 %v1692, %v1840
        %v1851 = vld [vmem:[%s333] sm:$0xf]
        %v1852 = vld [vmem:[%s333 + $0x8] sm:$0xf]
        %v1853 = vld [vmem:[%s333 + $0x10] sm:$0xf]
        %v1854 = vld [vmem:[%s333 + $0x18] sm:$0xf]
        %v1855 = vld [vmem:[%s333 + $0x20] sm:$0xf]
        %v1856 = vld [vmem:[%s333 + $0x28] sm:$0xf]
        %v1857 = vld [vmem:[%s333 + $0x30] sm:$0xf]
        %v1858 = vld [vmem:[%s333 + $0x38] sm:$0xf]
        %s1859 = scalar_lea.vmem %s3, 18
        %v1860 = vld [vmem:[%s1859] sm:$0x3]
        %v1869 = vunpack.c.l.b16 %v1851
        %v1870 = vunpack.c.l.b16 %v1852
        %v1871 = vunpack.c.l.b16 %v1853
        %v1872 = vunpack.c.l.b16 %v1854
        %v1873 = vunpack.c.l.b16 %v1855
        %v1874 = vunpack.c.l.b16 %v1856
        %v1875 = vunpack.c.l.b16 %v1857
        %v1876 = vunpack.c.l.b16 %v1858
        %v1877 = vpack.c.b16 %v1870, %v1869
        %v1878 = vpack.c.b16 %v1872, %v1871
        %v1879 = vpack.c.b16 %v1874, %v1873
        %v1880 = vpack.c.b16 %v1876, %v1875
        %v1882 = vsel %vm494, %v1877, 0
        %v1885 = vsel %vm494, %v1878, 0
        %v1888 = vsel %vm494, %v1879, 0
        %v1891 = vsel %vm494, %v1880, 0
        %v1894 = vsel %vm507, %v1860, 0
        %1896 = vmatprep.subr.bf16.mxu0 0
        %1897 = vmatpush1.bf16.msra.mxu0 %v1894
        %1898 = vmatprep.subr.bf16.mxu0 0
        %1899 = vmatpush1.bf16.msra.mxu0 0
        %1900 = vmatprep.subr.bf16.mxu0 0
        %1901 = vmatpush1.bf16.msra.mxu0 0
        %1902 = vmatprep.subr.bf16.mxu0 0
        %1903 = vmatpush1.bf16.msra.mxu0 0
        %1904 = vmatprep.subr.bf16.mxu0 0
        %1905 = vmatpush1.bf16.msra.mxu0 0
        %1906 = vmatprep.subr.bf16.mxu0 0
        %1907 = vmatpush1.bf16.msra.mxu0 0
        %1908 = vmatprep.subr.bf16.mxu0 0
        %1909 = vmatpush1.bf16.msra.mxu0 0
        %1910 = vmatprep.subr.bf16.mxu0 0
        %1911 = vmatpush1.bf16.msra.mxu0 0
        %1912 = vmatprep.subr.bf16.mxu0 0
        %1913 = vmatpush1.bf16.msra.mxu0 0
        %1914 = vmatprep.subr.bf16.mxu0 0
        %1915 = vmatpush1.bf16.msra.mxu0 0
        %1916 = vmatprep.subr.bf16.mxu0 0
        %1917 = vmatpush1.bf16.msra.mxu0 0
        %1918 = vmatprep.subr.bf16.mxu0 0
        %1919 = vmatpush1.bf16.msra.mxu0 0
        %1920 = vmatprep.subr.bf16.mxu0 0
        %1921 = vmatpush1.bf16.msra.mxu0 0
        %1922 = vmatprep.subr.bf16.mxu0 0
        %1923 = vmatpush1.bf16.msra.mxu0 0
        %1924 = vmatprep.subr.bf16.mxu0 0
        %1925 = vmatpush1.bf16.msra.mxu0 0
        %1926 = vmatprep.subr.bf16.mxu0 0
        %1927 = vmatpush1.bf16.msra.mxu0 0
        %1928 = vmatprep.mubr.bf16.mxu0 0
        %1929 = vmatmul.mubr.bf16.gmra.mrb[0].mxu0 %v1882
        %v1930 = vpop.f32.mrb[0].mxu0
        %v1931 = vadd.f32 0.0, %v1930
        %v1932 = vpop.f32.mrb[0].mxu0
        %v1933 = vpop.f32.mrb[0].mxu0
        %v1934 = vadd.f32 0.0, %v1933
        %v1935 = vpop.f32.mrb[0].mxu0
        %1936 = vmatprep.mubr.bf16.mxu0 0
        %1937 = vmatmul.mubr.bf16.gmra.mrb[0].mxu0 %v1885
        %v1938 = vpop.f32.mrb[0].mxu0
        %v1939 = vadd.f32 0.0, %v1938
        %v1940 = vpop.f32.mrb[0].mxu0
        %v1941 = vpop.f32.mrb[0].mxu0
        %v1942 = vadd.f32 0.0, %v1941
        %v1943 = vpop.f32.mrb[0].mxu0
        %1944 = vmatprep.mubr.bf16.mxu0 0
        %1945 = vmatmul.mubr.bf16.gmra.mrb[0].mxu0 %v1888
        %v1946 = vpop.f32.mrb[0].mxu0
        %v1947 = vadd.f32 0.0, %v1946
        %v1948 = vpop.f32.mrb[0].mxu0
        %v1949 = vpop.f32.mrb[0].mxu0
        %v1950 = vadd.f32 0.0, %v1949
        %v1951 = vpop.f32.mrb[0].mxu0
        %1952 = vmatprep.mubr.bf16.mxu0 0
        %1953 = vmatmul.mubr.bf16.gmra.mrb[0].mxu0 %v1891
        %v1954 = vpop.f32.mrb[0].mxu0
        %v1955 = vadd.f32 0.0, %v1954
        %v1956 = vpop.f32.mrb[0].mxu0
        %v1957 = vpop.f32.mrb[0].mxu0
        %v1958 = vadd.f32 0.0, %v1957
        %v1959 = vpop.f32.mrb[0].mxu0
        %1960 = vdwg.mxu0
        %v1961 = vadd.f32 %v1843, %v1931
        %v1962 = vadd.f32 %v1844, %v1934
        %v1963 = vadd.f32 %v1845, %v1939
        %v1964 = vadd.f32 %v1846, %v1942
        %v1965 = vadd.f32 %v1847, %v1947
        %v1966 = vadd.f32 %v1848, %v1950
        %v1967 = vadd.f32 %v1849, %v1955
        %v1968 = vadd.f32 %v1850, %v1958
        %v1969 = vld [vmem:[%s333] sm:$0xf]
        %v1970 = vld [vmem:[%s333 + $0x4] sm:$0x1]
        %v1971 = vld [vmem:[%s333 + $0x8] sm:$0xf]
        %v1972 = vld [vmem:[%s333 + $0xc] sm:$0x1]
        %v1973 = vld [vmem:[%s333 + $0x10] sm:$0xf]
        %v1974 = vld [vmem:[%s333 + $0x14] sm:$0x1]
        %v1975 = vld [vmem:[%s333 + $0x18] sm:$0xf]
        %v1976 = vld [vmem:[%s333 + $0x1c] sm:$0x1]
        %v1977 = vld [vmem:[%s333 + $0x20] sm:$0xf]
        %v1978 = vld [vmem:[%s333 + $0x24] sm:$0x1]
        %v1979 = vld [vmem:[%s333 + $0x28] sm:$0xf]
        %v1980 = vld [vmem:[%s333 + $0x2c] sm:$0x1]
        %v1981 = vld [vmem:[%s333 + $0x30] sm:$0xf]
        %v1982 = vld [vmem:[%s333 + $0x34] sm:$0x1]
        %v1983 = vld [vmem:[%s333 + $0x38] sm:$0xf]
        %v1984 = vld [vmem:[%s333 + $0x3c] sm:$0x1]
        %v1986 = vshrl.u32 %v1969, 16
        %v1988 = vrot.slane %v1986, 4
        %v1989 = vshll.u32 %v1969, 16
        %v1991 = vrot.slane %v1989, 5
        %v1992 = vor.u32 %v1988, %v1991
        %v1993 = vrot.slane %v1992, 4
        %v1995 = vshll.u32 %v1970, 16
        %v1997 = vrot.slane %v1995, 5
        %v1998 = vsel %vm367, %v1993, %v1997
        %v2000 = vshrl.u32 %v1971, 16
        %v2002 = vrot.slane %v2000, 4
        %v2003 = vshll.u32 %v1971, 16
        %v2005 = vrot.slane %v2003, 5
        %v2006 = vor.u32 %v2002, %v2005
        %v2007 = vrot.slane %v2006, 4
        %v2009 = vshll.u32 %v1972, 16
        %v2011 = vrot.slane %v2009, 5
        %v2012 = vsel %vm367, %v2007, %v2011
        %v2014 = vshrl.u32 %v1973, 16
        %v2016 = vrot.slane %v2014, 4
        %v2017 = vshll.u32 %v1973, 16
        %v2019 = vrot.slane %v2017, 5
        %v2020 = vor.u32 %v2016, %v2019
        %v2021 = vrot.slane %v2020, 4
        %v2023 = vshll.u32 %v1974, 16
        %v2025 = vrot.slane %v2023, 5
        %v2026 = vsel %vm367, %v2021, %v2025
        %v2028 = vshrl.u32 %v1975, 16
        %v2030 = vrot.slane %v2028, 4
        %v2031 = vshll.u32 %v1975, 16
        %v2033 = vrot.slane %v2031, 5
        %v2034 = vor.u32 %v2030, %v2033
        %v2035 = vrot.slane %v2034, 4
        %v2037 = vshll.u32 %v1976, 16
        %v2039 = vrot.slane %v2037, 5
        %v2040 = vsel %vm367, %v2035, %v2039
        %v2042 = vshrl.u32 %v1977, 16
        %v2044 = vrot.slane %v2042, 4
        %v2045 = vshll.u32 %v1977, 16
        %v2047 = vrot.slane %v2045, 5
        %v2048 = vor.u32 %v2044, %v2047
        %v2049 = vrot.slane %v2048, 4
        %v2051 = vshll.u32 %v1978, 16
        %v2053 = vrot.slane %v2051, 5
        %v2054 = vsel %vm367, %v2049, %v2053
        %v2056 = vshrl.u32 %v1979, 16
        %v2058 = vrot.slane %v2056, 4
        %v2059 = vshll.u32 %v1979, 16
        %v2061 = vrot.slane %v2059, 5
        %v2062 = vor.u32 %v2058, %v2061
        %v2063 = vrot.slane %v2062, 4
        %v2065 = vshll.u32 %v1980, 16
        %v2067 = vrot.slane %v2065, 5
        %v2068 = vsel %vm367, %v2063, %v2067
        %v2070 = vshrl.u32 %v1981, 16
        %v2072 = vrot.slane %v2070, 4
        %v2073 = vshll.u32 %v1981, 16
        %v2075 = vrot.slane %v2073, 5
        %v2076 = vor.u32 %v2072, %v2075
        %v2077 = vrot.slane %v2076, 4
        %v2079 = vshll.u32 %v1982, 16
        %v2081 = vrot.slane %v2079, 5
        %v2082 = vsel %vm367, %v2077, %v2081
        %v2084 = vshrl.u32 %v1983, 16
        %v2086 = vrot.slane %v2084, 4
        %v2087 = vshll.u32 %v1983, 16
        %v2089 = vrot.slane %v2087, 5
        %v2090 = vor.u32 %v2086, %v2089
        %v2091 = vrot.slane %v2090, 4
        %v2093 = vshll.u32 %v1984, 16
        %v2095 = vrot.slane %v2093, 5
        %v2096 = vsel %vm367, %v2091, %v2095
        %s2097 = scalar_lea.vmem %s3, 20
        %v2098 = vld [vmem:[%s2097] sm:$0x3]
        %v2099 = vunpack.c.l.b16 %v1998
        %v2100 = vunpack.c.l.b16 %v2012
        %v2101 = vunpack.c.l.b16 %v2026
        %v2102 = vunpack.c.l.b16 %v2040
        %v2103 = vunpack.c.l.b16 %v2054
        %v2104 = vunpack.c.l.b16 %v2068
        %v2105 = vunpack.c.l.b16 %v2082
        %v2106 = vunpack.c.l.b16 %v2096
        %v2107 = vpack.c.b16 %v2100, %v2099
        %v2108 = vpack.c.b16 %v2102, %v2101
        %v2109 = vpack.c.b16 %v2104, %v2103
        %v2110 = vpack.c.b16 %v2106, %v2105
        %v2112 = vsel %vm494, %v2107, 0
        %v2115 = vsel %vm494, %v2108, 0
        %v2118 = vsel %vm494, %v2109, 0
        %v2121 = vsel %vm494, %v2110, 0
        %v2124 = vsel %vm507, %v2098, 0
        %2126 = vmatprep.subr.bf16.mxu0 0
        %2127 = vmatpush1.bf16.msra.mxu0 %v2124
        %2128 = vmatprep.subr.bf16.mxu0 0
        %2129 = vmatpush1.bf16.msra.mxu0 0
        %2130 = vmatprep.subr.bf16.mxu0 0
        %2131 = vmatpush1.bf16.msra.mxu0 0
        %2132 = vmatprep.subr.bf16.mxu0 0
        %2133 = vmatpush1.bf16.msra.mxu0 0
        %2134 = vmatprep.subr.bf16.mxu0 0
        %2135 = vmatpush1.bf16.msra.mxu0 0
        %2136 = vmatprep.subr.bf16.mxu0 0
        %2137 = vmatpush1.bf16.msra.mxu0 0
        %2138 = vmatprep.subr.bf16.mxu0 0
        %2139 = vmatpush1.bf16.msra.mxu0 0
        %2140 = vmatprep.subr.bf16.mxu0 0
        %2141 = vmatpush1.bf16.msra.mxu0 0
        %2142 = vmatprep.subr.bf16.mxu0 0
        %2143 = vmatpush1.bf16.msra.mxu0 0
        %2144 = vmatprep.subr.bf16.mxu0 0
        %2145 = vmatpush1.bf16.msra.mxu0 0
        %2146 = vmatprep.subr.bf16.mxu0 0
        %2147 = vmatpush1.bf16.msra.mxu0 0
        %2148 = vmatprep.subr.bf16.mxu0 0
        %2149 = vmatpush1.bf16.msra.mxu0 0
        %2150 = vmatprep.subr.bf16.mxu0 0
        %2151 = vmatpush1.bf16.msra.mxu0 0
        %2152 = vmatprep.subr.bf16.mxu0 0
        %2153 = vmatpush1.bf16.msra.mxu0 0
        %2154 = vmatprep.subr.bf16.mxu0 0
        %2155 = vmatpush1.bf16.msra.mxu0 0
        %2156 = vmatprep.subr.bf16.mxu0 0
        %2157 = vmatpush1.bf16.msra.mxu0 0
        %2158 = vmatprep.mubr.bf16.mxu0 0
        %2159 = vmatmul.mubr.bf16.gmra.mrb[0].mxu0 %v2112
        %v2160 = vpop.f32.mrb[0].mxu0
        %v2161 = vadd.f32 0.0, %v2160
        %v2162 = vpop.f32.mrb[0].mxu0
        %v2163 = vpop.f32.mrb[0].mxu0
        %v2164 = vadd.f32 0.0, %v2163
        %v2165 = vpop.f32.mrb[0].mxu0
        %2166 = vmatprep.mubr.bf16.mxu0 0
        %2167 = vmatmul.mubr.bf16.gmra.mrb[0].mxu0 %v2115
        %v2168 = vpop.f32.mrb[0].mxu0
        %v2169 = vadd.f32 0.0, %v2168
        %v2170 = vpop.f32.mrb[0].mxu0
        %v2171 = vpop.f32.mrb[0].mxu0
        %v2172 = vadd.f32 0.0, %v2171
        %v2173 = vpop.f32.mrb[0].mxu0
        %2174 = vmatprep.mubr.bf16.mxu0 0
        %2175 = vmatmul.mubr.bf16.gmra.mrb[0].mxu0 %v2118
        %v2176 = vpop.f32.mrb[0].mxu0
        %v2177 = vadd.f32 0.0, %v2176
        %v2178 = vpop.f32.mrb[0].mxu0
        %v2179 = vpop.f32.mrb[0].mxu0
        %v2180 = vadd.f32 0.0, %v2179
        %v2181 = vpop.f32.mrb[0].mxu0
        %2182 = vmatprep.mubr.bf16.mxu0 0
        %2183 = vmatmul.mubr.bf16.gmra.mrb[0].mxu0 %v2121
        %v2184 = vpop.f32.mrb[0].mxu0
        %v2185 = vadd.f32 0.0, %v2184
        %v2186 = vpop.f32.mrb[0].mxu0
        %v2187 = vpop.f32.mrb[0].mxu0
        %v2188 = vadd.f32 0.0, %v2187
        %v2189 = vpop.f32.mrb[0].mxu0
        %2190 = vdwg.mxu0
        %v2191 = vadd.f32 %v1961, %v2161
        %v2192 = vadd.f32 %v1962, %v2164
        %v2193 = vadd.f32 %v1963, %v2169
        %v2194 = vadd.f32 %v1964, %v2172
        %v2195 = vadd.f32 %v1965, %v2177
        %v2196 = vadd.f32 %v1966, %v2180
        %v2197 = vadd.f32 %v1967, %v2185
        %v2198 = vadd.f32 %v1968, %v2188
        %v2199 = vld [vmem:[%s333] sm:$0xe]
        %v2200 = vld [vmem:[%s333 + $0x8] sm:$0xe]
        %v2201 = vld [vmem:[%s333 + $0x10] sm:$0xe]
        %v2202 = vld [vmem:[%s333 + $0x18] sm:$0xe]
        %v2203 = vld [vmem:[%s333 + $0x20] sm:$0xe]
        %v2204 = vld [vmem:[%s333 + $0x28] sm:$0xe]
        %v2205 = vld [vmem:[%s333 + $0x30] sm:$0xe]
        %v2206 = vld [vmem:[%s333 + $0x38] sm:$0xe]
        %v2223 = vrot.slane %v2199, 5
        %v2224 = vrot.slane %v2223, 4
        %v2225 = vrot.slane %v1970, 5
        %v2226 = vsel %vm702, %v2224, %v2225
        %v2227 = vrot.slane %v2200, 5
        %v2228 = vrot.slane %v2227, 4
        %v2229 = vrot.slane %v1972, 5
        %v2230 = vsel %vm702, %v2228, %v2229
        %v2231 = vrot.slane %v2201, 5
        %v2232 = vrot.slane %v2231, 4
        %v2233 = vrot.slane %v1974, 5
        %v2234 = vsel %vm702, %v2232, %v2233
        %v2235 = vrot.slane %v2202, 5
        %v2236 = vrot.slane %v2235, 4
        %v2237 = vrot.slane %v1976, 5
        %v2238 = vsel %vm702, %v2236, %v2237
        %v2239 = vrot.slane %v2203, 5
        %v2240 = vrot.slane %v2239, 4
        %v2241 = vrot.slane %v1978, 5
        %v2242 = vsel %vm702, %v2240, %v2241
        %v2243 = vrot.slane %v2204, 5
        %v2244 = vrot.slane %v2243, 4
        %v2245 = vrot.slane %v1980, 5
        %v2246 = vsel %vm702, %v2244, %v2245
        %v2247 = vrot.slane %v2205, 5
        %v2248 = vrot.slane %v2247, 4
        %v2249 = vrot.slane %v1982, 5
        %v2250 = vsel %vm702, %v2248, %v2249
        %v2251 = vrot.slane %v2206, 5
        %v2252 = vrot.slane %v2251, 4
        %v2253 = vrot.slane %v1984, 5
        %v2254 = vsel %vm702, %v2252, %v2253
        %s2255 = scalar_lea.vmem %s3, 22
        %v2256 = vld [vmem:[%s2255] sm:$0x3]
        %v2257 = vunpack.c.l.b16 %v2226
        %v2258 = vunpack.c.l.b16 %v2230
        %v2259 = vunpack.c.l.b16 %v2234
        %v2260 = vunpack.c.l.b16 %v2238
        %v2261 = vunpack.c.l.b16 %v2242
        %v2262 = vunpack.c.l.b16 %v2246
        %v2263 = vunpack.c.l.b16 %v2250
        %v2264 = vunpack.c.l.b16 %v2254
        %v2265 = vpack.c.b16 %v2258, %v2257
        %v2266 = vpack.c.b16 %v2260, %v2259
        %v2267 = vpack.c.b16 %v2262, %v2261
        %v2268 = vpack.c.b16 %v2264, %v2263
        %v2270 = vsel %vm494, %v2265, 0
        %v2273 = vsel %vm494, %v2266, 0
        %v2276 = vsel %vm494, %v2267, 0
        %v2279 = vsel %vm494, %v2268, 0
        %v2282 = vsel %vm507, %v2256, 0
        %2284 = vmatprep.subr.bf16.mxu0 0
        %2285 = vmatpush1.bf16.msra.mxu0 %v2282
        %2286 = vmatprep.subr.bf16.mxu0 0
        %2287 = vmatpush1.bf16.msra.mxu0 0
        %2288 = vmatprep.subr.bf16.mxu0 0
        %2289 = vmatpush1.bf16.msra.mxu0 0
        %2290 = vmatprep.subr.bf16.mxu0 0
        %2291 = vmatpush1.bf16.msra.mxu0 0
        %2292 = vmatprep.subr.bf16.mxu0 0
        %2293 = vmatpush1.bf16.msra.mxu0 0
        %2294 = vmatprep.subr.bf16.mxu0 0
        %2295 = vmatpush1.bf16.msra.mxu0 0
        %2296 = vmatprep.subr.bf16.mxu0 0
        %2297 = vmatpush1.bf16.msra.mxu0 0
        %2298 = vmatprep.subr.bf16.mxu0 0
        %2299 = vmatpush1.bf16.msra.mxu0 0
        %2300 = vmatprep.subr.bf16.mxu0 0
        %2301 = vmatpush1.bf16.msra.mxu0 0
        %2302 = vmatprep.subr.bf16.mxu0 0
        %2303 = vmatpush1.bf16.msra.mxu0 0
        %2304 = vmatprep.subr.bf16.mxu0 0
        %2305 = vmatpush1.bf16.msra.mxu0 0
        %2306 = vmatprep.subr.bf16.mxu0 0
        %2307 = vmatpush1.bf16.msra.mxu0 0
        %2308 = vmatprep.subr.bf16.mxu0 0
        %2309 = vmatpush1.bf16.msra.mxu0 0
        %2310 = vmatprep.subr.bf16.mxu0 0
        %2311 = vmatpush1.bf16.msra.mxu0 0
        %2312 = vmatprep.subr.bf16.mxu0 0
        %2313 = vmatpush1.bf16.msra.mxu0 0
        %2314 = vmatprep.subr.bf16.mxu0 0
        %2315 = vmatpush1.bf16.msra.mxu0 0
        %2316 = vmatprep.mubr.bf16.mxu0 0
        %2317 = vmatmul.mubr.bf16.gmra.mrb[0].mxu0 %v2270
        %v2318 = vpop.f32.mrb[0].mxu0
        %v2319 = vadd.f32 0.0, %v2318
        %v2320 = vpop.f32.mrb[0].mxu0
        %v2321 = vpop.f32.mrb[0].mxu0
        %v2322 = vadd.f32 0.0, %v2321
        %v2323 = vpop.f32.mrb[0].mxu0
        %2324 = vmatprep.mubr.bf16.mxu0 0
        %2325 = vmatmul.mubr.bf16.gmra.mrb[0].mxu0 %v2273
        %v2326 = vpop.f32.mrb[0].mxu0
        %v2327 = vadd.f32 0.0, %v2326
        %v2328 = vpop.f32.mrb[0].mxu0
        %v2329 = vpop.f32.mrb[0].mxu0
        %v2330 = vadd.f32 0.0, %v2329
        %v2331 = vpop.f32.mrb[0].mxu0
        %2332 = vmatprep.mubr.bf16.mxu0 0
        %2333 = vmatmul.mubr.bf16.gmra.mrb[0].mxu0 %v2276
        %v2334 = vpop.f32.mrb[0].mxu0
        %v2335 = vadd.f32 0.0, %v2334
        %v2336 = vpop.f32.mrb[0].mxu0
        %v2337 = vpop.f32.mrb[0].mxu0
        %v2338 = vadd.f32 0.0, %v2337
        %v2339 = vpop.f32.mrb[0].mxu0
        %2340 = vmatprep.mubr.bf16.mxu0 0
        %2341 = vmatmul.mubr.bf16.gmra.mrb[0].mxu0 %v2279
        %v2342 = vpop.f32.mrb[0].mxu0
        %v2343 = vadd.f32 0.0, %v2342
        %v2344 = vpop.f32.mrb[0].mxu0
        %v2345 = vpop.f32.mrb[0].mxu0
        %v2346 = vadd.f32 0.0, %v2345
        %v2347 = vpop.f32.mrb[0].mxu0
        %2348 = vdwg.mxu0
        %v2349 = vadd.f32 %v2191, %v2319
        %v2350 = vadd.f32 %v2192, %v2322
        %v2351 = vadd.f32 %v2193, %v2327
        %v2352 = vadd.f32 %v2194, %v2330
        %v2353 = vadd.f32 %v2195, %v2335
        %v2354 = vadd.f32 %v2196, %v2338
        %v2355 = vadd.f32 %v2197, %v2343
        %v2356 = vadd.f32 %v2198, %v2346
        %s2357 = scalar_lea.vmem %s333, 8
        %v2358 = vld [vmem:[%s2357] sm:$0xf]
        %v2359 = vld [vmem:[%s2357 + $0x8] sm:$0xf]
        %v2360 = vld [vmem:[%s2357 + $0x10] sm:$0xf]
        %v2361 = vld [vmem:[%s2357 + $0x18] sm:$0xf]
        %v2362 = vld [vmem:[%s2357 + $0x20] sm:$0xf]
        %v2363 = vld [vmem:[%s2357 + $0x28] sm:$0xf]
        %v2364 = vld [vmem:[%s2357 + $0x30] sm:$0xf]
        %v2365 = vld [vmem:[%s2357 + $0x38] sm:$0xf]
        %s2366 = scalar_lea.vmem %s3, 24
        %v2367 = vld [vmem:[%s2366] sm:$0x3]
        %v2376 = vunpack.c.l.b16 %v2358
        %v2377 = vunpack.c.l.b16 %v2359
        %v2378 = vunpack.c.l.b16 %v2360
        %v2379 = vunpack.c.l.b16 %v2361
        %v2380 = vunpack.c.l.b16 %v2362
        %v2381 = vunpack.c.l.b16 %v2363
        %v2382 = vunpack.c.l.b16 %v2364
        %v2383 = vunpack.c.l.b16 %v2365
        %v2384 = vpack.c.b16 %v2377, %v2376
        %v2385 = vpack.c.b16 %v2379, %v2378
        %v2386 = vpack.c.b16 %v2381, %v2380
        %v2387 = vpack.c.b16 %v2383, %v2382
        %v2389 = vsel %vm494, %v2384, 0
        %v2392 = vsel %vm494, %v2385, 0
        %v2395 = vsel %vm494, %v2386, 0
        %v2398 = vsel %vm494, %v2387, 0
        %v2401 = vsel %vm507, %v2367, 0
        %2403 = vmatprep.subr.bf16.mxu0 0
        %2404 = vmatpush1.bf16.msra.mxu0 %v2401
        %2405 = vmatprep.subr.bf16.mxu0 0
        %2406 = vmatpush1.bf16.msra.mxu0 0
        %2407 = vmatprep.subr.bf16.mxu0 0
        %2408 = vmatpush1.bf16.msra.mxu0 0
        %2409 = vmatprep.subr.bf16.mxu0 0
        %2410 = vmatpush1.bf16.msra.mxu0 0
        %2411 = vmatprep.subr.bf16.mxu0 0
        %2412 = vmatpush1.bf16.msra.mxu0 0
        %2413 = vmatprep.subr.bf16.mxu0 0
        %2414 = vmatpush1.bf16.msra.mxu0 0
        %2415 = vmatprep.subr.bf16.mxu0 0
        %2416 = vmatpush1.bf16.msra.mxu0 0
        %2417 = vmatprep.subr.bf16.mxu0 0
        %2418 = vmatpush1.bf16.msra.mxu0 0
        %2419 = vmatprep.subr.bf16.mxu0 0
        %2420 = vmatpush1.bf16.msra.mxu0 0
        %2421 = vmatprep.subr.bf16.mxu0 0
        %2422 = vmatpush1.bf16.msra.mxu0 0
        %2423 = vmatprep.subr.bf16.mxu0 0
        %2424 = vmatpush1.bf16.msra.mxu0 0
        %2425 = vmatprep.subr.bf16.mxu0 0
        %2426 = vmatpush1.bf16.msra.mxu0 0
        %2427 = vmatprep.subr.bf16.mxu0 0
        %2428 = vmatpush1.bf16.msra.mxu0 0
        %2429 = vmatprep.subr.bf16.mxu0 0
        %2430 = vmatpush1.bf16.msra.mxu0 0
        %2431 = vmatprep.subr.bf16.mxu0 0
        %2432 = vmatpush1.bf16.msra.mxu0 0
        %2433 = vmatprep.subr.bf16.mxu0 0
        %2434 = vmatpush1.bf16.msra.mxu0 0
        %2435 = vmatprep.mubr.bf16.mxu0 0
        %2436 = vmatmul.mubr.bf16.gmra.mrb[0].mxu0 %v2389
        %v2437 = vpop.f32.mrb[0].mxu0
        %v2438 = vadd.f32 0.0, %v2437
        %v2439 = vpop.f32.mrb[0].mxu0
        %v2440 = vpop.f32.mrb[0].mxu0
        %v2441 = vadd.f32 0.0, %v2440
        %v2442 = vpop.f32.mrb[0].mxu0
        %2443 = vmatprep.mubr.bf16.mxu0 0
        %2444 = vmatmul.mubr.bf16.gmra.mrb[0].mxu0 %v2392
        %v2445 = vpop.f32.mrb[0].mxu0
        %v2446 = vadd.f32 0.0, %v2445
        %v2447 = vpop.f32.mrb[0].mxu0
        %v2448 = vpop.f32.mrb[0].mxu0
        %v2449 = vadd.f32 0.0, %v2448
        %v2450 = vpop.f32.mrb[0].mxu0
        %2451 = vmatprep.mubr.bf16.mxu0 0
        %2452 = vmatmul.mubr.bf16.gmra.mrb[0].mxu0 %v2395
        %v2453 = vpop.f32.mrb[0].mxu0
        %v2454 = vadd.f32 0.0, %v2453
        %v2455 = vpop.f32.mrb[0].mxu0
        %v2456 = vpop.f32.mrb[0].mxu0
        %v2457 = vadd.f32 0.0, %v2456
        %v2458 = vpop.f32.mrb[0].mxu0
        %2459 = vmatprep.mubr.bf16.mxu0 0
        %2460 = vmatmul.mubr.bf16.gmra.mrb[0].mxu0 %v2398
        %v2461 = vpop.f32.mrb[0].mxu0
        %v2462 = vadd.f32 0.0, %v2461
        %v2463 = vpop.f32.mrb[0].mxu0
        %v2464 = vpop.f32.mrb[0].mxu0
        %v2465 = vadd.f32 0.0, %v2464
        %v2466 = vpop.f32.mrb[0].mxu0
        %2467 = vdwg.mxu0
        %v2468 = vadd.f32 %v2349, %v2438
        %v2469 = vadd.f32 %v2350, %v2441
        %v2470 = vadd.f32 %v2351, %v2446
        %v2471 = vadd.f32 %v2352, %v2449
        %v2472 = vadd.f32 %v2353, %v2454
        %v2473 = vadd.f32 %v2354, %v2457
        %v2474 = vadd.f32 %v2355, %v2462
        %v2475 = vadd.f32 %v2356, %v2465
        %v2476 = vld [vmem:[%s2357] sm:$0xf]
        %v2477 = vld [vmem:[%s2357 + $0x4] sm:$0x1]
        %v2478 = vld [vmem:[%s2357 + $0x8] sm:$0xf]
        %v2479 = vld [vmem:[%s2357 + $0xc] sm:$0x1]
        %v2480 = vld [vmem:[%s2357 + $0x10] sm:$0xf]
        %v2481 = vld [vmem:[%s2357 + $0x14] sm:$0x1]
        %v2482 = vld [vmem:[%s2357 + $0x18] sm:$0xf]
        %v2483 = vld [vmem:[%s2357 + $0x1c] sm:$0x1]
        %v2484 = vld [vmem:[%s2357 + $0x20] sm:$0xf]
        %v2485 = vld [vmem:[%s2357 + $0x24] sm:$0x1]
        %v2486 = vld [vmem:[%s2357 + $0x28] sm:$0xf]
        %v2487 = vld [vmem:[%s2357 + $0x2c] sm:$0x1]
        %v2488 = vld [vmem:[%s2357 + $0x30] sm:$0xf]
        %v2489 = vld [vmem:[%s2357 + $0x34] sm:$0x1]
        %v2490 = vld [vmem:[%s2357 + $0x38] sm:$0xf]
        %v2491 = vld [vmem:[%s2357 + $0x3c] sm:$0x1]
        %v2493 = vshrl.u32 %v2476, 16
        %v2495 = vrot.slane %v2493, 4
        %v2496 = vshll.u32 %v2476, 16
        %v2498 = vrot.slane %v2496, 5
        %v2499 = vor.u32 %v2495, %v2498
        %v2500 = vrot.slane %v2499, 4
        %v2502 = vshll.u32 %v2477, 16
        %v2504 = vrot.slane %v2502, 5
        %v2505 = vsel %vm367, %v2500, %v2504
        %v2507 = vshrl.u32 %v2478, 16
        %v2509 = vrot.slane %v2507, 4
        %v2510 = vshll.u32 %v2478, 16
        %v2512 = vrot.slane %v2510, 5
        %v2513 = vor.u32 %v2509, %v2512
        %v2514 = vrot.slane %v2513, 4
        %v2516 = vshll.u32 %v2479, 16
        %v2518 = vrot.slane %v2516, 5
        %v2519 = vsel %vm367, %v2514, %v2518
        %v2521 = vshrl.u32 %v2480, 16
        %v2523 = vrot.slane %v2521, 4
        %v2524 = vshll.u32 %v2480, 16
        %v2526 = vrot.slane %v2524, 5
        %v2527 = vor.u32 %v2523, %v2526
        %v2528 = vrot.slane %v2527, 4
        %v2530 = vshll.u32 %v2481, 16
        %v2532 = vrot.slane %v2530, 5
        %v2533 = vsel %vm367, %v2528, %v2532
        %v2535 = vshrl.u32 %v2482, 16
        %v2537 = vrot.slane %v2535, 4
        %v2538 = vshll.u32 %v2482, 16
        %v2540 = vrot.slane %v2538, 5
        %v2541 = vor.u32 %v2537, %v2540
        %v2542 = vrot.slane %v2541, 4
        %v2544 = vshll.u32 %v2483, 16
        %v2546 = vrot.slane %v2544, 5
        %v2547 = vsel %vm367, %v2542, %v2546
        %v2549 = vshrl.u32 %v2484, 16
        %v2551 = vrot.slane %v2549, 4
        %v2552 = vshll.u32 %v2484, 16
        %v2554 = vrot.slane %v2552, 5
        %v2555 = vor.u32 %v2551, %v2554
        %v2556 = vrot.slane %v2555, 4
        %v2558 = vshll.u32 %v2485, 16
        %v2560 = vrot.slane %v2558, 5
        %v2561 = vsel %vm367, %v2556, %v2560
        %v2563 = vshrl.u32 %v2486, 16
        %v2565 = vrot.slane %v2563, 4
        %v2566 = vshll.u32 %v2486, 16
        %v2568 = vrot.slane %v2566, 5
        %v2569 = vor.u32 %v2565, %v2568
        %v2570 = vrot.slane %v2569, 4
        %v2572 = vshll.u32 %v2487, 16
        %v2574 = vrot.slane %v2572, 5
        %v2575 = vsel %vm367, %v2570, %v2574
        %v2577 = vshrl.u32 %v2488, 16
        %v2579 = vrot.slane %v2577, 4
        %v2580 = vshll.u32 %v2488, 16
        %v2582 = vrot.slane %v2580, 5
        %v2583 = vor.u32 %v2579, %v2582
        %v2584 = vrot.slane %v2583, 4
        %v2586 = vshll.u32 %v2489, 16
        %v2588 = vrot.slane %v2586, 5
        %v2589 = vsel %vm367, %v2584, %v2588
        %v2591 = vshrl.u32 %v2490, 16
        %v2593 = vrot.slane %v2591, 4
        %v2594 = vshll.u32 %v2490, 16
        %v2596 = vrot.slane %v2594, 5
        %v2597 = vor.u32 %v2593, %v2596
        %v2598 = vrot.slane %v2597, 4
        %v2600 = vshll.u32 %v2491, 16
        %v2602 = vrot.slane %v2600, 5
        %v2603 = vsel %vm367, %v2598, %v2602
        %s2604 = scalar_lea.vmem %s3, 26
        %v2605 = vld [vmem:[%s2604] sm:$0x3]
        %v2606 = vunpack.c.l.b16 %v2505
        %v2607 = vunpack.c.l.b16 %v2519
        %v2608 = vunpack.c.l.b16 %v2533
        %v2609 = vunpack.c.l.b16 %v2547
        %v2610 = vunpack.c.l.b16 %v2561
        %v2611 = vunpack.c.l.b16 %v2575
        %v2612 = vunpack.c.l.b16 %v2589
        %v2613 = vunpack.c.l.b16 %v2603
        %v2614 = vpack.c.b16 %v2607, %v2606
        %v2615 = vpack.c.b16 %v2609, %v2608
        %v2616 = vpack.c.b16 %v2611, %v2610
        %v2617 = vpack.c.b16 %v2613, %v2612
        %v2619 = vsel %vm494, %v2614, 0
        %v2622 = vsel %vm494, %v2615, 0
        %v2625 = vsel %vm494, %v2616, 0
        %v2628 = vsel %vm494, %v2617, 0
        %v2631 = vsel %vm507, %v2605, 0
        %2633 = vmatprep.subr.bf16.mxu0 0
        %2634 = vmatpush1.bf16.msra.mxu0 %v2631
        %2635 = vmatprep.subr.bf16.mxu0 0
        %2636 = vmatpush1.bf16.msra.mxu0 0
        %2637 = vmatprep.subr.bf16.mxu0 0
        %2638 = vmatpush1.bf16.msra.mxu0 0
        %2639 = vmatprep.subr.bf16.mxu0 0
        %2640 = vmatpush1.bf16.msra.mxu0 0
        %2641 = vmatprep.subr.bf16.mxu0 0
        %2642 = vmatpush1.bf16.msra.mxu0 0
        %2643 = vmatprep.subr.bf16.mxu0 0
        %2644 = vmatpush1.bf16.msra.mxu0 0
        %2645 = vmatprep.subr.bf16.mxu0 0
        %2646 = vmatpush1.bf16.msra.mxu0 0
        %2647 = vmatprep.subr.bf16.mxu0 0
        %2648 = vmatpush1.bf16.msra.mxu0 0
        %2649 = vmatprep.subr.bf16.mxu0 0
        %2650 = vmatpush1.bf16.msra.mxu0 0
        %2651 = vmatprep.subr.bf16.mxu0 0
        %2652 = vmatpush1.bf16.msra.mxu0 0
        %2653 = vmatprep.subr.bf16.mxu0 0
        %2654 = vmatpush1.bf16.msra.mxu0 0
        %2655 = vmatprep.subr.bf16.mxu0 0
        %2656 = vmatpush1.bf16.msra.mxu0 0
        %2657 = vmatprep.subr.bf16.mxu0 0
        %2658 = vmatpush1.bf16.msra.mxu0 0
        %2659 = vmatprep.subr.bf16.mxu0 0
        %2660 = vmatpush1.bf16.msra.mxu0 0
        %2661 = vmatprep.subr.bf16.mxu0 0
        %2662 = vmatpush1.bf16.msra.mxu0 0
        %2663 = vmatprep.subr.bf16.mxu0 0
        %2664 = vmatpush1.bf16.msra.mxu0 0
        %2665 = vmatprep.mubr.bf16.mxu0 0
        %2666 = vmatmul.mubr.bf16.gmra.mrb[0].mxu0 %v2619
        %v2667 = vpop.f32.mrb[0].mxu0
        %v2668 = vadd.f32 0.0, %v2667
        %v2669 = vpop.f32.mrb[0].mxu0
        %v2670 = vpop.f32.mrb[0].mxu0
        %v2671 = vadd.f32 0.0, %v2670
        %v2672 = vpop.f32.mrb[0].mxu0
        %2673 = vmatprep.mubr.bf16.mxu0 0
        %2674 = vmatmul.mubr.bf16.gmra.mrb[0].mxu0 %v2622
        %v2675 = vpop.f32.mrb[0].mxu0
        %v2676 = vadd.f32 0.0, %v2675
        %v2677 = vpop.f32.mrb[0].mxu0
        %v2678 = vpop.f32.mrb[0].mxu0
        %v2679 = vadd.f32 0.0, %v2678
        %v2680 = vpop.f32.mrb[0].mxu0
        %2681 = vmatprep.mubr.bf16.mxu0 0
        %2682 = vmatmul.mubr.bf16.gmra.mrb[0].mxu0 %v2625
        %v2683 = vpop.f32.mrb[0].mxu0
        %v2684 = vadd.f32 0.0, %v2683
        %v2685 = vpop.f32.mrb[0].mxu0
        %v2686 = vpop.f32.mrb[0].mxu0
        %v2687 = vadd.f32 0.0, %v2686
        %v2688 = vpop.f32.mrb[0].mxu0
        %2689 = vmatprep.mubr.bf16.mxu0 0
        %2690 = vmatmul.mubr.bf16.gmra.mrb[0].mxu0 %v2628
        %v2691 = vpop.f32.mrb[0].mxu0
        %v2692 = vadd.f32 0.0, %v2691
        %v2693 = vpop.f32.mrb[0].mxu0
        %v2694 = vpop.f32.mrb[0].mxu0
        %v2695 = vadd.f32 0.0, %v2694
        %v2696 = vpop.f32.mrb[0].mxu0
        %2697 = vdwg.mxu0
        %v2698 = vadd.f32 %v2468, %v2668
        %v2699 = vadd.f32 %v2469, %v2671
        %v2700 = vadd.f32 %v2470, %v2676
        %v2701 = vadd.f32 %v2471, %v2679
        %v2702 = vadd.f32 %v2472, %v2684
        %v2703 = vadd.f32 %v2473, %v2687
        %v2704 = vadd.f32 %v2474, %v2692
        %v2705 = vadd.f32 %v2475, %v2695
        %v2706 = vld [vmem:[%s2357] sm:$0xe]
        %v2707 = vld [vmem:[%s2357 + $0x8] sm:$0xe]
        %v2708 = vld [vmem:[%s2357 + $0x10] sm:$0xe]
        %v2709 = vld [vmem:[%s2357 + $0x18] sm:$0xe]
        %v2710 = vld [vmem:[%s2357 + $0x20] sm:$0xe]
        %v2711 = vld [vmem:[%s2357 + $0x28] sm:$0xe]
        %v2712 = vld [vmem:[%s2357 + $0x30] sm:$0xe]
        %v2713 = vld [vmem:[%s2357 + $0x38] sm:$0xe]
        %v2730 = vrot.slane %v2706, 5
        %v2731 = vrot.slane %v2730, 4
        %v2732 = vrot.slane %v2477, 5
        %v2733 = vsel %vm702, %v2731, %v2732
        %v2734 = vrot.slane %v2707, 5
        %v2735 = vrot.slane %v2734, 4
        %v2736 = vrot.slane %v2479, 5
        %v2737 = vsel %vm702, %v2735, %v2736
        %v2738 = vrot.slane %v2708, 5
        %v2739 = vrot.slane %v2738, 4
        %v2740 = vrot.slane %v2481, 5
        %v2741 = vsel %vm702, %v2739, %v2740
        %v2742 = vrot.slane %v2709, 5
        %v2743 = vrot.slane %v2742, 4
        %v2744 = vrot.slane %v2483, 5
        %v2745 = vsel %vm702, %v2743, %v2744
        %v2746 = vrot.slane %v2710, 5
        %v2747 = vrot.slane %v2746, 4
        %v2748 = vrot.slane %v2485, 5
        %v2749 = vsel %vm702, %v2747, %v2748
        %v2750 = vrot.slane %v2711, 5
        %v2751 = vrot.slane %v2750, 4
        %v2752 = vrot.slane %v2487, 5
        %v2753 = vsel %vm702, %v2751, %v2752
        %v2754 = vrot.slane %v2712, 5
        %v2755 = vrot.slane %v2754, 4
        %v2756 = vrot.slane %v2489, 5
        %v2757 = vsel %vm702, %v2755, %v2756
        %v2758 = vrot.slane %v2713, 5
        %v2759 = vrot.slane %v2758, 4
        %v2760 = vrot.slane %v2491, 5
        %v2761 = vsel %vm702, %v2759, %v2760
        %s2762 = scalar_lea.vmem %s3, 28
        %v2763 = vld [vmem:[%s2762] sm:$0x3]
        %v2764 = vunpack.c.l.b16 %v2733
        %v2765 = vunpack.c.l.b16 %v2737
        %v2766 = vunpack.c.l.b16 %v2741
        %v2767 = vunpack.c.l.b16 %v2745
        %v2768 = vunpack.c.l.b16 %v2749
        %v2769 = vunpack.c.l.b16 %v2753
        %v2770 = vunpack.c.l.b16 %v2757
        %v2771 = vunpack.c.l.b16 %v2761
        %v2772 = vpack.c.b16 %v2765, %v2764
        %v2773 = vpack.c.b16 %v2767, %v2766
        %v2774 = vpack.c.b16 %v2769, %v2768
        %v2775 = vpack.c.b16 %v2771, %v2770
        %v2777 = vsel %vm494, %v2772, 0
        %v2780 = vsel %vm494, %v2773, 0
        %v2783 = vsel %vm494, %v2774, 0
        %v2786 = vsel %vm494, %v2775, 0
        %v2789 = vsel %vm507, %v2763, 0
        %2791 = vmatprep.subr.bf16.mxu0 0
        %2792 = vmatpush1.bf16.msra.mxu0 %v2789
        %2793 = vmatprep.subr.bf16.mxu0 0
        %2794 = vmatpush1.bf16.msra.mxu0 0
        %2795 = vmatprep.subr.bf16.mxu0 0
        %2796 = vmatpush1.bf16.msra.mxu0 0
        %2797 = vmatprep.subr.bf16.mxu0 0
        %2798 = vmatpush1.bf16.msra.mxu0 0
        %2799 = vmatprep.subr.bf16.mxu0 0
        %2800 = vmatpush1.bf16.msra.mxu0 0
        %2801 = vmatprep.subr.bf16.mxu0 0
        %2802 = vmatpush1.bf16.msra.mxu0 0
        %2803 = vmatprep.subr.bf16.mxu0 0
        %2804 = vmatpush1.bf16.msra.mxu0 0
        %2805 = vmatprep.subr.bf16.mxu0 0
        %2806 = vmatpush1.bf16.msra.mxu0 0
        %2807 = vmatprep.subr.bf16.mxu0 0
        %2808 = vmatpush1.bf16.msra.mxu0 0
        %2809 = vmatprep.subr.bf16.mxu0 0
        %2810 = vmatpush1.bf16.msra.mxu0 0
        %2811 = vmatprep.subr.bf16.mxu0 0
        %2812 = vmatpush1.bf16.msra.mxu0 0
        %2813 = vmatprep.subr.bf16.mxu0 0
        %2814 = vmatpush1.bf16.msra.mxu0 0
        %2815 = vmatprep.subr.bf16.mxu0 0
        %2816 = vmatpush1.bf16.msra.mxu0 0
        %2817 = vmatprep.subr.bf16.mxu0 0
        %2818 = vmatpush1.bf16.msra.mxu0 0
        %2819 = vmatprep.subr.bf16.mxu0 0
        %2820 = vmatpush1.bf16.msra.mxu0 0
        %2821 = vmatprep.subr.bf16.mxu0 0
        %2822 = vmatpush1.bf16.msra.mxu0 0
        %2823 = vmatprep.mubr.bf16.mxu0 0
        %2824 = vmatmul.mubr.bf16.gmra.mrb[0].mxu0 %v2777
        %v2825 = vpop.f32.mrb[0].mxu0
        %v2826 = vadd.f32 0.0, %v2825
        %v2827 = vpop.f32.mrb[0].mxu0
        %v2828 = vpop.f32.mrb[0].mxu0
        %v2829 = vadd.f32 0.0, %v2828
        %v2830 = vpop.f32.mrb[0].mxu0
        %2831 = vmatprep.mubr.bf16.mxu0 0
        %2832 = vmatmul.mubr.bf16.gmra.mrb[0].mxu0 %v2780
        %v2833 = vpop.f32.mrb[0].mxu0
        %v2834 = vadd.f32 0.0, %v2833
        %v2835 = vpop.f32.mrb[0].mxu0
        %v2836 = vpop.f32.mrb[0].mxu0
        %v2837 = vadd.f32 0.0, %v2836
        %v2838 = vpop.f32.mrb[0].mxu0
        %2839 = vmatprep.mubr.bf16.mxu0 0
        %2840 = vmatmul.mubr.bf16.gmra.mrb[0].mxu0 %v2783
        %v2841 = vpop.f32.mrb[0].mxu0
        %v2842 = vadd.f32 0.0, %v2841
        %v2843 = vpop.f32.mrb[0].mxu0
        %v2844 = vpop.f32.mrb[0].mxu0
        %v2845 = vadd.f32 0.0, %v2844
        %v2846 = vpop.f32.mrb[0].mxu0
        %2847 = vmatprep.mubr.bf16.mxu0 0
        %2848 = vmatmul.mubr.bf16.gmra.mrb[0].mxu0 %v2786
        %v2849 = vpop.f32.mrb[0].mxu0
        %v2850 = vadd.f32 0.0, %v2849
        %v2851 = vpop.f32.mrb[0].mxu0
        %v2852 = vpop.f32.mrb[0].mxu0
        %v2853 = vadd.f32 0.0, %v2852
        %v2854 = vpop.f32.mrb[0].mxu0
        %2855 = vdwg.mxu0
        %v2856 = vadd.f32 %v2698, %v2826
        %v2857 = vadd.f32 %v2699, %v2829
        %v2858 = vadd.f32 %v2700, %v2834
        %v2859 = vadd.f32 %v2701, %v2837
        %v2860 = vadd.f32 %v2702, %v2842
        %v2861 = vadd.f32 %v2703, %v2845
        %v2862 = vadd.f32 %v2704, %v2850
        %v2863 = vadd.f32 %v2705, %v2853
        %s2864 = scalar_lea.vmem %s333, 16
        %v2865 = vld [vmem:[%s2864] sm:$0xf]
        %v2866 = vld [vmem:[%s2864 + $0x8] sm:$0xf]
        %v2867 = vld [vmem:[%s2864 + $0x10] sm:$0xf]
        %v2868 = vld [vmem:[%s2864 + $0x18] sm:$0xf]
        %v2869 = vld [vmem:[%s2864 + $0x20] sm:$0xf]
        %v2870 = vld [vmem:[%s2864 + $0x28] sm:$0xf]
        %v2871 = vld [vmem:[%s2864 + $0x30] sm:$0xf]
        %v2872 = vld [vmem:[%s2864 + $0x38] sm:$0xf]
        %s2873 = scalar_lea.vmem %s3, 30
        %v2874 = vld [vmem:[%s2873] sm:$0x3]
        %v2883 = vunpack.c.l.b16 %v2865
        %v2884 = vunpack.c.l.b16 %v2866
        %v2885 = vunpack.c.l.b16 %v2867
        %v2886 = vunpack.c.l.b16 %v2868
        %v2887 = vunpack.c.l.b16 %v2869
        %v2888 = vunpack.c.l.b16 %v2870
        %v2889 = vunpack.c.l.b16 %v2871
        %v2890 = vunpack.c.l.b16 %v2872
        %v2891 = vpack.c.b16 %v2884, %v2883
        %v2892 = vpack.c.b16 %v2886, %v2885
        %v2893 = vpack.c.b16 %v2888, %v2887
        %v2894 = vpack.c.b16 %v2890, %v2889
        %v2896 = vsel %vm494, %v2891, 0
        %v2899 = vsel %vm494, %v2892, 0
        %v2902 = vsel %vm494, %v2893, 0
        %v2905 = vsel %vm494, %v2894, 0
        %v2908 = vsel %vm507, %v2874, 0
        %2910 = vmatprep.subr.bf16.mxu0 0
        %2911 = vmatpush1.bf16.msra.mxu0 %v2908
        %2912 = vmatprep.subr.bf16.mxu0 0
        %2913 = vmatpush1.bf16.msra.mxu0 0
        %2914 = vmatprep.subr.bf16.mxu0 0
        %2915 = vmatpush1.bf16.msra.mxu0 0
        %2916 = vmatprep.subr.bf16.mxu0 0
        %2917 = vmatpush1.bf16.msra.mxu0 0
        %2918 = vmatprep.subr.bf16.mxu0 0
        %2919 = vmatpush1.bf16.msra.mxu0 0
        %2920 = vmatprep.subr.bf16.mxu0 0
        %2921 = vmatpush1.bf16.msra.mxu0 0
        %2922 = vmatprep.subr.bf16.mxu0 0
        %2923 = vmatpush1.bf16.msra.mxu0 0
        %2924 = vmatprep.subr.bf16.mxu0 0
        %2925 = vmatpush1.bf16.msra.mxu0 0
        %2926 = vmatprep.subr.bf16.mxu0 0
        %2927 = vmatpush1.bf16.msra.mxu0 0
        %2928 = vmatprep.subr.bf16.mxu0 0
        %2929 = vmatpush1.bf16.msra.mxu0 0
        %2930 = vmatprep.subr.bf16.mxu0 0
        %2931 = vmatpush1.bf16.msra.mxu0 0
        %2932 = vmatprep.subr.bf16.mxu0 0
        %2933 = vmatpush1.bf16.msra.mxu0 0
        %2934 = vmatprep.subr.bf16.mxu0 0
        %2935 = vmatpush1.bf16.msra.mxu0 0
        %2936 = vmatprep.subr.bf16.mxu0 0
        %2937 = vmatpush1.bf16.msra.mxu0 0
        %2938 = vmatprep.subr.bf16.mxu0 0
        %2939 = vmatpush1.bf16.msra.mxu0 0
        %2940 = vmatprep.subr.bf16.mxu0 0
        %2941 = vmatpush1.bf16.msra.mxu0 0
        %2942 = vmatprep.mubr.bf16.mxu0 0
        %2943 = vmatmul.mubr.bf16.gmra.mrb[0].mxu0 %v2896
        %v2944 = vpop.f32.mrb[0].mxu0
        %v2945 = vadd.f32 0.0, %v2944
        %v2946 = vpop.f32.mrb[0].mxu0
        %v2947 = vpop.f32.mrb[0].mxu0
        %v2948 = vadd.f32 0.0, %v2947
        %v2949 = vpop.f32.mrb[0].mxu0
        %2950 = vmatprep.mubr.bf16.mxu0 0
        %2951 = vmatmul.mubr.bf16.gmra.mrb[0].mxu0 %v2899
        %v2952 = vpop.f32.mrb[0].mxu0
        %v2953 = vadd.f32 0.0, %v2952
        %v2954 = vpop.f32.mrb[0].mxu0
        %v2955 = vpop.f32.mrb[0].mxu0
        %v2956 = vadd.f32 0.0, %v2955
        %v2957 = vpop.f32.mrb[0].mxu0
        %2958 = vmatprep.mubr.bf16.mxu0 0
        %2959 = vmatmul.mubr.bf16.gmra.mrb[0].mxu0 %v2902
        %v2960 = vpop.f32.mrb[0].mxu0
        %v2961 = vadd.f32 0.0, %v2960
        %v2962 = vpop.f32.mrb[0].mxu0
        %v2963 = vpop.f32.mrb[0].mxu0
        %v2964 = vadd.f32 0.0, %v2963
        %v2965 = vpop.f32.mrb[0].mxu0
        %2966 = vmatprep.mubr.bf16.mxu0 0
        %2967 = vmatmul.mubr.bf16.gmra.mrb[0].mxu0 %v2905
        %v2968 = vpop.f32.mrb[0].mxu0
        %v2969 = vadd.f32 0.0, %v2968
        %v2970 = vpop.f32.mrb[0].mxu0
        %v2971 = vpop.f32.mrb[0].mxu0
        %v2972 = vadd.f32 0.0, %v2971
        %v2973 = vpop.f32.mrb[0].mxu0
        %2974 = vdwg.mxu0
        %v2975 = vadd.f32 %v2856, %v2945
        %v2976 = vadd.f32 %v2857, %v2948
        %v2977 = vadd.f32 %v2858, %v2953
        %v2978 = vadd.f32 %v2859, %v2956
        %v2979 = vadd.f32 %v2860, %v2961
        %v2980 = vadd.f32 %v2861, %v2964
        %v2981 = vadd.f32 %v2862, %v2969
        %v2982 = vadd.f32 %v2863, %v2972
        %v2983 = vld [vmem:[%s2864] sm:$0xf]
        %v2984 = vld [vmem:[%s2864 + $0x4] sm:$0x1]
        %v2985 = vld [vmem:[%s2864 + $0x8] sm:$0xf]
        %v2986 = vld [vmem:[%s2864 + $0xc] sm:$0x1]
        %v2987 = vld [vmem:[%s2864 + $0x10] sm:$0xf]
        %v2988 = vld [vmem:[%s2864 + $0x14] sm:$0x1]
        %v2989 = vld [vmem:[%s2864 + $0x18] sm:$0xf]
        %v2990 = vld [vmem:[%s2864 + $0x1c] sm:$0x1]
        %v2991 = vld [vmem:[%s2864 + $0x20] sm:$0xf]
        %v2992 = vld [vmem:[%s2864 + $0x24] sm:$0x1]
        %v2993 = vld [vmem:[%s2864 + $0x28] sm:$0xf]
        %v2994 = vld [vmem:[%s2864 + $0x2c] sm:$0x1]
        %v2995 = vld [vmem:[%s2864 + $0x30] sm:$0xf]
        %v2996 = vld [vmem:[%s2864 + $0x34] sm:$0x1]
        %v2997 = vld [vmem:[%s2864 + $0x38] sm:$0xf]
        %v2998 = vld [vmem:[%s2864 + $0x3c] sm:$0x1]
        %v3000 = vshrl.u32 %v2983, 16
        %v3002 = vrot.slane %v3000, 4
        %v3003 = vshll.u32 %v2983, 16
        %v3005 = vrot.slane %v3003, 5
        %v3006 = vor.u32 %v3002, %v3005
        %v3007 = vrot.slane %v3006, 4
        %v3009 = vshll.u32 %v2984, 16
        %v3011 = vrot.slane %v3009, 5
        %v3012 = vsel %vm367, %v3007, %v3011
        %v3014 = vshrl.u32 %v2985, 16
        %v3016 = vrot.slane %v3014, 4
        %v3017 = vshll.u32 %v2985, 16
        %v3019 = vrot.slane %v3017, 5
        %v3020 = vor.u32 %v3016, %v3019
        %v3021 = vrot.slane %v3020, 4
        %v3023 = vshll.u32 %v2986, 16
        %v3025 = vrot.slane %v3023, 5
        %v3026 = vsel %vm367, %v3021, %v3025
        %v3028 = vshrl.u32 %v2987, 16
        %v3030 = vrot.slane %v3028, 4
        %v3031 = vshll.u32 %v2987, 16
        %v3033 = vrot.slane %v3031, 5
        %v3034 = vor.u32 %v3030, %v3033
        %v3035 = vrot.slane %v3034, 4
        %v3037 = vshll.u32 %v2988, 16
        %v3039 = vrot.slane %v3037, 5
        %v3040 = vsel %vm367, %v3035, %v3039
        %v3042 = vshrl.u32 %v2989, 16
        %v3044 = vrot.slane %v3042, 4
        %v3045 = vshll.u32 %v2989, 16
        %v3047 = vrot.slane %v3045, 5
        %v3048 = vor.u32 %v3044, %v3047
        %v3049 = vrot.slane %v3048, 4
        %v3051 = vshll.u32 %v2990, 16
        %v3053 = vrot.slane %v3051, 5
        %v3054 = vsel %vm367, %v3049, %v3053
        %v3056 = vshrl.u32 %v2991, 16
        %v3058 = vrot.slane %v3056, 4
        %v3059 = vshll.u32 %v2991, 16
        %v3061 = vrot.slane %v3059, 5
        %v3062 = vor.u32 %v3058, %v3061
        %v3063 = vrot.slane %v3062, 4
        %v3065 = vshll.u32 %v2992, 16
        %v3067 = vrot.slane %v3065, 5
        %v3068 = vsel %vm367, %v3063, %v3067
        %v3070 = vshrl.u32 %v2993, 16
        %v3072 = vrot.slane %v3070, 4
        %v3073 = vshll.u32 %v2993, 16
        %v3075 = vrot.slane %v3073, 5
        %v3076 = vor.u32 %v3072, %v3075
        %v3077 = vrot.slane %v3076, 4
        %v3079 = vshll.u32 %v2994, 16
        %v3081 = vrot.slane %v3079, 5
        %v3082 = vsel %vm367, %v3077, %v3081
        %v3084 = vshrl.u32 %v2995, 16
        %v3086 = vrot.slane %v3084, 4
        %v3087 = vshll.u32 %v2995, 16
        %v3089 = vrot.slane %v3087, 5
        %v3090 = vor.u32 %v3086, %v3089
        %v3091 = vrot.slane %v3090, 4
        %v3093 = vshll.u32 %v2996, 16
        %v3095 = vrot.slane %v3093, 5
        %v3096 = vsel %vm367, %v3091, %v3095
        %v3098 = vshrl.u32 %v2997, 16
        %v3100 = vrot.slane %v3098, 4
        %v3101 = vshll.u32 %v2997, 16
        %v3103 = vrot.slane %v3101, 5
        %v3104 = vor.u32 %v3100, %v3103
        %v3105 = vrot.slane %v3104, 4
        %v3107 = vshll.u32 %v2998, 16
        %v3109 = vrot.slane %v3107, 5
        %v3110 = vsel %vm367, %v3105, %v3109
        %s3111 = scalar_lea.vmem %s3, 32
        %v3112 = vld [vmem:[%s3111] sm:$0x3]
        %v3113 = vunpack.c.l.b16 %v3012
        %v3114 = vunpack.c.l.b16 %v3026
        %v3115 = vunpack.c.l.b16 %v3040
        %v3116 = vunpack.c.l.b16 %v3054
        %v3117 = vunpack.c.l.b16 %v3068
        %v3118 = vunpack.c.l.b16 %v3082
        %v3119 = vunpack.c.l.b16 %v3096
        %v3120 = vunpack.c.l.b16 %v3110
        %v3121 = vpack.c.b16 %v3114, %v3113
        %v3122 = vpack.c.b16 %v3116, %v3115
        %v3123 = vpack.c.b16 %v3118, %v3117
        %v3124 = vpack.c.b16 %v3120, %v3119
        %v3126 = vsel %vm494, %v3121, 0
        %v3129 = vsel %vm494, %v3122, 0
        %v3132 = vsel %vm494, %v3123, 0
        %v3135 = vsel %vm494, %v3124, 0
        %v3138 = vsel %vm507, %v3112, 0
        %3140 = vmatprep.subr.bf16.mxu0 0
        %3141 = vmatpush1.bf16.msra.mxu0 %v3138
        %3142 = vmatprep.subr.bf16.mxu0 0
        %3143 = vmatpush1.bf16.msra.mxu0 0
        %3144 = vmatprep.subr.bf16.mxu0 0
        %3145 = vmatpush1.bf16.msra.mxu0 0
        %3146 = vmatprep.subr.bf16.mxu0 0
        %3147 = vmatpush1.bf16.msra.mxu0 0
        %3148 = vmatprep.subr.bf16.mxu0 0
        %3149 = vmatpush1.bf16.msra.mxu0 0
        %3150 = vmatprep.subr.bf16.mxu0 0
        %3151 = vmatpush1.bf16.msra.mxu0 0
        %3152 = vmatprep.subr.bf16.mxu0 0
        %3153 = vmatpush1.bf16.msra.mxu0 0
        %3154 = vmatprep.subr.bf16.mxu0 0
        %3155 = vmatpush1.bf16.msra.mxu0 0
        %3156 = vmatprep.subr.bf16.mxu0 0
        %3157 = vmatpush1.bf16.msra.mxu0 0
        %3158 = vmatprep.subr.bf16.mxu0 0
        %3159 = vmatpush1.bf16.msra.mxu0 0
        %3160 = vmatprep.subr.bf16.mxu0 0
        %3161 = vmatpush1.bf16.msra.mxu0 0
        %3162 = vmatprep.subr.bf16.mxu0 0
        %3163 = vmatpush1.bf16.msra.mxu0 0
        %3164 = vmatprep.subr.bf16.mxu0 0
        %3165 = vmatpush1.bf16.msra.mxu0 0
        %3166 = vmatprep.subr.bf16.mxu0 0
        %3167 = vmatpush1.bf16.msra.mxu0 0
        %3168 = vmatprep.subr.bf16.mxu0 0
        %3169 = vmatpush1.bf16.msra.mxu0 0
        %3170 = vmatprep.subr.bf16.mxu0 0
        %3171 = vmatpush1.bf16.msra.mxu0 0
        %3172 = vmatprep.mubr.bf16.mxu0 0
        %3173 = vmatmul.mubr.bf16.gmra.mrb[0].mxu0 %v3126
        %v3174 = vpop.f32.mrb[0].mxu0
        %v3175 = vadd.f32 0.0, %v3174
        %v3176 = vpop.f32.mrb[0].mxu0
        %v3177 = vpop.f32.mrb[0].mxu0
        %v3178 = vadd.f32 0.0, %v3177
        %v3179 = vpop.f32.mrb[0].mxu0
        %3180 = vmatprep.mubr.bf16.mxu0 0
        %3181 = vmatmul.mubr.bf16.gmra.mrb[0].mxu0 %v3129
        %v3182 = vpop.f32.mrb[0].mxu0
        %v3183 = vadd.f32 0.0, %v3182
        %v3184 = vpop.f32.mrb[0].mxu0
        %v3185 = vpop.f32.mrb[0].mxu0
        %v3186 = vadd.f32 0.0, %v3185
        %v3187 = vpop.f32.mrb[0].mxu0
        %3188 = vmatprep.mubr.bf16.mxu0 0
        %3189 = vmatmul.mubr.bf16.gmra.mrb[0].mxu0 %v3132
        %v3190 = vpop.f32.mrb[0].mxu0
        %v3191 = vadd.f32 0.0, %v3190
        %v3192 = vpop.f32.mrb[0].mxu0
        %v3193 = vpop.f32.mrb[0].mxu0
        %v3194 = vadd.f32 0.0, %v3193
        %v3195 = vpop.f32.mrb[0].mxu0
        %3196 = vmatprep.mubr.bf16.mxu0 0
        %3197 = vmatmul.mubr.bf16.gmra.mrb[0].mxu0 %v3135
        %v3198 = vpop.f32.mrb[0].mxu0
        %v3199 = vadd.f32 0.0, %v3198
        %v3200 = vpop.f32.mrb[0].mxu0
        %v3201 = vpop.f32.mrb[0].mxu0
        %v3202 = vadd.f32 0.0, %v3201
        %v3203 = vpop.f32.mrb[0].mxu0
        %3204 = vdwg.mxu0
        %v3205 = vadd.f32 %v2975, %v3175
        %v3206 = vadd.f32 %v2976, %v3178
        %v3207 = vadd.f32 %v2977, %v3183
        %v3208 = vadd.f32 %v2978, %v3186
        %v3209 = vadd.f32 %v2979, %v3191
        %v3210 = vadd.f32 %v2980, %v3194
        %v3211 = vadd.f32 %v2981, %v3199
        %v3212 = vadd.f32 %v2982, %v3202
        %v3213 = vld [vmem:[%s2864] sm:$0xe]
        %v3214 = vld [vmem:[%s2864 + $0x8] sm:$0xe]
        %v3215 = vld [vmem:[%s2864 + $0x10] sm:$0xe]
        %v3216 = vld [vmem:[%s2864 + $0x18] sm:$0xe]
        %v3217 = vld [vmem:[%s2864 + $0x20] sm:$0xe]
        %v3218 = vld [vmem:[%s2864 + $0x28] sm:$0xe]
        %v3219 = vld [vmem:[%s2864 + $0x30] sm:$0xe]
        %v3220 = vld [vmem:[%s2864 + $0x38] sm:$0xe]
        %v3237 = vrot.slane %v3213, 5
        %v3238 = vrot.slane %v3237, 4
        %v3239 = vrot.slane %v2984, 5
        %v3240 = vsel %vm702, %v3238, %v3239
        %v3241 = vrot.slane %v3214, 5
        %v3242 = vrot.slane %v3241, 4
        %v3243 = vrot.slane %v2986, 5
        %v3244 = vsel %vm702, %v3242, %v3243
        %v3245 = vrot.slane %v3215, 5
        %v3246 = vrot.slane %v3245, 4
        %v3247 = vrot.slane %v2988, 5
        %v3248 = vsel %vm702, %v3246, %v3247
        %v3249 = vrot.slane %v3216, 5
        %v3250 = vrot.slane %v3249, 4
        %v3251 = vrot.slane %v2990, 5
        %v3252 = vsel %vm702, %v3250, %v3251
        %v3253 = vrot.slane %v3217, 5
        %v3254 = vrot.slane %v3253, 4
        %v3255 = vrot.slane %v2992, 5
        %v3256 = vsel %vm702, %v3254, %v3255
        %v3257 = vrot.slane %v3218, 5
        %v3258 = vrot.slane %v3257, 4
        %v3259 = vrot.slane %v2994, 5
        %v3260 = vsel %vm702, %v3258, %v3259
        %v3261 = vrot.slane %v3219, 5
        %v3262 = vrot.slane %v3261, 4
        %v3263 = vrot.slane %v2996, 5
        %v3264 = vsel %vm702, %v3262, %v3263
        %v3265 = vrot.slane %v3220, 5
        %v3266 = vrot.slane %v3265, 4
        %v3267 = vrot.slane %v2998, 5
        %v3268 = vsel %vm702, %v3266, %v3267
        %s3269 = scalar_lea.vmem %s3, 34
        %v3270 = vld [vmem:[%s3269] sm:$0x3]
        %v3271 = vunpack.c.l.b16 %v3240
        %v3272 = vunpack.c.l.b16 %v3244
        %v3273 = vunpack.c.l.b16 %v3248
        %v3274 = vunpack.c.l.b16 %v3252
        %v3275 = vunpack.c.l.b16 %v3256
        %v3276 = vunpack.c.l.b16 %v3260
        %v3277 = vunpack.c.l.b16 %v3264
        %v3278 = vunpack.c.l.b16 %v3268
        %v3279 = vpack.c.b16 %v3272, %v3271
        %v3280 = vpack.c.b16 %v3274, %v3273
        %v3281 = vpack.c.b16 %v3276, %v3275
        %v3282 = vpack.c.b16 %v3278, %v3277
        %v3284 = vsel %vm494, %v3279, 0
        %v3287 = vsel %vm494, %v3280, 0
        %v3290 = vsel %vm494, %v3281, 0
        %v3293 = vsel %vm494, %v3282, 0
        %v3296 = vsel %vm507, %v3270, 0
        %3298 = vmatprep.subr.bf16.mxu0 0
        %3299 = vmatpush1.bf16.msra.mxu0 %v3296
        %3300 = vmatprep.subr.bf16.mxu0 0
        %3301 = vmatpush1.bf16.msra.mxu0 0
        %3302 = vmatprep.subr.bf16.mxu0 0
        %3303 = vmatpush1.bf16.msra.mxu0 0
        %3304 = vmatprep.subr.bf16.mxu0 0
        %3305 = vmatpush1.bf16.msra.mxu0 0
        %3306 = vmatprep.subr.bf16.mxu0 0
        %3307 = vmatpush1.bf16.msra.mxu0 0
        %3308 = vmatprep.subr.bf16.mxu0 0
        %3309 = vmatpush1.bf16.msra.mxu0 0
        %3310 = vmatprep.subr.bf16.mxu0 0
        %3311 = vmatpush1.bf16.msra.mxu0 0
        %3312 = vmatprep.subr.bf16.mxu0 0
        %3313 = vmatpush1.bf16.msra.mxu0 0
        %3314 = vmatprep.subr.bf16.mxu0 0
        %3315 = vmatpush1.bf16.msra.mxu0 0
        %3316 = vmatprep.subr.bf16.mxu0 0
        %3317 = vmatpush1.bf16.msra.mxu0 0
        %3318 = vmatprep.subr.bf16.mxu0 0
        %3319 = vmatpush1.bf16.msra.mxu0 0
        %3320 = vmatprep.subr.bf16.mxu0 0
        %3321 = vmatpush1.bf16.msra.mxu0 0
        %3322 = vmatprep.subr.bf16.mxu0 0
        %3323 = vmatpush1.bf16.msra.mxu0 0
        %3324 = vmatprep.subr.bf16.mxu0 0
        %3325 = vmatpush1.bf16.msra.mxu0 0
        %3326 = vmatprep.subr.bf16.mxu0 0
        %3327 = vmatpush1.bf16.msra.mxu0 0
        %3328 = vmatprep.subr.bf16.mxu0 0
        %3329 = vmatpush1.bf16.msra.mxu0 0
        %3330 = vmatprep.mubr.bf16.mxu0 0
        %3331 = vmatmul.mubr.bf16.gmra.mrb[0].mxu0 %v3284
        %v3332 = vpop.f32.mrb[0].mxu0
        %v3333 = vadd.f32 0.0, %v3332
        %v3334 = vpop.f32.mrb[0].mxu0
        %v3335 = vpop.f32.mrb[0].mxu0
        %v3336 = vadd.f32 0.0, %v3335
        %v3337 = vpop.f32.mrb[0].mxu0
        %3338 = vmatprep.mubr.bf16.mxu0 0
        %3339 = vmatmul.mubr.bf16.gmra.mrb[0].mxu0 %v3287
        %v3340 = vpop.f32.mrb[0].mxu0
        %v3341 = vadd.f32 0.0, %v3340
        %v3342 = vpop.f32.mrb[0].mxu0
        %v3343 = vpop.f32.mrb[0].mxu0
        %v3344 = vadd.f32 0.0, %v3343
        %v3345 = vpop.f32.mrb[0].mxu0
        %3346 = vmatprep.mubr.bf16.mxu0 0
        %3347 = vmatmul.mubr.bf16.gmra.mrb[0].mxu0 %v3290
        %v3348 = vpop.f32.mrb[0].mxu0
        %v3349 = vadd.f32 0.0, %v3348
        %v3350 = vpop.f32.mrb[0].mxu0
        %v3351 = vpop.f32.mrb[0].mxu0
        %v3352 = vadd.f32 0.0, %v3351
        %v3353 = vpop.f32.mrb[0].mxu0
        %3354 = vmatprep.mubr.bf16.mxu0 0
        %3355 = vmatmul.mubr.bf16.gmra.mrb[0].mxu0 %v3293
        %v3356 = vpop.f32.mrb[0].mxu0
        %v3357 = vadd.f32 0.0, %v3356
        %v3358 = vpop.f32.mrb[0].mxu0
        %v3359 = vpop.f32.mrb[0].mxu0
        %v3360 = vadd.f32 0.0, %v3359
        %v3361 = vpop.f32.mrb[0].mxu0
        %3362 = vdwg.mxu0
        %v3363 = vadd.f32 %v3205, %v3333
        %v3364 = vadd.f32 %v3206, %v3336
        %v3365 = vadd.f32 %v3207, %v3341
        %v3366 = vadd.f32 %v3208, %v3344
        %v3367 = vadd.f32 %v3209, %v3349
        %v3368 = vadd.f32 %v3210, %v3352
        %v3369 = vadd.f32 %v3211, %v3357
        %v3370 = vadd.f32 %v3212, %v3360
        %v3371 = vld [vmem:[%s344] sm:$0xf]
        %v3372 = vld [vmem:[%s344 + $0x8] sm:$0xf]
        %v3373 = vld [vmem:[%s344 + $0x10] sm:$0xf]
        %v3374 = vld [vmem:[%s344 + $0x18] sm:$0xf]
        %v3375 = vld [vmem:[%s344 + $0x20] sm:$0xf]
        %v3376 = vld [vmem:[%s344 + $0x28] sm:$0xf]
        %v3377 = vld [vmem:[%s344 + $0x30] sm:$0xf]
        %v3378 = vld [vmem:[%s344 + $0x38] sm:$0xf]
        %s3379 = scalar_lea.vmem %s3, 36
        %v3380 = vld [vmem:[%s3379] sm:$0x3]
        %v3389 = vunpack.c.l.b16 %v3371
        %v3390 = vunpack.c.l.b16 %v3372
        %v3391 = vunpack.c.l.b16 %v3373
        %v3392 = vunpack.c.l.b16 %v3374
        %v3393 = vunpack.c.l.b16 %v3375
        %v3394 = vunpack.c.l.b16 %v3376
        %v3395 = vunpack.c.l.b16 %v3377
        %v3396 = vunpack.c.l.b16 %v3378
        %v3397 = vpack.c.b16 %v3390, %v3389
        %v3398 = vpack.c.b16 %v3392, %v3391
        %v3399 = vpack.c.b16 %v3394, %v3393
        %v3400 = vpack.c.b16 %v3396, %v3395
        %v3402 = vsel %vm494, %v3397, 0
        %v3405 = vsel %vm494, %v3398, 0
        %v3408 = vsel %vm494, %v3399, 0
        %v3411 = vsel %vm494, %v3400, 0
        %v3414 = vsel %vm507, %v3380, 0
        %3416 = vmatprep.subr.bf16.mxu0 0
        %3417 = vmatpush1.bf16.msra.mxu0 %v3414
        %3418 = vmatprep.subr.bf16.mxu0 0
        %3419 = vmatpush1.bf16.msra.mxu0 0
        %3420 = vmatprep.subr.bf16.mxu0 0
        %3421 = vmatpush1.bf16.msra.mxu0 0
        %3422 = vmatprep.subr.bf16.mxu0 0
        %3423 = vmatpush1.bf16.msra.mxu0 0
        %3424 = vmatprep.subr.bf16.mxu0 0
        %3425 = vmatpush1.bf16.msra.mxu0 0
        %3426 = vmatprep.subr.bf16.mxu0 0
        %3427 = vmatpush1.bf16.msra.mxu0 0
        %3428 = vmatprep.subr.bf16.mxu0 0
        %3429 = vmatpush1.bf16.msra.mxu0 0
        %3430 = vmatprep.subr.bf16.mxu0 0
        %3431 = vmatpush1.bf16.msra.mxu0 0
        %3432 = vmatprep.subr.bf16.mxu0 0
        %3433 = vmatpush1.bf16.msra.mxu0 0
        %3434 = vmatprep.subr.bf16.mxu0 0
        %3435 = vmatpush1.bf16.msra.mxu0 0
        %3436 = vmatprep.subr.bf16.mxu0 0
        %3437 = vmatpush1.bf16.msra.mxu0 0
        %3438 = vmatprep.subr.bf16.mxu0 0
        %3439 = vmatpush1.bf16.msra.mxu0 0
        %3440 = vmatprep.subr.bf16.mxu0 0
        %3441 = vmatpush1.bf16.msra.mxu0 0
        %3442 = vmatprep.subr.bf16.mxu0 0
        %3443 = vmatpush1.bf16.msra.mxu0 0
        %3444 = vmatprep.subr.bf16.mxu0 0
        %3445 = vmatpush1.bf16.msra.mxu0 0
        %3446 = vmatprep.subr.bf16.mxu0 0
        %3447 = vmatpush1.bf16.msra.mxu0 0
        %3448 = vmatprep.mubr.bf16.mxu0 0
        %3449 = vmatmul.mubr.bf16.gmra.mrb[0].mxu0 %v3402
        %v3450 = vpop.f32.mrb[0].mxu0
        %v3451 = vadd.f32 0.0, %v3450
        %v3452 = vpop.f32.mrb[0].mxu0
        %v3453 = vpop.f32.mrb[0].mxu0
        %v3454 = vadd.f32 0.0, %v3453
        %v3455 = vpop.f32.mrb[0].mxu0
        %3456 = vmatprep.mubr.bf16.mxu0 0
        %3457 = vmatmul.mubr.bf16.gmra.mrb[0].mxu0 %v3405
        %v3458 = vpop.f32.mrb[0].mxu0
        %v3459 = vadd.f32 0.0, %v3458
        %v3460 = vpop.f32.mrb[0].mxu0
        %v3461 = vpop.f32.mrb[0].mxu0
        %v3462 = vadd.f32 0.0, %v3461
        %v3463 = vpop.f32.mrb[0].mxu0
        %3464 = vmatprep.mubr.bf16.mxu0 0
        %3465 = vmatmul.mubr.bf16.gmra.mrb[0].mxu0 %v3408
        %v3466 = vpop.f32.mrb[0].mxu0
        %v3467 = vadd.f32 0.0, %v3466
        %v3468 = vpop.f32.mrb[0].mxu0
        %v3469 = vpop.f32.mrb[0].mxu0
        %v3470 = vadd.f32 0.0, %v3469
        %v3471 = vpop.f32.mrb[0].mxu0
        %3472 = vmatprep.mubr.bf16.mxu0 0
        %3473 = vmatmul.mubr.bf16.gmra.mrb[0].mxu0 %v3411
        %v3474 = vpop.f32.mrb[0].mxu0
        %v3475 = vadd.f32 0.0, %v3474
        %v3476 = vpop.f32.mrb[0].mxu0
        %v3477 = vpop.f32.mrb[0].mxu0
        %v3478 = vadd.f32 0.0, %v3477
        %v3479 = vpop.f32.mrb[0].mxu0
        %3480 = vdwg.mxu0
        %v3481 = vadd.f32 %v3363, %v3451
        %v3482 = vadd.f32 %v3364, %v3454
        %v3483 = vadd.f32 %v3365, %v3459
        %v3484 = vadd.f32 %v3366, %v3462
        %v3485 = vadd.f32 %v3367, %v3467
        %v3486 = vadd.f32 %v3368, %v3470
        %v3487 = vadd.f32 %v3369, %v3475
        %v3488 = vadd.f32 %v3370, %v3478
        %v3489 = vld [vmem:[%s344] sm:$0xf]
        %v3490 = vld [vmem:[%s344 + $0x4] sm:$0x1]
        %v3491 = vld [vmem:[%s344 + $0x8] sm:$0xf]
        %v3492 = vld [vmem:[%s344 + $0xc] sm:$0x1]
        %v3493 = vld [vmem:[%s344 + $0x10] sm:$0xf]
        %v3494 = vld [vmem:[%s344 + $0x14] sm:$0x1]
        %v3495 = vld [vmem:[%s344 + $0x18] sm:$0xf]
        %v3496 = vld [vmem:[%s344 + $0x1c] sm:$0x1]
        %v3497 = vld [vmem:[%s344 + $0x20] sm:$0xf]
        %v3498 = vld [vmem:[%s344 + $0x24] sm:$0x1]
        %v3499 = vld [vmem:[%s344 + $0x28] sm:$0xf]
        %v3500 = vld [vmem:[%s344 + $0x2c] sm:$0x1]
        %v3501 = vld [vmem:[%s344 + $0x30] sm:$0xf]
        %v3502 = vld [vmem:[%s344 + $0x34] sm:$0x1]
        %v3503 = vld [vmem:[%s344 + $0x38] sm:$0xf]
        %v3504 = vld [vmem:[%s344 + $0x3c] sm:$0x1]
        %v3506 = vshrl.u32 %v3489, 16
        %v3508 = vrot.slane %v3506, 4
        %v3509 = vshll.u32 %v3489, 16
        %v3511 = vrot.slane %v3509, 5
        %v3512 = vor.u32 %v3508, %v3511
        %v3513 = vrot.slane %v3512, 4
        %v3515 = vshll.u32 %v3490, 16
        %v3517 = vrot.slane %v3515, 5
        %v3518 = vsel %vm367, %v3513, %v3517
        %v3520 = vshrl.u32 %v3491, 16
        %v3522 = vrot.slane %v3520, 4
        %v3523 = vshll.u32 %v3491, 16
        %v3525 = vrot.slane %v3523, 5
        %v3526 = vor.u32 %v3522, %v3525
        %v3527 = vrot.slane %v3526, 4
        %v3529 = vshll.u32 %v3492, 16
        %v3531 = vrot.slane %v3529, 5
        %v3532 = vsel %vm367, %v3527, %v3531
        %v3534 = vshrl.u32 %v3493, 16
        %v3536 = vrot.slane %v3534, 4
        %v3537 = vshll.u32 %v3493, 16
        %v3539 = vrot.slane %v3537, 5
        %v3540 = vor.u32 %v3536, %v3539
        %v3541 = vrot.slane %v3540, 4
        %v3543 = vshll.u32 %v3494, 16
        %v3545 = vrot.slane %v3543, 5
        %v3546 = vsel %vm367, %v3541, %v3545
        %v3548 = vshrl.u32 %v3495, 16
        %v3550 = vrot.slane %v3548, 4
        %v3551 = vshll.u32 %v3495, 16
        %v3553 = vrot.slane %v3551, 5
        %v3554 = vor.u32 %v3550, %v3553
        %v3555 = vrot.slane %v3554, 4
        %v3557 = vshll.u32 %v3496, 16
        %v3559 = vrot.slane %v3557, 5
        %v3560 = vsel %vm367, %v3555, %v3559
        %v3562 = vshrl.u32 %v3497, 16
        %v3564 = vrot.slane %v3562, 4
        %v3565 = vshll.u32 %v3497, 16
        %v3567 = vrot.slane %v3565, 5
        %v3568 = vor.u32 %v3564, %v3567
        %v3569 = vrot.slane %v3568, 4
        %v3571 = vshll.u32 %v3498, 16
        %v3573 = vrot.slane %v3571, 5
        %v3574 = vsel %vm367, %v3569, %v3573
        %v3576 = vshrl.u32 %v3499, 16
        %v3578 = vrot.slane %v3576, 4
        %v3579 = vshll.u32 %v3499, 16
        %v3581 = vrot.slane %v3579, 5
        %v3582 = vor.u32 %v3578, %v3581
        %v3583 = vrot.slane %v3582, 4
        %v3585 = vshll.u32 %v3500, 16
        %v3587 = vrot.slane %v3585, 5
        %v3588 = vsel %vm367, %v3583, %v3587
        %v3590 = vshrl.u32 %v3501, 16
        %v3592 = vrot.slane %v3590, 4
        %v3593 = vshll.u32 %v3501, 16
        %v3595 = vrot.slane %v3593, 5
        %v3596 = vor.u32 %v3592, %v3595
        %v3597 = vrot.slane %v3596, 4
        %v3599 = vshll.u32 %v3502, 16
        %v3601 = vrot.slane %v3599, 5
        %v3602 = vsel %vm367, %v3597, %v3601
        %v3604 = vshrl.u32 %v3503, 16
        %v3606 = vrot.slane %v3604, 4
        %v3607 = vshll.u32 %v3503, 16
        %v3609 = vrot.slane %v3607, 5
        %v3610 = vor.u32 %v3606, %v3609
        %v3611 = vrot.slane %v3610, 4
        %v3613 = vshll.u32 %v3504, 16
        %v3615 = vrot.slane %v3613, 5
        %v3616 = vsel %vm367, %v3611, %v3615
        %s3617 = scalar_lea.vmem %s3, 38
        %v3618 = vld [vmem:[%s3617] sm:$0x3]
        %v3619 = vunpack.c.l.b16 %v3518
        %v3620 = vunpack.c.l.b16 %v3532
        %v3621 = vunpack.c.l.b16 %v3546
        %v3622 = vunpack.c.l.b16 %v3560
        %v3623 = vunpack.c.l.b16 %v3574
        %v3624 = vunpack.c.l.b16 %v3588
        %v3625 = vunpack.c.l.b16 %v3602
        %v3626 = vunpack.c.l.b16 %v3616
        %v3627 = vpack.c.b16 %v3620, %v3619
        %v3628 = vpack.c.b16 %v3622, %v3621
        %v3629 = vpack.c.b16 %v3624, %v3623
        %v3630 = vpack.c.b16 %v3626, %v3625
        %v3632 = vsel %vm494, %v3627, 0
        %v3635 = vsel %vm494, %v3628, 0
        %v3638 = vsel %vm494, %v3629, 0
        %v3641 = vsel %vm494, %v3630, 0
        %v3644 = vsel %vm507, %v3618, 0
        %3646 = vmatprep.subr.bf16.mxu0 0
        %3647 = vmatpush1.bf16.msra.mxu0 %v3644
        %3648 = vmatprep.subr.bf16.mxu0 0
        %3649 = vmatpush1.bf16.msra.mxu0 0
        %3650 = vmatprep.subr.bf16.mxu0 0
        %3651 = vmatpush1.bf16.msra.mxu0 0
        %3652 = vmatprep.subr.bf16.mxu0 0
        %3653 = vmatpush1.bf16.msra.mxu0 0
        %3654 = vmatprep.subr.bf16.mxu0 0
        %3655 = vmatpush1.bf16.msra.mxu0 0
        %3656 = vmatprep.subr.bf16.mxu0 0
        %3657 = vmatpush1.bf16.msra.mxu0 0
        %3658 = vmatprep.subr.bf16.mxu0 0
        %3659 = vmatpush1.bf16.msra.mxu0 0
        %3660 = vmatprep.subr.bf16.mxu0 0
        %3661 = vmatpush1.bf16.msra.mxu0 0
        %3662 = vmatprep.subr.bf16.mxu0 0
        %3663 = vmatpush1.bf16.msra.mxu0 0
        %3664 = vmatprep.subr.bf16.mxu0 0
        %3665 = vmatpush1.bf16.msra.mxu0 0
        %3666 = vmatprep.subr.bf16.mxu0 0
        %3667 = vmatpush1.bf16.msra.mxu0 0
        %3668 = vmatprep.subr.bf16.mxu0 0
        %3669 = vmatpush1.bf16.msra.mxu0 0
        %3670 = vmatprep.subr.bf16.mxu0 0
        %3671 = vmatpush1.bf16.msra.mxu0 0
        %3672 = vmatprep.subr.bf16.mxu0 0
        %3673 = vmatpush1.bf16.msra.mxu0 0
        %3674 = vmatprep.subr.bf16.mxu0 0
        %3675 = vmatpush1.bf16.msra.mxu0 0
        %3676 = vmatprep.subr.bf16.mxu0 0
        %3677 = vmatpush1.bf16.msra.mxu0 0
        %3678 = vmatprep.mubr.bf16.mxu0 0
        %3679 = vmatmul.mubr.bf16.gmra.mrb[0].mxu0 %v3632
        %v3680 = vpop.f32.mrb[0].mxu0
        %v3681 = vadd.f32 0.0, %v3680
        %v3682 = vpop.f32.mrb[0].mxu0
        %v3683 = vpop.f32.mrb[0].mxu0
        %v3684 = vadd.f32 0.0, %v3683
        %v3685 = vpop.f32.mrb[0].mxu0
        %3686 = vmatprep.mubr.bf16.mxu0 0
        %3687 = vmatmul.mubr.bf16.gmra.mrb[0].mxu0 %v3635
        %v3688 = vpop.f32.mrb[0].mxu0
        %v3689 = vadd.f32 0.0, %v3688
        %v3690 = vpop.f32.mrb[0].mxu0
        %v3691 = vpop.f32.mrb[0].mxu0
        %v3692 = vadd.f32 0.0, %v3691
        %v3693 = vpop.f32.mrb[0].mxu0
        %3694 = vmatprep.mubr.bf16.mxu0 0
        %3695 = vmatmul.mubr.bf16.gmra.mrb[0].mxu0 %v3638
        %v3696 = vpop.f32.mrb[0].mxu0
        %v3697 = vadd.f32 0.0, %v3696
        %v3698 = vpop.f32.mrb[0].mxu0
        %v3699 = vpop.f32.mrb[0].mxu0
        %v3700 = vadd.f32 0.0, %v3699
        %v3701 = vpop.f32.mrb[0].mxu0
        %3702 = vmatprep.mubr.bf16.mxu0 0
        %3703 = vmatmul.mubr.bf16.gmra.mrb[0].mxu0 %v3641
        %v3704 = vpop.f32.mrb[0].mxu0
        %v3705 = vadd.f32 0.0, %v3704
        %v3706 = vpop.f32.mrb[0].mxu0
        %v3707 = vpop.f32.mrb[0].mxu0
        %v3708 = vadd.f32 0.0, %v3707
        %v3709 = vpop.f32.mrb[0].mxu0
        %3710 = vdwg.mxu0
        %v3711 = vadd.f32 %v3481, %v3681
        %v3712 = vadd.f32 %v3482, %v3684
        %v3713 = vadd.f32 %v3483, %v3689
        %v3714 = vadd.f32 %v3484, %v3692
        %v3715 = vadd.f32 %v3485, %v3697
        %v3716 = vadd.f32 %v3486, %v3700
        %v3717 = vadd.f32 %v3487, %v3705
        %v3718 = vadd.f32 %v3488, %v3708
        %v3719 = vld [vmem:[%s344] sm:$0xe]
        %v3720 = vld [vmem:[%s344 + $0x8] sm:$0xe]
        %v3721 = vld [vmem:[%s344 + $0x10] sm:$0xe]
        %v3722 = vld [vmem:[%s344 + $0x18] sm:$0xe]
        %v3723 = vld [vmem:[%s344 + $0x20] sm:$0xe]
        %v3724 = vld [vmem:[%s344 + $0x28] sm:$0xe]
        %v3725 = vld [vmem:[%s344 + $0x30] sm:$0xe]
        %v3726 = vld [vmem:[%s344 + $0x38] sm:$0xe]
        %v3743 = vrot.slane %v3719, 5
        %v3744 = vrot.slane %v3743, 4
        %v3745 = vrot.slane %v3490, 5
        %v3746 = vsel %vm702, %v3744, %v3745
        %v3747 = vrot.slane %v3720, 5
        %v3748 = vrot.slane %v3747, 4
        %v3749 = vrot.slane %v3492, 5
        %v3750 = vsel %vm702, %v3748, %v3749
        %v3751 = vrot.slane %v3721, 5
        %v3752 = vrot.slane %v3751, 4
        %v3753 = vrot.slane %v3494, 5
        %v3754 = vsel %vm702, %v3752, %v3753
        %v3755 = vrot.slane %v3722, 5
        %v3756 = vrot.slane %v3755, 4
        %v3757 = vrot.slane %v3496, 5
        %v3758 = vsel %vm702, %v3756, %v3757
        %v3759 = vrot.slane %v3723, 5
        %v3760 = vrot.slane %v3759, 4
        %v3761 = vrot.slane %v3498, 5
        %v3762 = vsel %vm702, %v3760, %v3761
        %v3763 = vrot.slane %v3724, 5
        %v3764 = vrot.slane %v3763, 4
        %v3765 = vrot.slane %v3500, 5
        %v3766 = vsel %vm702, %v3764, %v3765
        %v3767 = vrot.slane %v3725, 5
        %v3768 = vrot.slane %v3767, 4
        %v3769 = vrot.slane %v3502, 5
        %v3770 = vsel %vm702, %v3768, %v3769
        %v3771 = vrot.slane %v3726, 5
        %v3772 = vrot.slane %v3771, 4
        %v3773 = vrot.slane %v3504, 5
        %v3774 = vsel %vm702, %v3772, %v3773
        %s3775 = scalar_lea.vmem %s3, 40
        %v3776 = vld [vmem:[%s3775] sm:$0x3]
        %v3777 = vunpack.c.l.b16 %v3746
        %v3778 = vunpack.c.l.b16 %v3750
        %v3779 = vunpack.c.l.b16 %v3754
        %v3780 = vunpack.c.l.b16 %v3758
        %v3781 = vunpack.c.l.b16 %v3762
        %v3782 = vunpack.c.l.b16 %v3766
        %v3783 = vunpack.c.l.b16 %v3770
        %v3784 = vunpack.c.l.b16 %v3774
        %v3785 = vpack.c.b16 %v3778, %v3777
        %v3786 = vpack.c.b16 %v3780, %v3779
        %v3787 = vpack.c.b16 %v3782, %v3781
        %v3788 = vpack.c.b16 %v3784, %v3783
        %v3790 = vsel %vm494, %v3785, 0
        %v3793 = vsel %vm494, %v3786, 0
        %v3796 = vsel %vm494, %v3787, 0
        %v3799 = vsel %vm494, %v3788, 0
        %v3802 = vsel %vm507, %v3776, 0
        %3804 = vmatprep.subr.bf16.mxu0 0
        %3805 = vmatpush1.bf16.msra.mxu0 %v3802
        %3806 = vmatprep.subr.bf16.mxu0 0
        %3807 = vmatpush1.bf16.msra.mxu0 0
        %3808 = vmatprep.subr.bf16.mxu0 0
        %3809 = vmatpush1.bf16.msra.mxu0 0
        %3810 = vmatprep.subr.bf16.mxu0 0
        %3811 = vmatpush1.bf16.msra.mxu0 0
        %3812 = vmatprep.subr.bf16.mxu0 0
        %3813 = vmatpush1.bf16.msra.mxu0 0
        %3814 = vmatprep.subr.bf16.mxu0 0
        %3815 = vmatpush1.bf16.msra.mxu0 0
        %3816 = vmatprep.subr.bf16.mxu0 0
        %3817 = vmatpush1.bf16.msra.mxu0 0
        %3818 = vmatprep.subr.bf16.mxu0 0
        %3819 = vmatpush1.bf16.msra.mxu0 0
        %3820 = vmatprep.subr.bf16.mxu0 0
        %3821 = vmatpush1.bf16.msra.mxu0 0
        %3822 = vmatprep.subr.bf16.mxu0 0
        %3823 = vmatpush1.bf16.msra.mxu0 0
        %3824 = vmatprep.subr.bf16.mxu0 0
        %3825 = vmatpush1.bf16.msra.mxu0 0
        %3826 = vmatprep.subr.bf16.mxu0 0
        %3827 = vmatpush1.bf16.msra.mxu0 0
        %3828 = vmatprep.subr.bf16.mxu0 0
        %3829 = vmatpush1.bf16.msra.mxu0 0
        %3830 = vmatprep.subr.bf16.mxu0 0
        %3831 = vmatpush1.bf16.msra.mxu0 0
        %3832 = vmatprep.subr.bf16.mxu0 0
        %3833 = vmatpush1.bf16.msra.mxu0 0
        %3834 = vmatprep.subr.bf16.mxu0 0
        %3835 = vmatpush1.bf16.msra.mxu0 0
        %3836 = vmatprep.mubr.bf16.mxu0 0
        %3837 = vmatmul.mubr.bf16.gmra.mrb[0].mxu0 %v3790
        %v3838 = vpop.f32.mrb[0].mxu0
        %v3839 = vadd.f32 0.0, %v3838
        %v3840 = vpop.f32.mrb[0].mxu0
        %v3841 = vpop.f32.mrb[0].mxu0
        %v3842 = vadd.f32 0.0, %v3841
        %v3843 = vpop.f32.mrb[0].mxu0
        %3844 = vmatprep.mubr.bf16.mxu0 0
        %3845 = vmatmul.mubr.bf16.gmra.mrb[0].mxu0 %v3793
        %v3846 = vpop.f32.mrb[0].mxu0
        %v3847 = vadd.f32 0.0, %v3846
        %v3848 = vpop.f32.mrb[0].mxu0
        %v3849 = vpop.f32.mrb[0].mxu0
        %v3850 = vadd.f32 0.0, %v3849
        %v3851 = vpop.f32.mrb[0].mxu0
        %3852 = vmatprep.mubr.bf16.mxu0 0
        %3853 = vmatmul.mubr.bf16.gmra.mrb[0].mxu0 %v3796
        %v3854 = vpop.f32.mrb[0].mxu0
        %v3855 = vadd.f32 0.0, %v3854
        %v3856 = vpop.f32.mrb[0].mxu0
        %v3857 = vpop.f32.mrb[0].mxu0
        %v3858 = vadd.f32 0.0, %v3857
        %v3859 = vpop.f32.mrb[0].mxu0
        %3860 = vmatprep.mubr.bf16.mxu0 0
        %3861 = vmatmul.mubr.bf16.gmra.mrb[0].mxu0 %v3799
        %v3862 = vpop.f32.mrb[0].mxu0
        %v3863 = vadd.f32 0.0, %v3862
        %v3864 = vpop.f32.mrb[0].mxu0
        %v3865 = vpop.f32.mrb[0].mxu0
        %v3866 = vadd.f32 0.0, %v3865
        %v3867 = vpop.f32.mrb[0].mxu0
        %3868 = vdwg.mxu0
        %v3869 = vadd.f32 %v3711, %v3839
        %v3870 = vadd.f32 %v3712, %v3842
        %v3871 = vadd.f32 %v3713, %v3847
        %v3872 = vadd.f32 %v3714, %v3850
        %v3873 = vadd.f32 %v3715, %v3855
        %v3874 = vadd.f32 %v3716, %v3858
        %v3875 = vadd.f32 %v3717, %v3863
        %v3876 = vadd.f32 %v3718, %v3866
        %s3877 = scalar_lea.vmem %s344, 8
        %v3878 = vld [vmem:[%s3877] sm:$0xf]
        %v3879 = vld [vmem:[%s3877 + $0x8] sm:$0xf]
        %v3880 = vld [vmem:[%s3877 + $0x10] sm:$0xf]
        %v3881 = vld [vmem:[%s3877 + $0x18] sm:$0xf]
        %v3882 = vld [vmem:[%s3877 + $0x20] sm:$0xf]
        %v3883 = vld [vmem:[%s3877 + $0x28] sm:$0xf]
        %v3884 = vld [vmem:[%s3877 + $0x30] sm:$0xf]
        %v3885 = vld [vmem:[%s3877 + $0x38] sm:$0xf]
        %s3886 = scalar_lea.vmem %s3, 42
        %v3887 = vld [vmem:[%s3886] sm:$0x3]
        %v3896 = vunpack.c.l.b16 %v3878
        %v3897 = vunpack.c.l.b16 %v3879
        %v3898 = vunpack.c.l.b16 %v3880
        %v3899 = vunpack.c.l.b16 %v3881
        %v3900 = vunpack.c.l.b16 %v3882
        %v3901 = vunpack.c.l.b16 %v3883
        %v3902 = vunpack.c.l.b16 %v3884
        %v3903 = vunpack.c.l.b16 %v3885
        %v3904 = vpack.c.b16 %v3897, %v3896
        %v3905 = vpack.c.b16 %v3899, %v3898
        %v3906 = vpack.c.b16 %v3901, %v3900
        %v3907 = vpack.c.b16 %v3903, %v3902
        %v3909 = vsel %vm494, %v3904, 0
        %v3912 = vsel %vm494, %v3905, 0
        %v3915 = vsel %vm494, %v3906, 0
        %v3918 = vsel %vm494, %v3907, 0
        %v3921 = vsel %vm507, %v3887, 0
        %3923 = vmatprep.subr.bf16.mxu0 0
        %3924 = vmatpush1.bf16.msra.mxu0 %v3921
        %3925 = vmatprep.subr.bf16.mxu0 0
        %3926 = vmatpush1.bf16.msra.mxu0 0
        %3927 = vmatprep.subr.bf16.mxu0 0
        %3928 = vmatpush1.bf16.msra.mxu0 0
        %3929 = vmatprep.subr.bf16.mxu0 0
        %3930 = vmatpush1.bf16.msra.mxu0 0
        %3931 = vmatprep.subr.bf16.mxu0 0
        %3932 = vmatpush1.bf16.msra.mxu0 0
        %3933 = vmatprep.subr.bf16.mxu0 0
        %3934 = vmatpush1.bf16.msra.mxu0 0
        %3935 = vmatprep.subr.bf16.mxu0 0
        %3936 = vmatpush1.bf16.msra.mxu0 0
        %3937 = vmatprep.subr.bf16.mxu0 0
        %3938 = vmatpush1.bf16.msra.mxu0 0
        %3939 = vmatprep.subr.bf16.mxu0 0
        %3940 = vmatpush1.bf16.msra.mxu0 0
        %3941 = vmatprep.subr.bf16.mxu0 0
        %3942 = vmatpush1.bf16.msra.mxu0 0
        %3943 = vmatprep.subr.bf16.mxu0 0
        %3944 = vmatpush1.bf16.msra.mxu0 0
        %3945 = vmatprep.subr.bf16.mxu0 0
        %3946 = vmatpush1.bf16.msra.mxu0 0
        %3947 = vmatprep.subr.bf16.mxu0 0
        %3948 = vmatpush1.bf16.msra.mxu0 0
        %3949 = vmatprep.subr.bf16.mxu0 0
        %3950 = vmatpush1.bf16.msra.mxu0 0
        %3951 = vmatprep.subr.bf16.mxu0 0
        %3952 = vmatpush1.bf16.msra.mxu0 0
        %3953 = vmatprep.subr.bf16.mxu0 0
        %3954 = vmatpush1.bf16.msra.mxu0 0
        %3955 = vmatprep.mubr.bf16.mxu0 0
        %3956 = vmatmul.mubr.bf16.gmra.mrb[0].mxu0 %v3909
        %v3957 = vpop.f32.mrb[0].mxu0
        %v3958 = vadd.f32 0.0, %v3957
        %v3959 = vpop.f32.mrb[0].mxu0
        %v3960 = vpop.f32.mrb[0].mxu0
        %v3961 = vadd.f32 0.0, %v3960
        %v3962 = vpop.f32.mrb[0].mxu0
        %3963 = vmatprep.mubr.bf16.mxu0 0
        %3964 = vmatmul.mubr.bf16.gmra.mrb[0].mxu0 %v3912
        %v3965 = vpop.f32.mrb[0].mxu0
        %v3966 = vadd.f32 0.0, %v3965
        %v3967 = vpop.f32.mrb[0].mxu0
        %v3968 = vpop.f32.mrb[0].mxu0
        %v3969 = vadd.f32 0.0, %v3968
        %v3970 = vpop.f32.mrb[0].mxu0
        %3971 = vmatprep.mubr.bf16.mxu0 0
        %3972 = vmatmul.mubr.bf16.gmra.mrb[0].mxu0 %v3915
        %v3973 = vpop.f32.mrb[0].mxu0
        %v3974 = vadd.f32 0.0, %v3973
        %v3975 = vpop.f32.mrb[0].mxu0
        %v3976 = vpop.f32.mrb[0].mxu0
        %v3977 = vadd.f32 0.0, %v3976
        %v3978 = vpop.f32.mrb[0].mxu0
        %3979 = vmatprep.mubr.bf16.mxu0 0
        %3980 = vmatmul.mubr.bf16.gmra.mrb[0].mxu0 %v3918
        %v3981 = vpop.f32.mrb[0].mxu0
        %v3982 = vadd.f32 0.0, %v3981
        %v3983 = vpop.f32.mrb[0].mxu0
        %v3984 = vpop.f32.mrb[0].mxu0
        %v3985 = vadd.f32 0.0, %v3984
        %v3986 = vpop.f32.mrb[0].mxu0
        %3987 = vdwg.mxu0
        %v3988 = vadd.f32 %v3869, %v3958
        %v3989 = vadd.f32 %v3870, %v3961
        %v3990 = vadd.f32 %v3871, %v3966
        %v3991 = vadd.f32 %v3872, %v3969
        %v3992 = vadd.f32 %v3873, %v3974
        %v3993 = vadd.f32 %v3874, %v3977
        %v3994 = vadd.f32 %v3875, %v3982
        %v3995 = vadd.f32 %v3876, %v3985
        %v3996 = vld [vmem:[%s3877] sm:$0xf]
        %v3997 = vld [vmem:[%s3877 + $0x4] sm:$0x1]
        %v3998 = vld [vmem:[%s3877 + $0x8] sm:$0xf]
        %v3999 = vld [vmem:[%s3877 + $0xc] sm:$0x1]
        %v4000 = vld [vmem:[%s3877 + $0x10] sm:$0xf]
        %v4001 = vld [vmem:[%s3877 + $0x14] sm:$0x1]
        %v4002 = vld [vmem:[%s3877 + $0x18] sm:$0xf]
        %v4003 = vld [vmem:[%s3877 + $0x1c] sm:$0x1]
        %v4004 = vld [vmem:[%s3877 + $0x20] sm:$0xf]
        %v4005 = vld [vmem:[%s3877 + $0x24] sm:$0x1]
        %v4006 = vld [vmem:[%s3877 + $0x28] sm:$0xf]
        %v4007 = vld [vmem:[%s3877 + $0x2c] sm:$0x1]
        %v4008 = vld [vmem:[%s3877 + $0x30] sm:$0xf]
        %v4009 = vld [vmem:[%s3877 + $0x34] sm:$0x1]
        %v4010 = vld [vmem:[%s3877 + $0x38] sm:$0xf]
        %v4011 = vld [vmem:[%s3877 + $0x3c] sm:$0x1]
        %v4013 = vshrl.u32 %v3996, 16
        %v4015 = vrot.slane %v4013, 4
        %v4016 = vshll.u32 %v3996, 16
        %v4018 = vrot.slane %v4016, 5
        %v4019 = vor.u32 %v4015, %v4018
        %v4020 = vrot.slane %v4019, 4
        %v4022 = vshll.u32 %v3997, 16
        %v4024 = vrot.slane %v4022, 5
        %v4025 = vsel %vm367, %v4020, %v4024
        %v4027 = vshrl.u32 %v3998, 16
        %v4029 = vrot.slane %v4027, 4
        %v4030 = vshll.u32 %v3998, 16
        %v4032 = vrot.slane %v4030, 5
        %v4033 = vor.u32 %v4029, %v4032
        %v4034 = vrot.slane %v4033, 4
        %v4036 = vshll.u32 %v3999, 16
        %v4038 = vrot.slane %v4036, 5
        %v4039 = vsel %vm367, %v4034, %v4038
        %v4041 = vshrl.u32 %v4000, 16
        %v4043 = vrot.slane %v4041, 4
        %v4044 = vshll.u32 %v4000, 16
        %v4046 = vrot.slane %v4044, 5
        %v4047 = vor.u32 %v4043, %v4046
        %v4048 = vrot.slane %v4047, 4
        %v4050 = vshll.u32 %v4001, 16
        %v4052 = vrot.slane %v4050, 5
        %v4053 = vsel %vm367, %v4048, %v4052
        %v4055 = vshrl.u32 %v4002, 16
        %v4057 = vrot.slane %v4055, 4
        %v4058 = vshll.u32 %v4002, 16
        %v4060 = vrot.slane %v4058, 5
        %v4061 = vor.u32 %v4057, %v4060
        %v4062 = vrot.slane %v4061, 4
        %v4064 = vshll.u32 %v4003, 16
        %v4066 = vrot.slane %v4064, 5
        %v4067 = vsel %vm367, %v4062, %v4066
        %v4069 = vshrl.u32 %v4004, 16
        %v4071 = vrot.slane %v4069, 4
        %v4072 = vshll.u32 %v4004, 16
        %v4074 = vrot.slane %v4072, 5
        %v4075 = vor.u32 %v4071, %v4074
        %v4076 = vrot.slane %v4075, 4
        %v4078 = vshll.u32 %v4005, 16
        %v4080 = vrot.slane %v4078, 5
        %v4081 = vsel %vm367, %v4076, %v4080
        %v4083 = vshrl.u32 %v4006, 16
        %v4085 = vrot.slane %v4083, 4
        %v4086 = vshll.u32 %v4006, 16
        %v4088 = vrot.slane %v4086, 5
        %v4089 = vor.u32 %v4085, %v4088
        %v4090 = vrot.slane %v4089, 4
        %v4092 = vshll.u32 %v4007, 16
        %v4094 = vrot.slane %v4092, 5
        %v4095 = vsel %vm367, %v4090, %v4094
        %v4097 = vshrl.u32 %v4008, 16
        %v4099 = vrot.slane %v4097, 4
        %v4100 = vshll.u32 %v4008, 16
        %v4102 = vrot.slane %v4100, 5
        %v4103 = vor.u32 %v4099, %v4102
        %v4104 = vrot.slane %v4103, 4
        %v4106 = vshll.u32 %v4009, 16
        %v4108 = vrot.slane %v4106, 5
        %v4109 = vsel %vm367, %v4104, %v4108
        %v4111 = vshrl.u32 %v4010, 16
        %v4113 = vrot.slane %v4111, 4
        %v4114 = vshll.u32 %v4010, 16
        %v4116 = vrot.slane %v4114, 5
        %v4117 = vor.u32 %v4113, %v4116
        %v4118 = vrot.slane %v4117, 4
        %v4120 = vshll.u32 %v4011, 16
        %v4122 = vrot.slane %v4120, 5
        %v4123 = vsel %vm367, %v4118, %v4122
        %s4124 = scalar_lea.vmem %s3, 44
        %v4125 = vld [vmem:[%s4124] sm:$0x3]
        %v4126 = vunpack.c.l.b16 %v4025
        %v4127 = vunpack.c.l.b16 %v4039
        %v4128 = vunpack.c.l.b16 %v4053
        %v4129 = vunpack.c.l.b16 %v4067
        %v4130 = vunpack.c.l.b16 %v4081
        %v4131 = vunpack.c.l.b16 %v4095
        %v4132 = vunpack.c.l.b16 %v4109
        %v4133 = vunpack.c.l.b16 %v4123
        %v4134 = vpack.c.b16 %v4127, %v4126
        %v4135 = vpack.c.b16 %v4129, %v4128
        %v4136 = vpack.c.b16 %v4131, %v4130
        %v4137 = vpack.c.b16 %v4133, %v4132
        %v4139 = vsel %vm494, %v4134, 0
        %v4142 = vsel %vm494, %v4135, 0
        %v4145 = vsel %vm494, %v4136, 0
        %v4148 = vsel %vm494, %v4137, 0
        %v4151 = vsel %vm507, %v4125, 0
        %4153 = vmatprep.subr.bf16.mxu0 0
        %4154 = vmatpush1.bf16.msra.mxu0 %v4151
        %4155 = vmatprep.subr.bf16.mxu0 0
        %4156 = vmatpush1.bf16.msra.mxu0 0
        %4157 = vmatprep.subr.bf16.mxu0 0
        %4158 = vmatpush1.bf16.msra.mxu0 0
        %4159 = vmatprep.subr.bf16.mxu0 0
        %4160 = vmatpush1.bf16.msra.mxu0 0
        %4161 = vmatprep.subr.bf16.mxu0 0
        %4162 = vmatpush1.bf16.msra.mxu0 0
        %4163 = vmatprep.subr.bf16.mxu0 0
        %4164 = vmatpush1.bf16.msra.mxu0 0
        %4165 = vmatprep.subr.bf16.mxu0 0
        %4166 = vmatpush1.bf16.msra.mxu0 0
        %4167 = vmatprep.subr.bf16.mxu0 0
        %4168 = vmatpush1.bf16.msra.mxu0 0
        %4169 = vmatprep.subr.bf16.mxu0 0
        %4170 = vmatpush1.bf16.msra.mxu0 0
        %4171 = vmatprep.subr.bf16.mxu0 0
        %4172 = vmatpush1.bf16.msra.mxu0 0
        %4173 = vmatprep.subr.bf16.mxu0 0
        %4174 = vmatpush1.bf16.msra.mxu0 0
        %4175 = vmatprep.subr.bf16.mxu0 0
        %4176 = vmatpush1.bf16.msra.mxu0 0
        %4177 = vmatprep.subr.bf16.mxu0 0
        %4178 = vmatpush1.bf16.msra.mxu0 0
        %4179 = vmatprep.subr.bf16.mxu0 0
        %4180 = vmatpush1.bf16.msra.mxu0 0
        %4181 = vmatprep.subr.bf16.mxu0 0
        %4182 = vmatpush1.bf16.msra.mxu0 0
        %4183 = vmatprep.subr.bf16.mxu0 0
        %4184 = vmatpush1.bf16.msra.mxu0 0
        %4185 = vmatprep.mubr.bf16.mxu0 0
        %4186 = vmatmul.mubr.bf16.gmra.mrb[0].mxu0 %v4139
        %v4187 = vpop.f32.mrb[0].mxu0
        %v4188 = vadd.f32 0.0, %v4187
        %v4189 = vpop.f32.mrb[0].mxu0
        %v4190 = vpop.f32.mrb[0].mxu0
        %v4191 = vadd.f32 0.0, %v4190
        %v4192 = vpop.f32.mrb[0].mxu0
        %4193 = vmatprep.mubr.bf16.mxu0 0
        %4194 = vmatmul.mubr.bf16.gmra.mrb[0].mxu0 %v4142
        %v4195 = vpop.f32.mrb[0].mxu0
        %v4196 = vadd.f32 0.0, %v4195
        %v4197 = vpop.f32.mrb[0].mxu0
        %v4198 = vpop.f32.mrb[0].mxu0
        %v4199 = vadd.f32 0.0, %v4198
        %v4200 = vpop.f32.mrb[0].mxu0
        %4201 = vmatprep.mubr.bf16.mxu0 0
        %4202 = vmatmul.mubr.bf16.gmra.mrb[0].mxu0 %v4145
        %v4203 = vpop.f32.mrb[0].mxu0
        %v4204 = vadd.f32 0.0, %v4203
        %v4205 = vpop.f32.mrb[0].mxu0
        %v4206 = vpop.f32.mrb[0].mxu0
        %v4207 = vadd.f32 0.0, %v4206
        %v4208 = vpop.f32.mrb[0].mxu0
        %4209 = vmatprep.mubr.bf16.mxu0 0
        %4210 = vmatmul.mubr.bf16.gmra.mrb[0].mxu0 %v4148
        %v4211 = vpop.f32.mrb[0].mxu0
        %v4212 = vadd.f32 0.0, %v4211
        %v4213 = vpop.f32.mrb[0].mxu0
        %v4214 = vpop.f32.mrb[0].mxu0
        %v4215 = vadd.f32 0.0, %v4214
        %v4216 = vpop.f32.mrb[0].mxu0
        %4217 = vdwg.mxu0
        %v4218 = vadd.f32 %v3988, %v4188
        %v4219 = vadd.f32 %v3989, %v4191
        %v4220 = vadd.f32 %v3990, %v4196
        %v4221 = vadd.f32 %v3991, %v4199
        %v4222 = vadd.f32 %v3992, %v4204
        %v4223 = vadd.f32 %v3993, %v4207
        %v4224 = vadd.f32 %v3994, %v4212
        %v4225 = vadd.f32 %v3995, %v4215
        %v4226 = vld [vmem:[%s3877] sm:$0xe]
        %v4227 = vld [vmem:[%s3877 + $0x8] sm:$0xe]
        %v4228 = vld [vmem:[%s3877 + $0x10] sm:$0xe]
        %v4229 = vld [vmem:[%s3877 + $0x18] sm:$0xe]
        %v4230 = vld [vmem:[%s3877 + $0x20] sm:$0xe]
        %v4231 = vld [vmem:[%s3877 + $0x28] sm:$0xe]
        %v4232 = vld [vmem:[%s3877 + $0x30] sm:$0xe]
        %v4233 = vld [vmem:[%s3877 + $0x38] sm:$0xe]
        %v4250 = vrot.slane %v4226, 5
        %v4251 = vrot.slane %v4250, 4
        %v4252 = vrot.slane %v3997, 5
        %v4253 = vsel %vm702, %v4251, %v4252
        %v4254 = vrot.slane %v4227, 5
        %v4255 = vrot.slane %v4254, 4
        %v4256 = vrot.slane %v3999, 5
        %v4257 = vsel %vm702, %v4255, %v4256
        %v4258 = vrot.slane %v4228, 5
        %v4259 = vrot.slane %v4258, 4
        %v4260 = vrot.slane %v4001, 5
        %v4261 = vsel %vm702, %v4259, %v4260
        %v4262 = vrot.slane %v4229, 5
        %v4263 = vrot.slane %v4262, 4
        %v4264 = vrot.slane %v4003, 5
        %v4265 = vsel %vm702, %v4263, %v4264
        %v4266 = vrot.slane %v4230, 5
        %v4267 = vrot.slane %v4266, 4
        %v4268 = vrot.slane %v4005, 5
        %v4269 = vsel %vm702, %v4267, %v4268
        %v4270 = vrot.slane %v4231, 5
        %v4271 = vrot.slane %v4270, 4
        %v4272 = vrot.slane %v4007, 5
        %v4273 = vsel %vm702, %v4271, %v4272
        %v4274 = vrot.slane %v4232, 5
        %v4275 = vrot.slane %v4274, 4
        %v4276 = vrot.slane %v4009, 5
        %v4277 = vsel %vm702, %v4275, %v4276
        %v4278 = vrot.slane %v4233, 5
        %v4279 = vrot.slane %v4278, 4
        %v4280 = vrot.slane %v4011, 5
        %v4281 = vsel %vm702, %v4279, %v4280
        %s4282 = scalar_lea.vmem %s3, 46
        %v4283 = vld [vmem:[%s4282] sm:$0x3]
        %v4284 = vunpack.c.l.b16 %v4253
        %v4285 = vunpack.c.l.b16 %v4257
        %v4286 = vunpack.c.l.b16 %v4261
        %v4287 = vunpack.c.l.b16 %v4265
        %v4288 = vunpack.c.l.b16 %v4269
        %v4289 = vunpack.c.l.b16 %v4273
        %v4290 = vunpack.c.l.b16 %v4277
        %v4291 = vunpack.c.l.b16 %v4281
        %v4292 = vpack.c.b16 %v4285, %v4284
        %v4293 = vpack.c.b16 %v4287, %v4286
        %v4294 = vpack.c.b16 %v4289, %v4288
        %v4295 = vpack.c.b16 %v4291, %v4290
        %v4297 = vsel %vm494, %v4292, 0
        %v4300 = vsel %vm494, %v4293, 0
        %v4303 = vsel %vm494, %v4294, 0
        %v4306 = vsel %vm494, %v4295, 0
        %v4309 = vsel %vm507, %v4283, 0
        %4311 = vmatprep.subr.bf16.mxu0 0
        %4312 = vmatpush1.bf16.msra.mxu0 %v4309
        %4313 = vmatprep.subr.bf16.mxu0 0
        %4314 = vmatpush1.bf16.msra.mxu0 0
        %4315 = vmatprep.subr.bf16.mxu0 0
        %4316 = vmatpush1.bf16.msra.mxu0 0
        %4317 = vmatprep.subr.bf16.mxu0 0
        %4318 = vmatpush1.bf16.msra.mxu0 0
        %4319 = vmatprep.subr.bf16.mxu0 0
        %4320 = vmatpush1.bf16.msra.mxu0 0
        %4321 = vmatprep.subr.bf16.mxu0 0
        %4322 = vmatpush1.bf16.msra.mxu0 0
        %4323 = vmatprep.subr.bf16.mxu0 0
        %4324 = vmatpush1.bf16.msra.mxu0 0
        %4325 = vmatprep.subr.bf16.mxu0 0
        %4326 = vmatpush1.bf16.msra.mxu0 0
        %4327 = vmatprep.subr.bf16.mxu0 0
        %4328 = vmatpush1.bf16.msra.mxu0 0
        %4329 = vmatprep.subr.bf16.mxu0 0
        %4330 = vmatpush1.bf16.msra.mxu0 0
        %4331 = vmatprep.subr.bf16.mxu0 0
        %4332 = vmatpush1.bf16.msra.mxu0 0
        %4333 = vmatprep.subr.bf16.mxu0 0
        %4334 = vmatpush1.bf16.msra.mxu0 0
        %4335 = vmatprep.subr.bf16.mxu0 0
        %4336 = vmatpush1.bf16.msra.mxu0 0
        %4337 = vmatprep.subr.bf16.mxu0 0
        %4338 = vmatpush1.bf16.msra.mxu0 0
        %4339 = vmatprep.subr.bf16.mxu0 0
        %4340 = vmatpush1.bf16.msra.mxu0 0
        %4341 = vmatprep.subr.bf16.mxu0 0
        %4342 = vmatpush1.bf16.msra.mxu0 0
        %4343 = vmatprep.mubr.bf16.mxu0 0
        %4344 = vmatmul.mubr.bf16.gmra.mrb[0].mxu0 %v4297
        %v4345 = vpop.f32.mrb[0].mxu0
        %v4346 = vadd.f32 0.0, %v4345
        %v4347 = vpop.f32.mrb[0].mxu0
        %v4348 = vpop.f32.mrb[0].mxu0
        %v4349 = vadd.f32 0.0, %v4348
        %v4350 = vpop.f32.mrb[0].mxu0
        %4351 = vmatprep.mubr.bf16.mxu0 0
        %4352 = vmatmul.mubr.bf16.gmra.mrb[0].mxu0 %v4300
        %v4353 = vpop.f32.mrb[0].mxu0
        %v4354 = vadd.f32 0.0, %v4353
        %v4355 = vpop.f32.mrb[0].mxu0
        %v4356 = vpop.f32.mrb[0].mxu0
        %v4357 = vadd.f32 0.0, %v4356
        %v4358 = vpop.f32.mrb[0].mxu0
        %4359 = vmatprep.mubr.bf16.mxu0 0
        %4360 = vmatmul.mubr.bf16.gmra.mrb[0].mxu0 %v4303
        %v4361 = vpop.f32.mrb[0].mxu0
        %v4362 = vadd.f32 0.0, %v4361
        %v4363 = vpop.f32.mrb[0].mxu0
        %v4364 = vpop.f32.mrb[0].mxu0
        %v4365 = vadd.f32 0.0, %v4364
        %v4366 = vpop.f32.mrb[0].mxu0
        %4367 = vmatprep.mubr.bf16.mxu0 0
        %4368 = vmatmul.mubr.bf16.gmra.mrb[0].mxu0 %v4306
        %v4369 = vpop.f32.mrb[0].mxu0
        %v4370 = vadd.f32 0.0, %v4369
        %v4371 = vpop.f32.mrb[0].mxu0
        %v4372 = vpop.f32.mrb[0].mxu0
        %v4373 = vadd.f32 0.0, %v4372
        %v4374 = vpop.f32.mrb[0].mxu0
        %4375 = vdwg.mxu0
        %v4376 = vadd.f32 %v4218, %v4346
        %v4377 = vadd.f32 %v4219, %v4349
        %v4378 = vadd.f32 %v4220, %v4354
        %v4379 = vadd.f32 %v4221, %v4357
        %v4380 = vadd.f32 %v4222, %v4362
        %v4381 = vadd.f32 %v4223, %v4365
        %v4382 = vadd.f32 %v4224, %v4370
        %v4383 = vadd.f32 %v4225, %v4373
        %s4384 = scalar_lea.vmem %s344, 16
        %v4385 = vld [vmem:[%s4384] sm:$0xf]
        %v4386 = vld [vmem:[%s4384 + $0x8] sm:$0xf]
        %v4387 = vld [vmem:[%s4384 + $0x10] sm:$0xf]
        %v4388 = vld [vmem:[%s4384 + $0x18] sm:$0xf]
        %v4389 = vld [vmem:[%s4384 + $0x20] sm:$0xf]
        %v4390 = vld [vmem:[%s4384 + $0x28] sm:$0xf]
        %v4391 = vld [vmem:[%s4384 + $0x30] sm:$0xf]
        %v4392 = vld [vmem:[%s4384 + $0x38] sm:$0xf]
        %s4393 = scalar_lea.vmem %s3, 48
        %v4394 = vld [vmem:[%s4393] sm:$0x3]
        %v4403 = vunpack.c.l.b16 %v4385
        %v4404 = vunpack.c.l.b16 %v4386
        %v4405 = vunpack.c.l.b16 %v4387
        %v4406 = vunpack.c.l.b16 %v4388
        %v4407 = vunpack.c.l.b16 %v4389
        %v4408 = vunpack.c.l.b16 %v4390
        %v4409 = vunpack.c.l.b16 %v4391
        %v4410 = vunpack.c.l.b16 %v4392
        %v4411 = vpack.c.b16 %v4404, %v4403
        %v4412 = vpack.c.b16 %v4406, %v4405
        %v4413 = vpack.c.b16 %v4408, %v4407
        %v4414 = vpack.c.b16 %v4410, %v4409
        %v4416 = vsel %vm494, %v4411, 0
        %v4419 = vsel %vm494, %v4412, 0
        %v4422 = vsel %vm494, %v4413, 0
        %v4425 = vsel %vm494, %v4414, 0
        %v4428 = vsel %vm507, %v4394, 0
        %4430 = vmatprep.subr.bf16.mxu0 0
        %4431 = vmatpush1.bf16.msra.mxu0 %v4428
        %4432 = vmatprep.subr.bf16.mxu0 0
        %4433 = vmatpush1.bf16.msra.mxu0 0
        %4434 = vmatprep.subr.bf16.mxu0 0
        %4435 = vmatpush1.bf16.msra.mxu0 0
        %4436 = vmatprep.subr.bf16.mxu0 0
        %4437 = vmatpush1.bf16.msra.mxu0 0
        %4438 = vmatprep.subr.bf16.mxu0 0
        %4439 = vmatpush1.bf16.msra.mxu0 0
        %4440 = vmatprep.subr.bf16.mxu0 0
        %4441 = vmatpush1.bf16.msra.mxu0 0
        %4442 = vmatprep.subr.bf16.mxu0 0
        %4443 = vmatpush1.bf16.msra.mxu0 0
        %4444 = vmatprep.subr.bf16.mxu0 0
        %4445 = vmatpush1.bf16.msra.mxu0 0
        %4446 = vmatprep.subr.bf16.mxu0 0
        %4447 = vmatpush1.bf16.msra.mxu0 0
        %4448 = vmatprep.subr.bf16.mxu0 0
        %4449 = vmatpush1.bf16.msra.mxu0 0
        %4450 = vmatprep.subr.bf16.mxu0 0
        %4451 = vmatpush1.bf16.msra.mxu0 0
        %4452 = vmatprep.subr.bf16.mxu0 0
        %4453 = vmatpush1.bf16.msra.mxu0 0
        %4454 = vmatprep.subr.bf16.mxu0 0
        %4455 = vmatpush1.bf16.msra.mxu0 0
        %4456 = vmatprep.subr.bf16.mxu0 0
        %4457 = vmatpush1.bf16.msra.mxu0 0
        %4458 = vmatprep.subr.bf16.mxu0 0
        %4459 = vmatpush1.bf16.msra.mxu0 0
        %4460 = vmatprep.subr.bf16.mxu0 0
        %4461 = vmatpush1.bf16.msra.mxu0 0
        %4462 = vmatprep.mubr.bf16.mxu0 0
        %4463 = vmatmul.mubr.bf16.gmra.mrb[0].mxu0 %v4416
        %v4464 = vpop.f32.mrb[0].mxu0
        %v4465 = vadd.f32 0.0, %v4464
        %v4466 = vpop.f32.mrb[0].mxu0
        %v4467 = vpop.f32.mrb[0].mxu0
        %v4468 = vadd.f32 0.0, %v4467
        %v4469 = vpop.f32.mrb[0].mxu0
        %4470 = vmatprep.mubr.bf16.mxu0 0
        %4471 = vmatmul.mubr.bf16.gmra.mrb[0].mxu0 %v4419
        %v4472 = vpop.f32.mrb[0].mxu0
        %v4473 = vadd.f32 0.0, %v4472
        %v4474 = vpop.f32.mrb[0].mxu0
        %v4475 = vpop.f32.mrb[0].mxu0
        %v4476 = vadd.f32 0.0, %v4475
        %v4477 = vpop.f32.mrb[0].mxu0
        %4478 = vmatprep.mubr.bf16.mxu0 0
        %4479 = vmatmul.mubr.bf16.gmra.mrb[0].mxu0 %v4422
        %v4480 = vpop.f32.mrb[0].mxu0
        %v4481 = vadd.f32 0.0, %v4480
        %v4482 = vpop.f32.mrb[0].mxu0
        %v4483 = vpop.f32.mrb[0].mxu0
        %v4484 = vadd.f32 0.0, %v4483
        %v4485 = vpop.f32.mrb[0].mxu0
        %4486 = vmatprep.mubr.bf16.mxu0 0
        %4487 = vmatmul.mubr.bf16.gmra.mrb[0].mxu0 %v4425
        %v4488 = vpop.f32.mrb[0].mxu0
        %v4489 = vadd.f32 0.0, %v4488
        %v4490 = vpop.f32.mrb[0].mxu0
        %v4491 = vpop.f32.mrb[0].mxu0
        %v4492 = vadd.f32 0.0, %v4491
        %v4493 = vpop.f32.mrb[0].mxu0
        %4494 = vdwg.mxu0
        %v4495 = vadd.f32 %v4376, %v4465
        %v4496 = vadd.f32 %v4377, %v4468
        %v4497 = vadd.f32 %v4378, %v4473
        %v4498 = vadd.f32 %v4379, %v4476
        %v4499 = vadd.f32 %v4380, %v4481
        %v4500 = vadd.f32 %v4381, %v4484
        %v4501 = vadd.f32 %v4382, %v4489
        %v4502 = vadd.f32 %v4383, %v4492
        %v4503 = vld [vmem:[%s4384] sm:$0xf]
        %v4504 = vld [vmem:[%s4384 + $0x4] sm:$0x1]
        %v4505 = vld [vmem:[%s4384 + $0x8] sm:$0xf]
        %v4506 = vld [vmem:[%s4384 + $0xc] sm:$0x1]
        %v4507 = vld [vmem:[%s4384 + $0x10] sm:$0xf]
        %v4508 = vld [vmem:[%s4384 + $0x14] sm:$0x1]
        %v4509 = vld [vmem:[%s4384 + $0x18] sm:$0xf]
        %v4510 = vld [vmem:[%s4384 + $0x1c] sm:$0x1]
        %v4511 = vld [vmem:[%s4384 + $0x20] sm:$0xf]
        %v4512 = vld [vmem:[%s4384 + $0x24] sm:$0x1]
        %v4513 = vld [vmem:[%s4384 + $0x28] sm:$0xf]
        %v4514 = vld [vmem:[%s4384 + $0x2c] sm:$0x1]
        %v4515 = vld [vmem:[%s4384 + $0x30] sm:$0xf]
        %v4516 = vld [vmem:[%s4384 + $0x34] sm:$0x1]
        %v4517 = vld [vmem:[%s4384 + $0x38] sm:$0xf]
        %v4518 = vld [vmem:[%s4384 + $0x3c] sm:$0x1]
        %v4520 = vshrl.u32 %v4503, 16
        %v4522 = vrot.slane %v4520, 4
        %v4523 = vshll.u32 %v4503, 16
        %v4525 = vrot.slane %v4523, 5
        %v4526 = vor.u32 %v4522, %v4525
        %v4527 = vrot.slane %v4526, 4
        %v4529 = vshll.u32 %v4504, 16
        %v4531 = vrot.slane %v4529, 5
        %v4532 = vsel %vm367, %v4527, %v4531
        %v4534 = vshrl.u32 %v4505, 16
        %v4536 = vrot.slane %v4534, 4
        %v4537 = vshll.u32 %v4505, 16
        %v4539 = vrot.slane %v4537, 5
        %v4540 = vor.u32 %v4536, %v4539
        %v4541 = vrot.slane %v4540, 4
        %v4543 = vshll.u32 %v4506, 16
        %v4545 = vrot.slane %v4543, 5
        %v4546 = vsel %vm367, %v4541, %v4545
        %v4548 = vshrl.u32 %v4507, 16
        %v4550 = vrot.slane %v4548, 4
        %v4551 = vshll.u32 %v4507, 16
        %v4553 = vrot.slane %v4551, 5
        %v4554 = vor.u32 %v4550, %v4553
        %v4555 = vrot.slane %v4554, 4
        %v4557 = vshll.u32 %v4508, 16
        %v4559 = vrot.slane %v4557, 5
        %v4560 = vsel %vm367, %v4555, %v4559
        %v4562 = vshrl.u32 %v4509, 16
        %v4564 = vrot.slane %v4562, 4
        %v4565 = vshll.u32 %v4509, 16
        %v4567 = vrot.slane %v4565, 5
        %v4568 = vor.u32 %v4564, %v4567
        %v4569 = vrot.slane %v4568, 4
        %v4571 = vshll.u32 %v4510, 16
        %v4573 = vrot.slane %v4571, 5
        %v4574 = vsel %vm367, %v4569, %v4573
        %v4576 = vshrl.u32 %v4511, 16
        %v4578 = vrot.slane %v4576, 4
        %v4579 = vshll.u32 %v4511, 16
        %v4581 = vrot.slane %v4579, 5
        %v4582 = vor.u32 %v4578, %v4581
        %v4583 = vrot.slane %v4582, 4
        %v4585 = vshll.u32 %v4512, 16
        %v4587 = vrot.slane %v4585, 5
        %v4588 = vsel %vm367, %v4583, %v4587
        %v4590 = vshrl.u32 %v4513, 16
        %v4592 = vrot.slane %v4590, 4
        %v4593 = vshll.u32 %v4513, 16
        %v4595 = vrot.slane %v4593, 5
        %v4596 = vor.u32 %v4592, %v4595
        %v4597 = vrot.slane %v4596, 4
        %v4599 = vshll.u32 %v4514, 16
        %v4601 = vrot.slane %v4599, 5
        %v4602 = vsel %vm367, %v4597, %v4601
        %v4604 = vshrl.u32 %v4515, 16
        %v4606 = vrot.slane %v4604, 4
        %v4607 = vshll.u32 %v4515, 16
        %v4609 = vrot.slane %v4607, 5
        %v4610 = vor.u32 %v4606, %v4609
        %v4611 = vrot.slane %v4610, 4
        %v4613 = vshll.u32 %v4516, 16
        %v4615 = vrot.slane %v4613, 5
        %v4616 = vsel %vm367, %v4611, %v4615
        %v4618 = vshrl.u32 %v4517, 16
        %v4620 = vrot.slane %v4618, 4
        %v4621 = vshll.u32 %v4517, 16
        %v4623 = vrot.slane %v4621, 5
        %v4624 = vor.u32 %v4620, %v4623
        %v4625 = vrot.slane %v4624, 4
        %v4627 = vshll.u32 %v4518, 16
        %v4629 = vrot.slane %v4627, 5
        %v4630 = vsel %vm367, %v4625, %v4629
        %s4631 = scalar_lea.vmem %s3, 50
        %v4632 = vld [vmem:[%s4631] sm:$0x3]
        %v4633 = vunpack.c.l.b16 %v4532
        %v4634 = vunpack.c.l.b16 %v4546
        %v4635 = vunpack.c.l.b16 %v4560
        %v4636 = vunpack.c.l.b16 %v4574
        %v4637 = vunpack.c.l.b16 %v4588
        %v4638 = vunpack.c.l.b16 %v4602
        %v4639 = vunpack.c.l.b16 %v4616
        %v4640 = vunpack.c.l.b16 %v4630
        %v4641 = vpack.c.b16 %v4634, %v4633
        %v4642 = vpack.c.b16 %v4636, %v4635
        %v4643 = vpack.c.b16 %v4638, %v4637
        %v4644 = vpack.c.b16 %v4640, %v4639
        %v4646 = vsel %vm494, %v4641, 0
        %v4649 = vsel %vm494, %v4642, 0
        %v4652 = vsel %vm494, %v4643, 0
        %v4655 = vsel %vm494, %v4644, 0
        %v4658 = vsel %vm507, %v4632, 0
        %4660 = vmatprep.subr.bf16.mxu0 0
        %4661 = vmatpush1.bf16.msra.mxu0 %v4658
        %4662 = vmatprep.subr.bf16.mxu0 0
        %4663 = vmatpush1.bf16.msra.mxu0 0
        %4664 = vmatprep.subr.bf16.mxu0 0
        %4665 = vmatpush1.bf16.msra.mxu0 0
        %4666 = vmatprep.subr.bf16.mxu0 0
        %4667 = vmatpush1.bf16.msra.mxu0 0
        %4668 = vmatprep.subr.bf16.mxu0 0
        %4669 = vmatpush1.bf16.msra.mxu0 0
        %4670 = vmatprep.subr.bf16.mxu0 0
        %4671 = vmatpush1.bf16.msra.mxu0 0
        %4672 = vmatprep.subr.bf16.mxu0 0
        %4673 = vmatpush1.bf16.msra.mxu0 0
        %4674 = vmatprep.subr.bf16.mxu0 0
        %4675 = vmatpush1.bf16.msra.mxu0 0
        %4676 = vmatprep.subr.bf16.mxu0 0
        %4677 = vmatpush1.bf16.msra.mxu0 0
        %4678 = vmatprep.subr.bf16.mxu0 0
        %4679 = vmatpush1.bf16.msra.mxu0 0
        %4680 = vmatprep.subr.bf16.mxu0 0
        %4681 = vmatpush1.bf16.msra.mxu0 0
        %4682 = vmatprep.subr.bf16.mxu0 0
        %4683 = vmatpush1.bf16.msra.mxu0 0
        %4684 = vmatprep.subr.bf16.mxu0 0
        %4685 = vmatpush1.bf16.msra.mxu0 0
        %4686 = vmatprep.subr.bf16.mxu0 0
        %4687 = vmatpush1.bf16.msra.mxu0 0
        %4688 = vmatprep.subr.bf16.mxu0 0
        %4689 = vmatpush1.bf16.msra.mxu0 0
        %4690 = vmatprep.subr.bf16.mxu0 0
        %4691 = vmatpush1.bf16.msra.mxu0 0
        %4692 = vmatprep.mubr.bf16.mxu0 0
        %4693 = vmatmul.mubr.bf16.gmra.mrb[0].mxu0 %v4646
        %v4694 = vpop.f32.mrb[0].mxu0
        %v4695 = vadd.f32 0.0, %v4694
        %v4696 = vpop.f32.mrb[0].mxu0
        %v4697 = vpop.f32.mrb[0].mxu0
        %v4698 = vadd.f32 0.0, %v4697
        %v4699 = vpop.f32.mrb[0].mxu0
        %4700 = vmatprep.mubr.bf16.mxu0 0
        %4701 = vmatmul.mubr.bf16.gmra.mrb[0].mxu0 %v4649
        %v4702 = vpop.f32.mrb[0].mxu0
        %v4703 = vadd.f32 0.0, %v4702
        %v4704 = vpop.f32.mrb[0].mxu0
        %v4705 = vpop.f32.mrb[0].mxu0
        %v4706 = vadd.f32 0.0, %v4705
        %v4707 = vpop.f32.mrb[0].mxu0
        %4708 = vmatprep.mubr.bf16.mxu0 0
        %4709 = vmatmul.mubr.bf16.gmra.mrb[0].mxu0 %v4652
        %v4710 = vpop.f32.mrb[0].mxu0
        %v4711 = vadd.f32 0.0, %v4710
        %v4712 = vpop.f32.mrb[0].mxu0
        %v4713 = vpop.f32.mrb[0].mxu0
        %v4714 = vadd.f32 0.0, %v4713
        %v4715 = vpop.f32.mrb[0].mxu0
        %4716 = vmatprep.mubr.bf16.mxu0 0
        %4717 = vmatmul.mubr.bf16.gmra.mrb[0].mxu0 %v4655
        %v4718 = vpop.f32.mrb[0].mxu0
        %v4719 = vadd.f32 0.0, %v4718
        %v4720 = vpop.f32.mrb[0].mxu0
        %v4721 = vpop.f32.mrb[0].mxu0
        %v4722 = vadd.f32 0.0, %v4721
        %v4723 = vpop.f32.mrb[0].mxu0
        %4724 = vdwg.mxu0
        %v4725 = vadd.f32 %v4495, %v4695
        %v4726 = vadd.f32 %v4496, %v4698
        %v4727 = vadd.f32 %v4497, %v4703
        %v4728 = vadd.f32 %v4498, %v4706
        %v4729 = vadd.f32 %v4499, %v4711
        %v4730 = vadd.f32 %v4500, %v4714
        %v4731 = vadd.f32 %v4501, %v4719
        %v4732 = vadd.f32 %v4502, %v4722
        %v4733 = vld [vmem:[%s4384] sm:$0xe]
        %v4734 = vld [vmem:[%s4384 + $0x8] sm:$0xe]
        %v4735 = vld [vmem:[%s4384 + $0x10] sm:$0xe]
        %v4736 = vld [vmem:[%s4384 + $0x18] sm:$0xe]
        %v4737 = vld [vmem:[%s4384 + $0x20] sm:$0xe]
        %v4738 = vld [vmem:[%s4384 + $0x28] sm:$0xe]
        %v4739 = vld [vmem:[%s4384 + $0x30] sm:$0xe]
        %v4740 = vld [vmem:[%s4384 + $0x38] sm:$0xe]
        %v4757 = vrot.slane %v4733, 5
        %v4758 = vrot.slane %v4757, 4
        %v4759 = vrot.slane %v4504, 5
        %v4760 = vsel %vm702, %v4758, %v4759
        %v4761 = vrot.slane %v4734, 5
        %v4762 = vrot.slane %v4761, 4
        %v4763 = vrot.slane %v4506, 5
        %v4764 = vsel %vm702, %v4762, %v4763
        %v4765 = vrot.slane %v4735, 5
        %v4766 = vrot.slane %v4765, 4
        %v4767 = vrot.slane %v4508, 5
        %v4768 = vsel %vm702, %v4766, %v4767
        %v4769 = vrot.slane %v4736, 5
        %v4770 = vrot.slane %v4769, 4
        %v4771 = vrot.slane %v4510, 5
        %v4772 = vsel %vm702, %v4770, %v4771
        %v4773 = vrot.slane %v4737, 5
        %v4774 = vrot.slane %v4773, 4
        %v4775 = vrot.slane %v4512, 5
        %v4776 = vsel %vm702, %v4774, %v4775
        %v4777 = vrot.slane %v4738, 5
        %v4778 = vrot.slane %v4777, 4
        %v4779 = vrot.slane %v4514, 5
        %v4780 = vsel %vm702, %v4778, %v4779
        %v4781 = vrot.slane %v4739, 5
        %v4782 = vrot.slane %v4781, 4
        %v4783 = vrot.slane %v4516, 5
        %v4784 = vsel %vm702, %v4782, %v4783
        %v4785 = vrot.slane %v4740, 5
        %v4786 = vrot.slane %v4785, 4
        %v4787 = vrot.slane %v4518, 5
        %v4788 = vsel %vm702, %v4786, %v4787
        %s4789 = scalar_lea.vmem %s3, 52
        %v4790 = vld [vmem:[%s4789] sm:$0x3]
        %v4791 = vunpack.c.l.b16 %v4760
        %v4792 = vunpack.c.l.b16 %v4764
        %v4793 = vunpack.c.l.b16 %v4768
        %v4794 = vunpack.c.l.b16 %v4772
        %v4795 = vunpack.c.l.b16 %v4776
        %v4796 = vunpack.c.l.b16 %v4780
        %v4797 = vunpack.c.l.b16 %v4784
        %v4798 = vunpack.c.l.b16 %v4788
        %v4799 = vpack.c.b16 %v4792, %v4791
        %v4800 = vpack.c.b16 %v4794, %v4793
        %v4801 = vpack.c.b16 %v4796, %v4795
        %v4802 = vpack.c.b16 %v4798, %v4797
        %v4804 = vsel %vm494, %v4799, 0
        %v4807 = vsel %vm494, %v4800, 0
        %v4810 = vsel %vm494, %v4801, 0
        %v4813 = vsel %vm494, %v4802, 0
        %v4816 = vsel %vm507, %v4790, 0
        %4818 = vmatprep.subr.bf16.mxu0 0
        %4819 = vmatpush1.bf16.msra.mxu0 %v4816
        %4820 = vmatprep.subr.bf16.mxu0 0
        %4821 = vmatpush1.bf16.msra.mxu0 0
        %4822 = vmatprep.subr.bf16.mxu0 0
        %4823 = vmatpush1.bf16.msra.mxu0 0
        %4824 = vmatprep.subr.bf16.mxu0 0
        %4825 = vmatpush1.bf16.msra.mxu0 0
        %4826 = vmatprep.subr.bf16.mxu0 0
        %4827 = vmatpush1.bf16.msra.mxu0 0
        %4828 = vmatprep.subr.bf16.mxu0 0
        %4829 = vmatpush1.bf16.msra.mxu0 0
        %4830 = vmatprep.subr.bf16.mxu0 0
        %4831 = vmatpush1.bf16.msra.mxu0 0
        %4832 = vmatprep.subr.bf16.mxu0 0
        %4833 = vmatpush1.bf16.msra.mxu0 0
        %4834 = vmatprep.subr.bf16.mxu0 0
        %4835 = vmatpush1.bf16.msra.mxu0 0
        %4836 = vmatprep.subr.bf16.mxu0 0
        %4837 = vmatpush1.bf16.msra.mxu0 0
        %4838 = vmatprep.subr.bf16.mxu0 0
        %4839 = vmatpush1.bf16.msra.mxu0 0
        %4840 = vmatprep.subr.bf16.mxu0 0
        %4841 = vmatpush1.bf16.msra.mxu0 0
        %4842 = vmatprep.subr.bf16.mxu0 0
        %4843 = vmatpush1.bf16.msra.mxu0 0
        %4844 = vmatprep.subr.bf16.mxu0 0
        %4845 = vmatpush1.bf16.msra.mxu0 0
        %4846 = vmatprep.subr.bf16.mxu0 0
        %4847 = vmatpush1.bf16.msra.mxu0 0
        %4848 = vmatprep.subr.bf16.mxu0 0
        %4849 = vmatpush1.bf16.msra.mxu0 0
        %4850 = vmatprep.mubr.bf16.mxu0 0
        %4851 = vmatmul.mubr.bf16.gmra.mrb[0].mxu0 %v4804
        %v4852 = vpop.f32.mrb[0].mxu0
        %v4853 = vadd.f32 0.0, %v4852
        %v4854 = vpop.f32.mrb[0].mxu0
        %v4855 = vpop.f32.mrb[0].mxu0
        %v4856 = vadd.f32 0.0, %v4855
        %v4857 = vpop.f32.mrb[0].mxu0
        %4858 = vmatprep.mubr.bf16.mxu0 0
        %4859 = vmatmul.mubr.bf16.gmra.mrb[0].mxu0 %v4807
        %v4860 = vpop.f32.mrb[0].mxu0
        %v4861 = vadd.f32 0.0, %v4860
        %v4862 = vpop.f32.mrb[0].mxu0
        %v4863 = vpop.f32.mrb[0].mxu0
        %v4864 = vadd.f32 0.0, %v4863
        %v4865 = vpop.f32.mrb[0].mxu0
        %4866 = vmatprep.mubr.bf16.mxu0 0
        %4867 = vmatmul.mubr.bf16.gmra.mrb[0].mxu0 %v4810
        %v4868 = vpop.f32.mrb[0].mxu0
        %v4869 = vadd.f32 0.0, %v4868
        %v4870 = vpop.f32.mrb[0].mxu0
        %v4871 = vpop.f32.mrb[0].mxu0
        %v4872 = vadd.f32 0.0, %v4871
        %v4873 = vpop.f32.mrb[0].mxu0
        %4874 = vmatprep.mubr.bf16.mxu0 0
        %4875 = vmatmul.mubr.bf16.gmra.mrb[0].mxu0 %v4813
        %v4876 = vpop.f32.mrb[0].mxu0
        %v4877 = vadd.f32 0.0, %v4876
        %v4878 = vpop.f32.mrb[0].mxu0
        %v4879 = vpop.f32.mrb[0].mxu0
        %v4880 = vadd.f32 0.0, %v4879
        %v4881 = vpop.f32.mrb[0].mxu0
        %4882 = vdwg.mxu0
        %v4883 = vadd.f32 %v4725, %v4853
        %v4884 = vadd.f32 %v4726, %v4856
        %v4885 = vadd.f32 %v4727, %v4861
        %v4886 = vadd.f32 %v4728, %v4864
        %v4887 = vadd.f32 %v4729, %v4869
        %v4888 = vadd.f32 %v4730, %v4872
        %v4889 = vadd.f32 %v4731, %v4877
        %v4890 = vadd.f32 %v4732, %v4880
        %v4891 = vpack.c.bf16 %v4884, %v4883
        %v4892 = vpack.c.bf16 %v4886, %v4885
        %v4893 = vpack.c.bf16 %v4888, %v4887
        %v4894 = vpack.c.bf16 %v4890, %v4889
        %v4899 = vunpack.c.l.b16 %v4891
        %v4900 = vunpack.c.h.b16 %v4891
        %v4901 = vunpack.c.l.b16 %v4892
        %v4902 = vunpack.c.h.b16 %v4892
        %v4903 = vunpack.c.l.b16 %v4893
        %v4904 = vunpack.c.h.b16 %v4893
        %v4905 = vunpack.c.l.b16 %v4894
        %v4906 = vunpack.c.h.b16 %v4894
        %v4907 = vpack.c.b16 %v4899, %v4899
        %v4908 = vpack.c.b16 %v4900, %v4900
        %v4909 = vpack.c.b16 %v4901, %v4901
        %v4910 = vpack.c.b16 %v4902, %v4902
        %v4911 = vpack.c.b16 %v4903, %v4903
        %v4912 = vpack.c.b16 %v4904, %v4904
        %v4913 = vpack.c.b16 %v4905, %v4905
        %v4914 = vpack.c.b16 %v4906, %v4906
        %4923 = vst [vmem:[%s307] sm:$0xf] %v4907
        %4924 = vst [vmem:[%s307 + $0x4] sm:$0xf] %v4908
        %4925 = vst [vmem:[%s307 + $0x8] sm:$0xf] %v4909
        %4926 = vst [vmem:[%s307 + $0xc] sm:$0xf] %v4910
        %4927 = vst [vmem:[%s307 + $0x10] sm:$0xf] %v4911
        %4928 = vst [vmem:[%s307 + $0x14] sm:$0xf] %v4912
        %4929 = vst [vmem:[%s307 + $0x18] sm:$0xf] %v4913
        %4930 = vst [vmem:[%s307 + $0x1c] sm:$0xf] %v4914
        %v4931 = vadd.f32 %v4883, %v4884
        %v4932 = vadd.f32 %v4931, %v4885
        %v4933 = vadd.f32 %v4932, %v4886
        %v4934 = vadd.f32 %v4933, %v4887
        %v4935 = vadd.f32 %v4934, %v4888
        %v4936 = vadd.f32 %v4935, %v4889
        %v4937 = vadd.f32 %v4936, %v4890
        %v4938 = vrot.slane %v4937, 4
        %v4939 = vadd.f32 %v4937, %v4938
        %v4940 = vrot.slane %v4939, 2
        %v4941 = vadd.f32 %v4939, %v4940
        %v4942 = vrot.slane %v4941, 1
        %v4943 = vadd.f32 %v4941, %v4942
        %4944 = vst [vmem:[%s314] sm:$0x1] %v4943
        %v4945 = vmul.f32 %v4883, %v4883
        %v4946 = vmul.f32 %v4884, %v4884
        %v4947 = vmul.f32 %v4885, %v4885
        %v4948 = vmul.f32 %v4886, %v4886
        %v4949 = vmul.f32 %v4887, %v4887
        %v4950 = vmul.f32 %v4888, %v4888
        %v4951 = vmul.f32 %v4889, %v4889
        %v4952 = vmul.f32 %v4890, %v4890
        %v4953 = vadd.f32 %v4945, %v4946
        %v4954 = vadd.f32 %v4953, %v4947
        %v4955 = vadd.f32 %v4954, %v4948
        %v4956 = vadd.f32 %v4955, %v4949
        %v4957 = vadd.f32 %v4956, %v4950
        %v4958 = vadd.f32 %v4957, %v4951
        %v4959 = vadd.f32 %v4958, %v4952
        %v4960 = vrot.slane %v4959, 4
        %v4961 = vadd.f32 %v4959, %v4960
        %v4962 = vrot.slane %v4961, 2
        %v4963 = vadd.f32 %v4961, %v4962
        %v4964 = vrot.slane %v4963, 1
        %v4965 = vadd.f32 %v4963, %v4964
        %4966 = vst [vmem:[%s314 + $0x1] sm:$0x1] %v4965
        %s4967 = sand.u32 %s154, 1
        %s4968 = scalar_lea.sflag [#allocation3], %s4967
        %s4969 = sand.u32 %s154, 1
        %s4970 = smul.addr %s4969, 32
        %s4971 = scalar_lea.vmem [#allocation2], %s4970
        %s4972 = sand.u32 %s182, 1
        %s4973 = scalar_lea.sflag [#allocation5], %s4972
        %s4974 = sand.u32 %s182, 1
        %s4975 = smul.addr %s4974, 2
        %s4976 = scalar_lea.vmem [#allocation4], %s4975
        // Predicated region
        $region37: #{tpu_custom_call.1} parent=35 // pred_check
          %p4977 = pneg %p164
        $region38: #{tpu_custom_call.1} parent=35 // pred_check_branch
          %4979 = sbr.rel (%p4977) target = $region40
        $region39: #{tpu_custom_call.1} parent=35 // pred_region
          %s4980 = smul.u32 8, %s28
          %s4982 = ssub.s32 512, 512
          %4983 = vsyncadd %s4968, %s4982
          %s4984 = smul.addr %s27, 64
          %s4985 = sadd.s32 %s4980, %s4984
          %s4986 = smul.addr %s4985, 64
          %s4987 = scalar_lea.hbm %s4, %s4986
          %s4988 = sshll.u32 %s4971, 4
          %s4989 = int_to_ptr.vmem [resolvable:$true] %s4988
          %4994 = dma.vmem_to_hbm [thread:$0]  %s4989, 512, %s4987, %s4968, 64, 64, 4
        $region40: #{tpu_custom_call.1} parent=35 // pred_fallthru
          _
        // Predicated region
        $region41: #{tpu_custom_call.1} parent=35 // pred_check
          %p4995 = pneg %p192
        $region42: #{tpu_custom_call.1} parent=35 // pred_check_branch
          %4997 = sbr.rel (%p4995) target = $region44
        $region43: #{tpu_custom_call.1} parent=35 // pred_region
          %s4999 = ssub.s32 32, 32
          %5000 = vsyncadd %s4973, %s4999
          %s5001 = smul.addr %s27, 8
          %s5002 = sadd.s32 %s28, %s5001
          %s5003 = smul.addr %s5002, 32
          %s5004 = scalar_lea.hbm %s5, %s5003
          %s5006 = sshll.u32 %s4976, 4
          %s5007 = int_to_ptr.vmem [resolvable:$true] %s5006
          %5009 = dma.vmem_to_hbm [thread:$0]  %s5007, 32, %s5004, %s4973
        $region44: #{tpu_custom_call.1} parent=35 // pred_fallthru
          _
      $region36: #{tpu_custom_call.1} parent=5 // pred_fallthru
        _
      %p5010 = scmp.le.s32.totalorder 2, %s18
      // Predicated region
      $region45: #{tpu_custom_call.1} parent=5 // pred_check
        %p5011 = pneg %p5010
      $region46: #{tpu_custom_call.1} parent=5 // pred_check_branch
        %5013 = sbr.rel (%p5011) target = $region48
      $region47: #{tpu_custom_call.1} parent=5 // pred_region
        %s5014 = ssub.s32 %s18, 2
        // Predicated region
        $region49: #{tpu_custom_call.1} parent=47 // pred_check
          %p5015 = pneg %p170
        $region50: #{tpu_custom_call.1} parent=47 // pred_check_branch
          %5017 = sbr.rel (%p5015) target = $region52
        $region51: #{tpu_custom_call.1} parent=47 // pred_region
          %s5018 = sand.u32 %s155, 1
          %s5019 = scalar_lea.sflag [#allocation3], %s5018
          %s5020 = sand.u32 %s155, 1
          %s5021 = smul.addr %s5020, 32
          %s5022 = scalar_lea.vmem [#allocation2], %s5021
          %5023 = dma.done %s5019, 512
        $region52: #{tpu_custom_call.1} parent=47 // pred_fallthru
          _
        // Predicated region
        $region53: #{tpu_custom_call.1} parent=47 // pred_check
          %p5024 = pneg %p198
        $region54: #{tpu_custom_call.1} parent=47 // pred_check_branch
          %5026 = sbr.rel (%p5024) target = $region56
        $region55: #{tpu_custom_call.1} parent=47 // pred_region
          %s5027 = sand.u32 %s183, 1
          %s5028 = scalar_lea.sflag [#allocation5], %s5027
          %s5029 = sand.u32 %s183, 1
          %s5030 = smul.addr %s5029, 2
          %s5031 = scalar_lea.vmem [#allocation4], %s5030
          %5032 = dma.done %s5028, 32
        $region56: #{tpu_custom_call.1} parent=47 // pred_fallthru
          _
      $region48: #{tpu_custom_call.1} parent=5 // pred_fallthru
        _
    $region6: #{tpu_custom_call.1} parent=1 // loop_footer
      %s22 = sadd.s32 1, %s18
    $region7: #{tpu_custom_call.1} parent=1 // loop_footer_branch
      %17 = sbr.rel target = $region3
    $region8: #{tpu_custom_call.1} parent=1 // loop_exit
      _
    %5033 = vsyncpa [#allocation3], 1
    %s5034 = scalar_lea.sflag [#allocation3], 1
    %5035 = vsyncpa %s5034, 1
    %5036 = vsyncpa [#allocation5], 1
    %s5037 = scalar_lea.sflag [#allocation5], 1
    %5038 = vsyncpa %s5037, 1

</llo_original>
